<compile_context>
chip_gen: v5e
topology: v5e:2x2
jax: 0.10.0
libtpu: 0.0.40
codegen_flags: <defaults>
</compile_context>

<pallas_src>
import functools

import jax
import jax.numpy as jnp
from jax.experimental import pallas as pl
from jax.experimental.pallas import tpu as pltpu


# ----------------------------------------------------------------------------
# Matmul helper: cast LHS to the (bf16) weight dtype, accumulate in f32.
# ----------------------------------------------------------------------------
def _mm(a, b):
    return jnp.dot(a.astype(b.dtype), b, preferred_element_type=jnp.float32)


# ----------------------------------------------------------------------------
# GRU step (PyTorch gate ordering r, z, n) with pre-computed input gates xg_t.
# Works for a single GRU (Hh = H) and for stacked, gate-major packed GRUs
# (Hh = G*H).  b_hh_b is pre-broadcast to (N, 3*Hh) outside the recurrence.
# Adjacent sigmoid gates (r, z) are computed with one fused sigmoid.
# ----------------------------------------------------------------------------
def _gru_step(xg_t, h, w_hh_t, b_hh_b, Hh):
    hg = _mm(h, w_hh_t) + b_hh_b
    rz = jax.nn.sigmoid(xg_t[:, 0:2 * Hh] + hg[:, 0:2 * Hh])
    r = rz[:, 0:Hh]
    z = rz[:, Hh:2 * Hh]
    n = jnp.tanh(xg_t[:, 2 * Hh:3 * Hh] + r * hg[:, 2 * Hh:3 * Hh])
    return (1.0 - z) * n + z * h


# ----------------------------------------------------------------------------
# Fused kernel: entire Vulnerability forward pass for ONE graph (grid = graphs).
# refs = (27 inputs ..., out_ref); conv weight refs are the trailing 2*L inputs.
# ----------------------------------------------------------------------------
def fused_vulnerability_kernel(*refs):
    (f1_ref, x2_ref, a_ref,
     tl_wioux_t_ref, tl_wiouh_t_ref, tl_bioux_ref, tl_biouh_ref,
     tl_wfx_t_ref, tl_wfh_t_ref, tl_bfx_ref, tl_bfh_ref,
     g_wih_bd_ref, g_whh_bd_ref, g_bih_ref, g_bhh_ref,
     c_wih_bd_ref, c_whh_bd_ref, c_bih_ref, c_bhh_ref,
     conn_w_ref, conn_b_ref) = refs[:21]
    conv_refs = refs[21:-1]
    out_ref = refs[-1]

    f32 = jnp.float32
    N = a_ref.shape[0]                     # graph nodes (statements)
    H = tl_wfh_t_ref.shape[0]              # h_size
    T1 = f1_ref.shape[0] // N              # chain-tree depth
    T2 = x2_ref.shape[0] // N              # sequence length for gru_1..4
    H4 = g_whh_bd_ref.shape[0]             # 4*H (stacked gru_1..4 hidden width)
    H2 = c_whh_bd_ref.shape[0]             # 2*H (fused biGRU hidden width)

    # ---- 1. ChildSumTreeLSTM over chain trees (leaf -> root) ---------------
    # TODO(synk): arbitrary tree topologies are approximated by chain trees.
    x1 = f1_ref[...]                                       # (T1*N, F) time-major
    wiouh_t = tl_wiouh_t_ref[...]
    wfh_t = tl_wfh_t_ref[...]
    # hoisted input-side matmuls, batched over all T1 timesteps
    iou_x = _mm(x1, tl_wioux_t_ref[...]) + tl_bioux_ref[...]   # (T1*N, 3H)
    fx_all = _mm(x1, tl_wfx_t_ref[...]) + tl_bfx_ref[...]      # (T1*N, H)
    biouh_b = jnp.broadcast_to(tl_biouh_ref[...], (N, 3 * H))
    bfh_b = jnp.broadcast_to(tl_bfh_ref[...], (N, H))

    c = jnp.zeros((N, H), f32)
    h = jnp.zeros((N, H), f32)
    for step in range(T1):                                  # fully unrolled
        t = T1 - 1 - step                                   # deepest leaf first
        r0 = t * N                                          # sublane-aligned row slice
        iou = iou_x[r0:r0 + N, :] + _mm(h, wiouh_t) + biouh_b
        io = jax.nn.sigmoid(iou[:, 0:2 * H])                # fused i,o sigmoid
        i = io[:, 0:H]
        o = io[:, H:2 * H]
        u = jnp.tanh(iou[:, 2 * H:3 * H])
        f = jax.nn.sigmoid(fx_all[r0:r0 + N, :] + _mm(h, wfh_t) + bfh_b)
        c = i * u + f * c
        h = o * jnp.tanh(c)
    fv1 = h                                                 # (N, H) root hidden

    # ---- 2. gru_1..gru_4 as ONE lane-dense stacked recurrence --------------
    # hidden (N, 4H), block-diagonal gate-major weights; x-transform hoisted.
    # TODO(synk): variable-length pack_sequence handling not modeled.
    xg_all = _mm(x2_ref[...], g_wih_bd_ref[...]) + g_bih_ref[...]   # (T2*N, 12H)
    whh_bd = g_whh_bd_ref[...]
    g_bhh_b = jnp.broadcast_to(g_bhh_ref[...], (N, 3 * H4))

    hs = jnp.zeros((N, H4), f32)
    for t in range(T2):                                     # fully unrolled
        hs = _gru_step(xg_all[t * N:(t + 1) * N, :], hs, whh_bd, g_bhh_b, H4)

    # ---- 3. bidirectional gru_combine as ONE block-diagonal recurrence -----
    fvs = [fv1,
           hs[:, 0:H], hs[:, H:2 * H], hs[:, 2 * H:3 * H], hs[:, 3 * H:4 * H]]
    Tc = len(fvs)                                           # == num_node_feature
    fv_fwd = jnp.concatenate(fvs, axis=0)                   # (Tc*N, H)
    fv_bwd = jnp.concatenate(fvs[::-1], axis=0)             # (Tc*N, H)
    xc = jnp.concatenate([fv_fwd, fv_bwd], axis=1)          # (Tc*N, 2H)
    xgc_all = _mm(xc, c_wih_bd_ref[...]) + c_bih_ref[...]   # (Tc*N, 6H)
    c_whh_bd = c_whh_bd_ref[...]
    c_bhh_b = jnp.broadcast_to(c_bhh_ref[...], (N, 3 * H2))

    hc = jnp.zeros((N, H2), f32)
    outs_c = []
    for t in range(Tc):                                     # fully unrolled
        hc = _gru_step(xgc_all[t * N:(t + 1) * N, :], hc, c_whh_bd, c_bhh_b, H2)
        outs_c.append(hc)     # [:, 0:H] = fwd(t), [:, H:2H] = bwd(Tc-1-t)

    # ---- 4. connect: single (N, 2H*Tc) @ (2H*Tc, H) matmul ------------------
    # conn_w rows were permuted in the wrapper to match this slab layout.
    slab = jnp.concatenate(outs_c, axis=1)                  # (N, 2H*Tc)
    feat = _mm(slab, conn_w_ref[...]) + conn_b_ref[...]     # (N, H)

    # ---- 5. GCNConv stack + global max pool + softmax -----------------------
    a = a_ref[...]                                          # (N, N) normalized adj
    num_conv = len(conv_refs) // 2
    for li in range(num_conv):
        w_t = conv_refs[2 * li][...]
        b = conv_refs[2 * li + 1][...]
        xw = _mm(feat, w_t)
        feat = _mm(a, xw) + b
        if li < num_conv - 1:
            feat = jnp.maximum(feat, 0.0)

    pooled = jnp.max(feat, axis=0, keepdims=True)           # (1, C)
    m = jnp.max(pooled, axis=1, keepdims=True)
    e = jnp.exp(pooled - m)
    out_ref[...] = e / jnp.sum(e, axis=1, keepdims=True)


# ----------------------------------------------------------------------------
# Parameter init / packing (plain JAX, done once outside the kernel)
# ----------------------------------------------------------------------------
def _pack_gru_stack(wih_ts, whh_ts, bihs, bhhs, H, F):
    """Pack G independent GRUs (each W_ih^T:(F,3H), W_hh^T:(H,3H), gate order
    [r|z|n]) into block-diagonal, gate-major stacked weights so all G
    recurrences run as one lane-dense (N, G*H) GRU step."""
    G = len(wih_ts)
    GH = G * H
    wih_bd = jnp.zeros((G * F, 3 * GH), jnp.float32)
    whh_bd = jnp.zeros((G * H, 3 * GH), jnp.float32)
    bih = jnp.zeros((1, 3 * GH), jnp.float32)
    bhh = jnp.zeros((1, 3 * GH), jnp.float32)
    for g in range(G):
        for gate in range(3):
            col = gate * GH + g * H
            src = slice(gate * H, (gate + 1) * H)
            wih_bd = wih_bd.at[g * F:(g + 1) * F, col:col + H].set(wih_ts[g][:, src])
            whh_bd = whh_bd.at[g * H:(g + 1) * H, col:col + H].set(whh_ts[g][:, src])
            bih = bih.at[:, col:col + H].set(bihs[g][:, src])
            bhh = bhh.at[:, col:col + H].set(bhhs[g][:, src])
    return wih_bd, whh_bd, bih, bhh


def _permute_connect_rows(conn_w_t, H, Tc):
    """Permute connect-weight rows so that the in-kernel slab
    [hc(0) | hc(1) | ... | hc(Tc-1)]  (hc(s) = [fwd(s) | bwd(Tc-1-s)])
    matches torch.flatten order [t0_f, t0_b, t1_f, t1_b, ...]."""
    idx = []
    for s in range(Tc):
        fb = 2 * s                    # forward output at time s
        bb = 2 * (Tc - 1 - s) + 1     # backward output at time Tc-1-s
        idx.extend(range(fb * H, (fb + 1) * H))
        idx.extend(range(bb * H, (bb + 1) * H))
    return conn_w_t[jnp.asarray(idx, dtype=jnp.int32), :]


def init_params(key, F, H, num_node_feature, num_conv_layers):
    keys = iter(jax.random.split(key, 64))

    def nrm(shape):
        return 0.1 * jax.random.normal(next(keys), shape, jnp.float32)

    p = {}
    # ChildSumTreeLSTM
    p['tl_wioux_t'] = nrm((F, 3 * H)); p['tl_bioux'] = nrm((1, 3 * H))
    p['tl_wiouh_t'] = nrm((H, 3 * H)); p['tl_biouh'] = nrm((1, 3 * H))
    p['tl_wfx_t'] = nrm((F, H)); p['tl_bfx'] = nrm((1, H))
    p['tl_wfh_t'] = nrm((H, H)); p['tl_bfh'] = nrm((1, H))
    # gru_1 .. gru_4 (independent GRUs, packed into one stacked recurrence)
    wih_ts, whh_ts, bihs, bhhs = [], [], [], []
    for _ in range(4):
        wih_ts.append(nrm((F, 3 * H)))
        whh_ts.append(nrm((H, 3 * H)))
        bihs.append(nrm((1, 3 * H)))
        bhhs.append(nrm((1, 3 * H)))
    (p['g_wih_bd'], p['g_whh_bd'],
     p['g_bih'], p['g_bhh']) = _pack_gru_stack(wih_ts, whh_ts, bihs, bhhs, H, F)
    # gru_combine (bidirectional) -> packed into ONE 2-way block-diag GRU
    cwih_ts, cwhh_ts, cbihs, cbhhs = [], [], [], []
    for _ in range(2):                    # [forward, backward]
        cwih_ts.append(nrm((H, 3 * H)))
        cwhh_ts.append(nrm((H, 3 * H)))
        cbihs.append(nrm((1, 3 * H)))
        cbhhs.append(nrm((1, 3 * H)))
    (p['c_wih_bd'], p['c_whh_bd'],
     p['c_bih'], p['c_bhh']) = _pack_gru_stack(cwih_ts, cwhh_ts, cbihs, cbhhs, H, H)
    # connect: Linear(h_size * num_node_feature * 2 -> h_size)
    p['connect_w_t'] = nrm((2 * H * num_node_feature, H))
    p['connect_b'] = nrm((1, H))
    # GCNConv stack
    convs = []
    for i in range(num_conv_layers):
        cout = H if i < num_conv_layers - 1 else num_node_feature
        convs.append((nrm((H, cout)), nrm((1, cout))))
    p['convs'] = convs
    return p


def normalized_adjacency(edge_index, n):
    src, dst = edge_index[0], edge_index[1]
    a = jnp.zeros((n, n), jnp.float32).at[dst, src].add(1.0)
    a = a + jnp.eye(n, dtype=jnp.float32)          # add self loops
    deg = jnp.sum(a, axis=1)
    dinv = jnp.where(deg > 0, 1.0 / jnp.sqrt(deg), 0.0)
    return a * dinv[:, None] * dinv[None, :]


# ----------------------------------------------------------------------------
# Forward wrapper: one pallas_call with a "parallel" grid over B graphs.
# All layout plumbing (time-major packing, weight bf16 casts, connect-row
# permutation) happens here, once, outside the kernel.
# ----------------------------------------------------------------------------
def vulnerability_forward(params, my_data, edge_index, *, num_node_feature):
    f1 = my_data['feature_1']                       # (B, N, T_tree, F)
    B, N, T1, Fdim = f1.shape
    f2345 = jnp.concatenate([my_data['feature_2'], my_data['feature_3'],
                             my_data['feature_4'], my_data['feature_5']],
                            axis=-1)                # (B, N, T_seq, 4F)
    T2 = f2345.shape[2]

    # time-major 2-D slabs: per-step rows are sublane-aligned (multiples of N)
    f1_tm = jnp.transpose(f1, (0, 2, 1, 3)).reshape(B, T1 * N, Fdim)
    x2_tm = jnp.transpose(f2345, (0, 2, 1, 3)).reshape(B, T2 * N, 4 * Fdim)

    a_norm = jax.vmap(lambda e: normalized_adjacency(e, N))(edge_index)  # (B,N,N)

    H = params['tl_wfh_t'].shape[0]
    Tc = num_node_feature
    bf16 = jnp.bfloat16

    conn_w = _permute_connect_rows(params['connect_w_t'], H, Tc).astype(bf16)

    weights = [
        params['tl_wioux_t'].astype(bf16), params['tl_wiouh_t'].astype(bf16),
        params['tl_bioux'], params['tl_biouh'],
        params['tl_wfx_t'].astype(bf16), params['tl_wfh_t'].astype(bf16),
        params['tl_bfx'], params['tl_bfh'],
        params['g_wih_bd'].astype(bf16), params['g_whh_bd'].astype(bf16),
        params['g_bih'], params['g_bhh'],
        params['c_wih_bd'].astype(bf16), params['c_whh_bd'].astype(bf16),
        params['c_bih'], params['c_bhh'],
        conn_w, params['connect_b'],
    ]
    conv_args = []
    for w_t, b in params['convs']:
        conv_args += [w_t.astype(bf16), b]

    args = [f1_tm, x2_tm, a_norm] + weights + conv_args

    def batched_spec(shape):
        nb = len(shape) - 1
        return pl.BlockSpec((None,) + tuple(shape[1:]),
                            lambda b, _nb=nb: (b,) + (0,) * _nb)

    def const_spec(shape):
        nd = len(shape)
        return pl.BlockSpec(tuple(shape), lambda b, _nd=nd: (0,) * _nd)

    in_specs = [batched_spec(f1_tm.shape), batched_spec(x2_tm.shape),
                batched_spec(a_norm.shape)]
    in_specs += [const_spec(w.shape) for w in weights + conv_args]

    out = pl.pallas_call(
        fused_vulnerability_kernel,
        out_shape=jax.ShapeDtypeStruct((B, 1, num_node_feature), jnp.float32),
        grid=(B,),
        in_specs=in_specs,
        out_specs=pl.BlockSpec((None, 1, num_node_feature),
                               lambda b: (b, 0, 0)),
        compiler_params=pltpu.CompilerParams(
            dimension_semantics=("parallel",)),
    )(*args)
    return out[:, 0, :]                              # (B, num_node_feature)


if __name__ == "__main__":
    H = 32                  # h_size
    F = 16                  # feature_representation_size
    NUM_NODE_FEATURE = 5    # required to be 5 by the forward's 5-way concat
    NUM_CLASSES = 2         # unused by the forward math (last GCN outputs 5)
    NUM_CONV_LAYERS = 3
    B = 2                   # graphs per pallas_call (parallel grid axis)
    N = 8                   # graph nodes (statements) per graph
    T_TREE = 4              # chain-tree depth per node
    T_SEQ = 6               # sequence length for the 4 GRU feature types

    key = jax.random.PRNGKey(0)
    kp, k1, k2, k3, k4, k5 = jax.random.split(key, 6)
    params = init_params(kp, F, H, NUM_NODE_FEATURE, NUM_CONV_LAYERS)

    my_data = {
        'feature_1': jax.random.normal(k1, (B, N, T_TREE, F), jnp.float32),
        'feature_2': jax.random.normal(k2, (B, N, T_SEQ, F), jnp.float32),
        'feature_3': jax.random.normal(k3, (B, N, T_SEQ, F), jnp.float32),
        'feature_4': jax.random.normal(k4, (B, N, T_SEQ, F), jnp.float32),
        'feature_5': jax.random.normal(k5, (B, N, T_SEQ, F), jnp.float32),
    }
    # graph 0: ring (+/-1); graph 1: ring with stride 3 (both directions)
    src = jnp.arange(N, dtype=jnp.int32)
    dst1 = (src + 1) % N
    dst3 = (src + 3) % N
    ei0 = jnp.stack([jnp.concatenate([src, dst1]),
                     jnp.concatenate([dst1, src])], axis=0)
    ei1 = jnp.stack([jnp.concatenate([src, dst3]),
                     jnp.concatenate([dst3, src])], axis=0)
    edge_index = jnp.stack([ei0, ei1], axis=0)       # (B, 2, 2N)

    fwd = jax.jit(functools.partial(
        vulnerability_forward, num_node_feature=NUM_NODE_FEATURE))
    out = fwd(params, my_data, edge_index)
    out = jax.block_until_ready(out)

    assert out.shape == (B, NUM_NODE_FEATURE), out.shape
    assert bool(jnp.all(jnp.isfinite(out)))
    row_sums = jnp.sum(out, axis=1)
    assert bool(jnp.all(jnp.abs(row_sums - 1.0) < 1e-3))   # softmax rows sum to 1
    print("KERNEL_OK")
</pallas_src>

<mosaic_0001>
module attributes {stable_mosaic.version = 11 : i64} {
  func.func @fused_vulnerability_kernel(%arg0: i32, %arg1: memref<1x32x16xf32, #tpu.memory_space<vmem>>, %arg2: memref<1x48x64xf32, #tpu.memory_space<vmem>>, %arg3: memref<1x8x8xf32, #tpu.memory_space<vmem>>, %arg4: memref<16x96xbf16, #tpu.memory_space<vmem>>, %arg5: memref<32x96xbf16, #tpu.memory_space<vmem>>, %arg6: memref<1x96xf32, #tpu.memory_space<vmem>>, %arg7: memref<1x96xf32, #tpu.memory_space<vmem>>, %arg8: memref<16x32xbf16, #tpu.memory_space<vmem>>, %arg9: memref<32x32xbf16, #tpu.memory_space<vmem>>, %arg10: memref<1x32xf32, #tpu.memory_space<vmem>>, %arg11: memref<1x32xf32, #tpu.memory_space<vmem>>, %arg12: memref<64x384xbf16, #tpu.memory_space<vmem>>, %arg13: memref<128x384xbf16, #tpu.memory_space<vmem>>, %arg14: memref<1x384xf32, #tpu.memory_space<vmem>>, %arg15: memref<1x384xf32, #tpu.memory_space<vmem>>, %arg16: memref<64x192xbf16, #tpu.memory_space<vmem>>, %arg17: memref<64x192xbf16, #tpu.memory_space<vmem>>, %arg18: memref<1x192xf32, #tpu.memory_space<vmem>>, %arg19: memref<1x192xf32, #tpu.memory_space<vmem>>, %arg20: memref<320x32xbf16, #tpu.memory_space<vmem>>, %arg21: memref<1x32xf32, #tpu.memory_space<vmem>>, %arg22: memref<32x32xbf16, #tpu.memory_space<vmem>>, %arg23: memref<1x32xf32, #tpu.memory_space<vmem>>, %arg24: memref<32x32xbf16, #tpu.memory_space<vmem>>, %arg25: memref<1x32xf32, #tpu.memory_space<vmem>>, %arg26: memref<32x5xbf16, #tpu.memory_space<vmem>>, %arg27: memref<1x5xf32, #tpu.memory_space<vmem>>, %arg28: memref<1x1x5xf32, #tpu.memory_space<vmem>>) attributes {dimension_semantics = [#tpu.dimension_semantics<parallel>], iteration_bounds = array<i64: 2>, scalar_prefetch = 0 : i64, scratch_operands = 0 : i64, tpu.core_type = #tpu.core_type<tc>, window_params = [{transform_indices = @transform_0, window_bounds = array<i64: 1, 32, 16>}, {transform_indices = @transform_1, window_bounds = array<i64: 1, 48, 64>}, {transform_indices = @transform_2, window_bounds = array<i64: 1, 8, 8>}, {pipeline_mode = #tpu.pipeline_mode<synchronous>, transform_indices = @transform_3, window_bounds = array<i64: 16, 96>}, {pipeline_mode = #tpu.pipeline_mode<synchronous>, transform_indices = @transform_4, window_bounds = array<i64: 32, 96>}, {pipeline_mode = #tpu.pipeline_mode<synchronous>, transform_indices = @transform_5, window_bounds = array<i64: 1, 96>}, {pipeline_mode = #tpu.pipeline_mode<synchronous>, transform_indices = @transform_6, window_bounds = array<i64: 1, 96>}, {pipeline_mode = #tpu.pipeline_mode<synchronous>, transform_indices = @transform_7, window_bounds = array<i64: 16, 32>}, {pipeline_mode = #tpu.pipeline_mode<synchronous>, transform_indices = @transform_8, window_bounds = array<i64: 32, 32>}, {pipeline_mode = #tpu.pipeline_mode<synchronous>, transform_indices = @transform_9, window_bounds = array<i64: 1, 32>}, {pipeline_mode = #tpu.pipeline_mode<synchronous>, transform_indices = @transform_10, window_bounds = array<i64: 1, 32>}, {pipeline_mode = #tpu.pipeline_mode<synchronous>, transform_indices = @transform_11, window_bounds = array<i64: 64, 384>}, {pipeline_mode = #tpu.pipeline_mode<synchronous>, transform_indices = @transform_12, window_bounds = array<i64: 128, 384>}, {pipeline_mode = #tpu.pipeline_mode<synchronous>, transform_indices = @transform_13, window_bounds = array<i64: 1, 384>}, {pipeline_mode = #tpu.pipeline_mode<synchronous>, transform_indices = @transform_14, window_bounds = array<i64: 1, 384>}, {pipeline_mode = #tpu.pipeline_mode<synchronous>, transform_indices = @transform_15, window_bounds = array<i64: 64, 192>}, {pipeline_mode = #tpu.pipeline_mode<synchronous>, transform_indices = @transform_16, window_bounds = array<i64: 64, 192>}, {pipeline_mode = #tpu.pipeline_mode<synchronous>, transform_indices = @transform_17, window_bounds = array<i64: 1, 192>}, {pipeline_mode = #tpu.pipeline_mode<synchronous>, transform_indices = @transform_18, window_bounds = array<i64: 1, 192>}, {pipeline_mode = #tpu.pipeline_mode<synchronous>, transform_indices = @transform_19, window_bounds = array<i64: 320, 32>}, {pipeline_mode = #tpu.pipeline_mode<synchronous>, transform_indices = @transform_20, window_bounds = array<i64: 1, 32>}, {pipeline_mode = #tpu.pipeline_mode<synchronous>, transform_indices = @transform_21, window_bounds = array<i64: 32, 32>}, {pipeline_mode = #tpu.pipeline_mode<synchronous>, transform_indices = @transform_22, window_bounds = array<i64: 1, 32>}, {pipeline_mode = #tpu.pipeline_mode<synchronous>, transform_indices = @transform_23, window_bounds = array<i64: 32, 32>}, {pipeline_mode = #tpu.pipeline_mode<synchronous>, transform_indices = @transform_24, window_bounds = array<i64: 1, 32>}, {pipeline_mode = #tpu.pipeline_mode<synchronous>, transform_indices = @transform_25, window_bounds = array<i64: 32, 5>}, {pipeline_mode = #tpu.pipeline_mode<synchronous>, transform_indices = @transform_26, window_bounds = array<i64: 1, 5>}, {transform_indices = @transform_27, window_bounds = array<i64: 1, 1, 5>}]} {
    %c0 = arith.constant 0 : index
    %c0_0 = arith.constant 0 : index
    %c0_1 = arith.constant 0 : index
    %0 = vector.load %arg1[%c0, %c0_0, %c0_1] : memref<1x32x16xf32, #tpu.memory_space<vmem>>, vector<1x32x16xf32>
    %1 = vector.shape_cast %0 : vector<1x32x16xf32> to vector<32x16xf32>
    %c0_2 = arith.constant 0 : index
    %c0_3 = arith.constant 0 : index
    %2 = vector.load %arg5[%c0_2, %c0_3] : memref<32x96xbf16, #tpu.memory_space<vmem>>, vector<32x96xbf16>
    %c0_4 = arith.constant 0 : index
    %c0_5 = arith.constant 0 : index
    %3 = vector.load %arg9[%c0_4, %c0_5] : memref<32x32xbf16, #tpu.memory_space<vmem>>, vector<32x32xbf16>
    %c0_6 = arith.constant 0 : index
    %c0_7 = arith.constant 0 : index
    %4 = vector.load %arg4[%c0_6, %c0_7] : memref<16x96xbf16, #tpu.memory_space<vmem>>, vector<16x96xbf16>
    %5 = arith.truncf %1 : vector<32x16xf32> to vector<32x16xbf16>
    %cst = arith.constant dense<0.000000e+00> : vector<32x96xf32>
    %6 = tpu.matmul %5, %4, %cst {dimension_numbers = #tpu.dot_dimension_numbers<[1], [0], [0], [1], [0, 0, 1, 1], [], []>} : vector<32x16xbf16>, vector<16x96xbf16>, vector<32x96xf32> -> vector<32x96xf32>
    %c0_8 = arith.constant 0 : index
    %c0_9 = arith.constant 0 : index
    %7 = vector.load %arg6[%c0_8, %c0_9] : memref<1x96xf32, #tpu.memory_space<vmem>>, vector<1x96xf32>
    %8 = vector.broadcast %7 : vector<1x96xf32> to vector<32x96xf32>
    %9 = arith.addf %6, %8 : vector<32x96xf32>
    %c0_10 = arith.constant 0 : index
    %c0_11 = arith.constant 0 : index
    %10 = vector.load %arg8[%c0_10, %c0_11] : memref<16x32xbf16, #tpu.memory_space<vmem>>, vector<16x32xbf16>
    %11 = arith.truncf %1 : vector<32x16xf32> to vector<32x16xbf16>
    %cst_12 = arith.constant dense<0.000000e+00> : vector<32x32xf32>
    %12 = tpu.matmul %11, %10, %cst_12 {dimension_numbers = #tpu.dot_dimension_numbers<[1], [0], [0], [1], [0, 0, 1, 1], [], []>} : vector<32x16xbf16>, vector<16x32xbf16>, vector<32x32xf32> -> vector<32x32xf32>
    %c0_13 = arith.constant 0 : index
    %c0_14 = arith.constant 0 : index
    %13 = vector.load %arg10[%c0_13, %c0_14] : memref<1x32xf32, #tpu.memory_space<vmem>>, vector<1x32xf32>
    %14 = vector.broadcast %13 : vector<1x32xf32> to vector<32x32xf32>
    %15 = arith.addf %12, %14 : vector<32x32xf32>
    %c0_15 = arith.constant 0 : index
    %c0_16 = arith.constant 0 : index
    %16 = vector.load %arg7[%c0_15, %c0_16] : memref<1x96xf32, #tpu.memory_space<vmem>>, vector<1x96xf32>
    %17 = vector.shape_cast %16 : vector<1x96xf32> to vector<1x96xf32>
    %18 = vector.broadcast %17 : vector<1x96xf32> to vector<8x96xf32>
    %c0_17 = arith.constant 0 : index
    %c0_18 = arith.constant 0 : index
    %19 = vector.load %arg11[%c0_17, %c0_18] : memref<1x32xf32, #tpu.memory_space<vmem>>, vector<1x32xf32>
    %20 = vector.shape_cast %19 : vector<1x32xf32> to vector<1x32xf32>
    %21 = vector.broadcast %20 : vector<1x32xf32> to vector<8x32xf32>
    %cst_19 = arith.constant 0.000000e+00 : f32
    %22 = vector.broadcast %cst_19 : f32 to vector<8x32xf32>
    %cst_20 = arith.constant 0.000000e+00 : f32
    %23 = vector.broadcast %cst_20 : f32 to vector<8x32xf32>
    %24 = vector.extract_strided_slice %9 {offsets = [24, 0], sizes = [8, 96], strides = [1, 1]} : vector<32x96xf32> to vector<8x96xf32>
    %25 = arith.truncf %23 : vector<8x32xf32> to vector<8x32xbf16>
    %cst_21 = arith.constant dense<0.000000e+00> : vector<8x96xf32>
    %26 = tpu.matmul %25, %2, %cst_21 {dimension_numbers = #tpu.dot_dimension_numbers<[1], [0], [0], [1], [0, 0, 1, 1], [], []>} : vector<8x32xbf16>, vector<32x96xbf16>, vector<8x96xf32> -> vector<8x96xf32>
    %27 = arith.addf %24, %26 : vector<8x96xf32>
    %28 = arith.addf %27, %18 : vector<8x96xf32>
    %29 = vector.extract_strided_slice %28 {offsets = [0, 0], sizes = [8, 64], strides = [1, 1]} : vector<8x96xf32> to vector<8x64xf32>
    %30 = arith.negf %29 : vector<8x64xf32>
    %31 = math.exp %30 : vector<8x64xf32>
    %cst_22 = arith.constant 1.000000e+00 : f32
    %32 = vector.broadcast %cst_22 : f32 to vector<8x64xf32>
    %33 = arith.addf %32, %31 : vector<8x64xf32>
    %34 = arith.divf %32, %33 : vector<8x64xf32>
    %35 = vector.extract_strided_slice %34 {offsets = [0, 0], sizes = [8, 32], strides = [1, 1]} : vector<8x64xf32> to vector<8x32xf32>
    %36 = vector.extract_strided_slice %34 {offsets = [0, 32], sizes = [8, 32], strides = [1, 1]} : vector<8x64xf32> to vector<8x32xf32>
    %37 = vector.extract_strided_slice %28 {offsets = [0, 64], sizes = [8, 32], strides = [1, 1]} : vector<8x96xf32> to vector<8x32xf32>
    %38 = math.tanh %37 : vector<8x32xf32>
    %39 = vector.extract_strided_slice %15 {offsets = [24, 0], sizes = [8, 32], strides = [1, 1]} : vector<32x32xf32> to vector<8x32xf32>
    %40 = arith.truncf %23 : vector<8x32xf32> to vector<8x32xbf16>
    %cst_23 = arith.constant dense<0.000000e+00> : vector<8x32xf32>
    %41 = tpu.matmul %40, %3, %cst_23 {dimension_numbers = #tpu.dot_dimension_numbers<[1], [0], [0], [1], [0, 0, 1, 1], [], []>} : vector<8x32xbf16>, vector<32x32xbf16>, vector<8x32xf32> -> vector<8x32xf32>
    %42 = arith.addf %39, %41 : vector<8x32xf32>
    %43 = arith.addf %42, %21 : vector<8x32xf32>
    %44 = arith.negf %43 : vector<8x32xf32>
    %45 = math.exp %44 : vector<8x32xf32>
    %cst_24 = arith.constant 1.000000e+00 : f32
    %46 = vector.broadcast %cst_24 : f32 to vector<8x32xf32>
    %47 = arith.addf %46, %45 : vector<8x32xf32>
    %48 = arith.divf %46, %47 : vector<8x32xf32>
    %49 = arith.mulf %35, %38 : vector<8x32xf32>
    %50 = arith.mulf %48, %22 : vector<8x32xf32>
    %51 = arith.addf %49, %50 : vector<8x32xf32>
    %52 = math.tanh %51 : vector<8x32xf32>
    %53 = arith.mulf %36, %52 : vector<8x32xf32>
    %54 = vector.extract_strided_slice %9 {offsets = [16, 0], sizes = [8, 96], strides = [1, 1]} : vector<32x96xf32> to vector<8x96xf32>
    %55 = arith.truncf %53 : vector<8x32xf32> to vector<8x32xbf16>
    %cst_25 = arith.constant dense<0.000000e+00> : vector<8x96xf32>
    %56 = tpu.matmul %55, %2, %cst_25 {dimension_numbers = #tpu.dot_dimension_numbers<[1], [0], [0], [1], [0, 0, 1, 1], [], []>} : vector<8x32xbf16>, vector<32x96xbf16>, vector<8x96xf32> -> vector<8x96xf32>
    %57 = arith.addf %54, %56 : vector<8x96xf32>
    %58 = arith.addf %57, %18 : vector<8x96xf32>
    %59 = vector.extract_strided_slice %58 {offsets = [0, 0], sizes = [8, 64], strides = [1, 1]} : vector<8x96xf32> to vector<8x64xf32>
    %60 = arith.negf %59 : vector<8x64xf32>
    %61 = math.exp %60 : vector<8x64xf32>
    %cst_26 = arith.constant 1.000000e+00 : f32
    %62 = vector.broadcast %cst_26 : f32 to vector<8x64xf32>
    %63 = arith.addf %62, %61 : vector<8x64xf32>
    %64 = arith.divf %62, %63 : vector<8x64xf32>
    %65 = vector.extract_strided_slice %64 {offsets = [0, 0], sizes = [8, 32], strides = [1, 1]} : vector<8x64xf32> to vector<8x32xf32>
    %66 = vector.extract_strided_slice %64 {offsets = [0, 32], sizes = [8, 32], strides = [1, 1]} : vector<8x64xf32> to vector<8x32xf32>
    %67 = vector.extract_strided_slice %58 {offsets = [0, 64], sizes = [8, 32], strides = [1, 1]} : vector<8x96xf32> to vector<8x32xf32>
    %68 = math.tanh %67 : vector<8x32xf32>
    %69 = vector.extract_strided_slice %15 {offsets = [16, 0], sizes = [8, 32], strides = [1, 1]} : vector<32x32xf32> to vector<8x32xf32>
    %70 = arith.truncf %53 : vector<8x32xf32> to vector<8x32xbf16>
    %cst_27 = arith.constant dense<0.000000e+00> : vector<8x32xf32>
    %71 = tpu.matmul %70, %3, %cst_27 {dimension_numbers = #tpu.dot_dimension_numbers<[1], [0], [0], [1], [0, 0, 1, 1], [], []>} : vector<8x32xbf16>, vector<32x32xbf16>, vector<8x32xf32> -> vector<8x32xf32>
    %72 = arith.addf %69, %71 : vector<8x32xf32>
    %73 = arith.addf %72, %21 : vector<8x32xf32>
    %74 = arith.negf %73 : vector<8x32xf32>
    %75 = math.exp %74 : vector<8x32xf32>
    %cst_28 = arith.constant 1.000000e+00 : f32
    %76 = vector.broadcast %cst_28 : f32 to vector<8x32xf32>
    %77 = arith.addf %76, %75 : vector<8x32xf32>
    %78 = arith.divf %76, %77 : vector<8x32xf32>
    %79 = arith.mulf %65, %68 : vector<8x32xf32>
    %80 = arith.mulf %78, %51 : vector<8x32xf32>
    %81 = arith.addf %79, %80 : vector<8x32xf32>
    %82 = math.tanh %81 : vector<8x32xf32>
    %83 = arith.mulf %66, %82 : vector<8x32xf32>
    %84 = vector.extract_strided_slice %9 {offsets = [8, 0], sizes = [8, 96], strides = [1, 1]} : vector<32x96xf32> to vector<8x96xf32>
    %85 = arith.truncf %83 : vector<8x32xf32> to vector<8x32xbf16>
    %cst_29 = arith.constant dense<0.000000e+00> : vector<8x96xf32>
    %86 = tpu.matmul %85, %2, %cst_29 {dimension_numbers = #tpu.dot_dimension_numbers<[1], [0], [0], [1], [0, 0, 1, 1], [], []>} : vector<8x32xbf16>, vector<32x96xbf16>, vector<8x96xf32> -> vector<8x96xf32>
    %87 = arith.addf %84, %86 : vector<8x96xf32>
    %88 = arith.addf %87, %18 : vector<8x96xf32>
    %89 = vector.extract_strided_slice %88 {offsets = [0, 0], sizes = [8, 64], strides = [1, 1]} : vector<8x96xf32> to vector<8x64xf32>
    %90 = arith.negf %89 : vector<8x64xf32>
    %91 = math.exp %90 : vector<8x64xf32>
    %cst_30 = arith.constant 1.000000e+00 : f32
    %92 = vector.broadcast %cst_30 : f32 to vector<8x64xf32>
    %93 = arith.addf %92, %91 : vector<8x64xf32>
    %94 = arith.divf %92, %93 : vector<8x64xf32>
    %95 = vector.extract_strided_slice %94 {offsets = [0, 0], sizes = [8, 32], strides = [1, 1]} : vector<8x64xf32> to vector<8x32xf32>
    %96 = vector.extract_strided_slice %94 {offsets = [0, 32], sizes = [8, 32], strides = [1, 1]} : vector<8x64xf32> to vector<8x32xf32>
    %97 = vector.extract_strided_slice %88 {offsets = [0, 64], sizes = [8, 32], strides = [1, 1]} : vector<8x96xf32> to vector<8x32xf32>
    %98 = math.tanh %97 : vector<8x32xf32>
    %99 = vector.extract_strided_slice %15 {offsets = [8, 0], sizes = [8, 32], strides = [1, 1]} : vector<32x32xf32> to vector<8x32xf32>
    %100 = arith.truncf %83 : vector<8x32xf32> to vector<8x32xbf16>
    %cst_31 = arith.constant dense<0.000000e+00> : vector<8x32xf32>
    %101 = tpu.matmul %100, %3, %cst_31 {dimension_numbers = #tpu.dot_dimension_numbers<[1], [0], [0], [1], [0, 0, 1, 1], [], []>} : vector<8x32xbf16>, vector<32x32xbf16>, vector<8x32xf32> -> vector<8x32xf32>
    %102 = arith.addf %99, %101 : vector<8x32xf32>
    %103 = arith.addf %102, %21 : vector<8x32xf32>
    %104 = arith.negf %103 : vector<8x32xf32>
    %105 = math.exp %104 : vector<8x32xf32>
    %cst_32 = arith.constant 1.000000e+00 : f32
    %106 = vector.broadcast %cst_32 : f32 to vector<8x32xf32>
    %107 = arith.addf %106, %105 : vector<8x32xf32>
    %108 = arith.divf %106, %107 : vector<8x32xf32>
    %109 = arith.mulf %95, %98 : vector<8x32xf32>
    %110 = arith.mulf %108, %81 : vector<8x32xf32>
    %111 = arith.addf %109, %110 : vector<8x32xf32>
    %112 = math.tanh %111 : vector<8x32xf32>
    %113 = arith.mulf %96, %112 : vector<8x32xf32>
    %114 = vector.extract_strided_slice %9 {offsets = [0, 0], sizes = [8, 96], strides = [1, 1]} : vector<32x96xf32> to vector<8x96xf32>
    %115 = arith.truncf %113 : vector<8x32xf32> to vector<8x32xbf16>
    %cst_33 = arith.constant dense<0.000000e+00> : vector<8x96xf32>
    %116 = tpu.matmul %115, %2, %cst_33 {dimension_numbers = #tpu.dot_dimension_numbers<[1], [0], [0], [1], [0, 0, 1, 1], [], []>} : vector<8x32xbf16>, vector<32x96xbf16>, vector<8x96xf32> -> vector<8x96xf32>
    %117 = arith.addf %114, %116 : vector<8x96xf32>
    %118 = arith.addf %117, %18 : vector<8x96xf32>
    %119 = vector.extract_strided_slice %118 {offsets = [0, 0], sizes = [8, 64], strides = [1, 1]} : vector<8x96xf32> to vector<8x64xf32>
    %120 = arith.negf %119 : vector<8x64xf32>
    %121 = math.exp %120 : vector<8x64xf32>
    %cst_34 = arith.constant 1.000000e+00 : f32
    %122 = vector.broadcast %cst_34 : f32 to vector<8x64xf32>
    %123 = arith.addf %122, %121 : vector<8x64xf32>
    %124 = arith.divf %122, %123 : vector<8x64xf32>
    %125 = vector.extract_strided_slice %124 {offsets = [0, 0], sizes = [8, 32], strides = [1, 1]} : vector<8x64xf32> to vector<8x32xf32>
    %126 = vector.extract_strided_slice %124 {offsets = [0, 32], sizes = [8, 32], strides = [1, 1]} : vector<8x64xf32> to vector<8x32xf32>
    %127 = vector.extract_strided_slice %118 {offsets = [0, 64], sizes = [8, 32], strides = [1, 1]} : vector<8x96xf32> to vector<8x32xf32>
    %128 = math.tanh %127 : vector<8x32xf32>
    %129 = vector.extract_strided_slice %15 {offsets = [0, 0], sizes = [8, 32], strides = [1, 1]} : vector<32x32xf32> to vector<8x32xf32>
    %130 = arith.truncf %113 : vector<8x32xf32> to vector<8x32xbf16>
    %cst_35 = arith.constant dense<0.000000e+00> : vector<8x32xf32>
    %131 = tpu.matmul %130, %3, %cst_35 {dimension_numbers = #tpu.dot_dimension_numbers<[1], [0], [0], [1], [0, 0, 1, 1], [], []>} : vector<8x32xbf16>, vector<32x32xbf16>, vector<8x32xf32> -> vector<8x32xf32>
    %132 = arith.addf %129, %131 : vector<8x32xf32>
    %133 = arith.addf %132, %21 : vector<8x32xf32>
    %134 = arith.negf %133 : vector<8x32xf32>
    %135 = math.exp %134 : vector<8x32xf32>
    %cst_36 = arith.constant 1.000000e+00 : f32
    %136 = vector.broadcast %cst_36 : f32 to vector<8x32xf32>
    %137 = arith.addf %136, %135 : vector<8x32xf32>
    %138 = arith.divf %136, %137 : vector<8x32xf32>
    %139 = arith.mulf %125, %128 : vector<8x32xf32>
    %140 = arith.mulf %138, %111 : vector<8x32xf32>
    %141 = arith.addf %139, %140 : vector<8x32xf32>
    %142 = math.tanh %141 : vector<8x32xf32>
    %143 = arith.mulf %126, %142 : vector<8x32xf32>
    %c0_37 = arith.constant 0 : index
    %c0_38 = arith.constant 0 : index
    %c0_39 = arith.constant 0 : index
    %144 = vector.load %arg2[%c0_37, %c0_38, %c0_39] : memref<1x48x64xf32, #tpu.memory_space<vmem>>, vector<1x48x64xf32>
    %145 = vector.shape_cast %144 : vector<1x48x64xf32> to vector<48x64xf32>
    %c0_40 = arith.constant 0 : index
    %c0_41 = arith.constant 0 : index
    %146 = vector.load %arg12[%c0_40, %c0_41] : memref<64x384xbf16, #tpu.memory_space<vmem>>, vector<64x384xbf16>
    %147 = arith.truncf %145 : vector<48x64xf32> to vector<48x64xbf16>
    %cst_42 = arith.constant dense<0.000000e+00> : vector<48x384xf32>
    %148 = tpu.matmul %147, %146, %cst_42 {dimension_numbers = #tpu.dot_dimension_numbers<[1], [0], [0], [1], [0, 0, 1, 1], [], []>} : vector<48x64xbf16>, vector<64x384xbf16>, vector<48x384xf32> -> vector<48x384xf32>
    %c0_43 = arith.constant 0 : index
    %c0_44 = arith.constant 0 : index
    %149 = vector.load %arg14[%c0_43, %c0_44] : memref<1x384xf32, #tpu.memory_space<vmem>>, vector<1x384xf32>
    %150 = vector.broadcast %149 : vector<1x384xf32> to vector<48x384xf32>
    %151 = arith.addf %148, %150 : vector<48x384xf32>
    %c0_45 = arith.constant 0 : index
    %c0_46 = arith.constant 0 : index
    %152 = vector.load %arg13[%c0_45, %c0_46] : memref<128x384xbf16, #tpu.memory_space<vmem>>, vector<128x384xbf16>
    %c0_47 = arith.constant 0 : index
    %c0_48 = arith.constant 0 : index
    %153 = vector.load %arg15[%c0_47, %c0_48] : memref<1x384xf32, #tpu.memory_space<vmem>>, vector<1x384xf32>
    %154 = vector.shape_cast %153 : vector<1x384xf32> to vector<1x384xf32>
    %155 = vector.broadcast %154 : vector<1x384xf32> to vector<8x384xf32>
    %cst_49 = arith.constant 0.000000e+00 : f32
    %156 = vector.broadcast %cst_49 : f32 to vector<8x128xf32>
    %157 = vector.extract_strided_slice %151 {offsets = [0, 0], sizes = [8, 384], strides = [1, 1]} : vector<48x384xf32> to vector<8x384xf32>
    %158 = arith.truncf %156 : vector<8x128xf32> to vector<8x128xbf16>
    %cst_50 = arith.constant dense<0.000000e+00> : vector<8x384xf32>
    %159 = tpu.matmul %158, %152, %cst_50 {dimension_numbers = #tpu.dot_dimension_numbers<[1], [0], [0], [1], [0, 0, 1, 1], [], []>} : vector<8x128xbf16>, vector<128x384xbf16>, vector<8x384xf32> -> vector<8x384xf32>
    %160 = arith.addf %159, %155 : vector<8x384xf32>
    %161 = vector.extract_strided_slice %157 {offsets = [0, 0], sizes = [8, 256], strides = [1, 1]} : vector<8x384xf32> to vector<8x256xf32>
    %162 = vector.extract_strided_slice %160 {offsets = [0, 0], sizes = [8, 256], strides = [1, 1]} : vector<8x384xf32> to vector<8x256xf32>
    %163 = arith.addf %161, %162 : vector<8x256xf32>
    %164 = arith.negf %163 : vector<8x256xf32>
    %165 = math.exp %164 : vector<8x256xf32>
    %cst_51 = arith.constant 1.000000e+00 : f32
    %166 = vector.broadcast %cst_51 : f32 to vector<8x256xf32>
    %167 = arith.addf %166, %165 : vector<8x256xf32>
    %168 = arith.divf %166, %167 : vector<8x256xf32>
    %169 = vector.extract_strided_slice %168 {offsets = [0, 0], sizes = [8, 128], strides = [1, 1]} : vector<8x256xf32> to vector<8x128xf32>
    %170 = vector.extract_strided_slice %168 {offsets = [0, 128], sizes = [8, 128], strides = [1, 1]} : vector<8x256xf32> to vector<8x128xf32>
    %171 = vector.extract_strided_slice %157 {offsets = [0, 256], sizes = [8, 128], strides = [1, 1]} : vector<8x384xf32> to vector<8x128xf32>
    %172 = vector.extract_strided_slice %160 {offsets = [0, 256], sizes = [8, 128], strides = [1, 1]} : vector<8x384xf32> to vector<8x128xf32>
    %173 = arith.mulf %169, %172 : vector<8x128xf32>
    %174 = arith.addf %171, %173 : vector<8x128xf32>
    %175 = math.tanh %174 : vector<8x128xf32>
    %cst_52 = arith.constant 1.000000e+00 : f32
    %176 = vector.broadcast %cst_52 : f32 to vector<8x128xf32>
    %177 = arith.subf %176, %170 : vector<8x128xf32>
    %178 = arith.mulf %177, %175 : vector<8x128xf32>
    %179 = arith.mulf %170, %156 : vector<8x128xf32>
    %180 = arith.addf %178, %179 : vector<8x128xf32>
    %181 = vector.extract_strided_slice %151 {offsets = [8, 0], sizes = [8, 384], strides = [1, 1]} : vector<48x384xf32> to vector<8x384xf32>
    %182 = arith.truncf %180 : vector<8x128xf32> to vector<8x128xbf16>
    %cst_53 = arith.constant dense<0.000000e+00> : vector<8x384xf32>
    %183 = tpu.matmul %182, %152, %cst_53 {dimension_numbers = #tpu.dot_dimension_numbers<[1], [0], [0], [1], [0, 0, 1, 1], [], []>} : vector<8x128xbf16>, vector<128x384xbf16>, vector<8x384xf32> -> vector<8x384xf32>
    %184 = arith.addf %183, %155 : vector<8x384xf32>
    %185 = vector.extract_strided_slice %181 {offsets = [0, 0], sizes = [8, 256], strides = [1, 1]} : vector<8x384xf32> to vector<8x256xf32>
    %186 = vector.extract_strided_slice %184 {offsets = [0, 0], sizes = [8, 256], strides = [1, 1]} : vector<8x384xf32> to vector<8x256xf32>
    %187 = arith.addf %185, %186 : vector<8x256xf32>
    %188 = arith.negf %187 : vector<8x256xf32>
    %189 = math.exp %188 : vector<8x256xf32>
    %cst_54 = arith.constant 1.000000e+00 : f32
    %190 = vector.broadcast %cst_54 : f32 to vector<8x256xf32>
    %191 = arith.addf %190, %189 : vector<8x256xf32>
    %192 = arith.divf %190, %191 : vector<8x256xf32>
    %193 = vector.extract_strided_slice %192 {offsets = [0, 0], sizes = [8, 128], strides = [1, 1]} : vector<8x256xf32> to vector<8x128xf32>
    %194 = vector.extract_strided_slice %192 {offsets = [0, 128], sizes = [8, 128], strides = [1, 1]} : vector<8x256xf32> to vector<8x128xf32>
    %195 = vector.extract_strided_slice %181 {offsets = [0, 256], sizes = [8, 128], strides = [1, 1]} : vector<8x384xf32> to vector<8x128xf32>
    %196 = vector.extract_strided_slice %184 {offsets = [0, 256], sizes = [8, 128], strides = [1, 1]} : vector<8x384xf32> to vector<8x128xf32>
    %197 = arith.mulf %193, %196 : vector<8x128xf32>
    %198 = arith.addf %195, %197 : vector<8x128xf32>
    %199 = math.tanh %198 : vector<8x128xf32>
    %cst_55 = arith.constant 1.000000e+00 : f32
    %200 = vector.broadcast %cst_55 : f32 to vector<8x128xf32>
    %201 = arith.subf %200, %194 : vector<8x128xf32>
    %202 = arith.mulf %201, %199 : vector<8x128xf32>
    %203 = arith.mulf %194, %180 : vector<8x128xf32>
    %204 = arith.addf %202, %203 : vector<8x128xf32>
    %205 = vector.extract_strided_slice %151 {offsets = [16, 0], sizes = [8, 384], strides = [1, 1]} : vector<48x384xf32> to vector<8x384xf32>
    %206 = arith.truncf %204 : vector<8x128xf32> to vector<8x128xbf16>
    %cst_56 = arith.constant dense<0.000000e+00> : vector<8x384xf32>
    %207 = tpu.matmul %206, %152, %cst_56 {dimension_numbers = #tpu.dot_dimension_numbers<[1], [0], [0], [1], [0, 0, 1, 1], [], []>} : vector<8x128xbf16>, vector<128x384xbf16>, vector<8x384xf32> -> vector<8x384xf32>
    %208 = arith.addf %207, %155 : vector<8x384xf32>
    %209 = vector.extract_strided_slice %205 {offsets = [0, 0], sizes = [8, 256], strides = [1, 1]} : vector<8x384xf32> to vector<8x256xf32>
    %210 = vector.extract_strided_slice %208 {offsets = [0, 0], sizes = [8, 256], strides = [1, 1]} : vector<8x384xf32> to vector<8x256xf32>
    %211 = arith.addf %209, %210 : vector<8x256xf32>
    %212 = arith.negf %211 : vector<8x256xf32>
    %213 = math.exp %212 : vector<8x256xf32>
    %cst_57 = arith.constant 1.000000e+00 : f32
    %214 = vector.broadcast %cst_57 : f32 to vector<8x256xf32>
    %215 = arith.addf %214, %213 : vector<8x256xf32>
    %216 = arith.divf %214, %215 : vector<8x256xf32>
    %217 = vector.extract_strided_slice %216 {offsets = [0, 0], sizes = [8, 128], strides = [1, 1]} : vector<8x256xf32> to vector<8x128xf32>
    %218 = vector.extract_strided_slice %216 {offsets = [0, 128], sizes = [8, 128], strides = [1, 1]} : vector<8x256xf32> to vector<8x128xf32>
    %219 = vector.extract_strided_slice %205 {offsets = [0, 256], sizes = [8, 128], strides = [1, 1]} : vector<8x384xf32> to vector<8x128xf32>
    %220 = vector.extract_strided_slice %208 {offsets = [0, 256], sizes = [8, 128], strides = [1, 1]} : vector<8x384xf32> to vector<8x128xf32>
    %221 = arith.mulf %217, %220 : vector<8x128xf32>
    %222 = arith.addf %219, %221 : vector<8x128xf32>
    %223 = math.tanh %222 : vector<8x128xf32>
    %cst_58 = arith.constant 1.000000e+00 : f32
    %224 = vector.broadcast %cst_58 : f32 to vector<8x128xf32>
    %225 = arith.subf %224, %218 : vector<8x128xf32>
    %226 = arith.mulf %225, %223 : vector<8x128xf32>
    %227 = arith.mulf %218, %204 : vector<8x128xf32>
    %228 = arith.addf %226, %227 : vector<8x128xf32>
    %229 = vector.extract_strided_slice %151 {offsets = [24, 0], sizes = [8, 384], strides = [1, 1]} : vector<48x384xf32> to vector<8x384xf32>
    %230 = arith.truncf %228 : vector<8x128xf32> to vector<8x128xbf16>
    %cst_59 = arith.constant dense<0.000000e+00> : vector<8x384xf32>
    %231 = tpu.matmul %230, %152, %cst_59 {dimension_numbers = #tpu.dot_dimension_numbers<[1], [0], [0], [1], [0, 0, 1, 1], [], []>} : vector<8x128xbf16>, vector<128x384xbf16>, vector<8x384xf32> -> vector<8x384xf32>
    %232 = arith.addf %231, %155 : vector<8x384xf32>
    %233 = vector.extract_strided_slice %229 {offsets = [0, 0], sizes = [8, 256], strides = [1, 1]} : vector<8x384xf32> to vector<8x256xf32>
    %234 = vector.extract_strided_slice %232 {offsets = [0, 0], sizes = [8, 256], strides = [1, 1]} : vector<8x384xf32> to vector<8x256xf32>
    %235 = arith.addf %233, %234 : vector<8x256xf32>
    %236 = arith.negf %235 : vector<8x256xf32>
    %237 = math.exp %236 : vector<8x256xf32>
    %cst_60 = arith.constant 1.000000e+00 : f32
    %238 = vector.broadcast %cst_60 : f32 to vector<8x256xf32>
    %239 = arith.addf %238, %237 : vector<8x256xf32>
    %240 = arith.divf %238, %239 : vector<8x256xf32>
    %241 = vector.extract_strided_slice %240 {offsets = [0, 0], sizes = [8, 128], strides = [1, 1]} : vector<8x256xf32> to vector<8x128xf32>
    %242 = vector.extract_strided_slice %240 {offsets = [0, 128], sizes = [8, 128], strides = [1, 1]} : vector<8x256xf32> to vector<8x128xf32>
    %243 = vector.extract_strided_slice %229 {offsets = [0, 256], sizes = [8, 128], strides = [1, 1]} : vector<8x384xf32> to vector<8x128xf32>
    %244 = vector.extract_strided_slice %232 {offsets = [0, 256], sizes = [8, 128], strides = [1, 1]} : vector<8x384xf32> to vector<8x128xf32>
    %245 = arith.mulf %241, %244 : vector<8x128xf32>
    %246 = arith.addf %243, %245 : vector<8x128xf32>
    %247 = math.tanh %246 : vector<8x128xf32>
    %cst_61 = arith.constant 1.000000e+00 : f32
    %248 = vector.broadcast %cst_61 : f32 to vector<8x128xf32>
    %249 = arith.subf %248, %242 : vector<8x128xf32>
    %250 = arith.mulf %249, %247 : vector<8x128xf32>
    %251 = arith.mulf %242, %228 : vector<8x128xf32>
    %252 = arith.addf %250, %251 : vector<8x128xf32>
    %253 = vector.extract_strided_slice %151 {offsets = [32, 0], sizes = [8, 384], strides = [1, 1]} : vector<48x384xf32> to vector<8x384xf32>
    %254 = arith.truncf %252 : vector<8x128xf32> to vector<8x128xbf16>
    %cst_62 = arith.constant dense<0.000000e+00> : vector<8x384xf32>
    %255 = tpu.matmul %254, %152, %cst_62 {dimension_numbers = #tpu.dot_dimension_numbers<[1], [0], [0], [1], [0, 0, 1, 1], [], []>} : vector<8x128xbf16>, vector<128x384xbf16>, vector<8x384xf32> -> vector<8x384xf32>
    %256 = arith.addf %255, %155 : vector<8x384xf32>
    %257 = vector.extract_strided_slice %253 {offsets = [0, 0], sizes = [8, 256], strides = [1, 1]} : vector<8x384xf32> to vector<8x256xf32>
    %258 = vector.extract_strided_slice %256 {offsets = [0, 0], sizes = [8, 256], strides = [1, 1]} : vector<8x384xf32> to vector<8x256xf32>
    %259 = arith.addf %257, %258 : vector<8x256xf32>
    %260 = arith.negf %259 : vector<8x256xf32>
    %261 = math.exp %260 : vector<8x256xf32>
    %cst_63 = arith.constant 1.000000e+00 : f32
    %262 = vector.broadcast %cst_63 : f32 to vector<8x256xf32>
    %263 = arith.addf %262, %261 : vector<8x256xf32>
    %264 = arith.divf %262, %263 : vector<8x256xf32>
    %265 = vector.extract_strided_slice %264 {offsets = [0, 0], sizes = [8, 128], strides = [1, 1]} : vector<8x256xf32> to vector<8x128xf32>
    %266 = vector.extract_strided_slice %264 {offsets = [0, 128], sizes = [8, 128], strides = [1, 1]} : vector<8x256xf32> to vector<8x128xf32>
    %267 = vector.extract_strided_slice %253 {offsets = [0, 256], sizes = [8, 128], strides = [1, 1]} : vector<8x384xf32> to vector<8x128xf32>
    %268 = vector.extract_strided_slice %256 {offsets = [0, 256], sizes = [8, 128], strides = [1, 1]} : vector<8x384xf32> to vector<8x128xf32>
    %269 = arith.mulf %265, %268 : vector<8x128xf32>
    %270 = arith.addf %267, %269 : vector<8x128xf32>
    %271 = math.tanh %270 : vector<8x128xf32>
    %cst_64 = arith.constant 1.000000e+00 : f32
    %272 = vector.broadcast %cst_64 : f32 to vector<8x128xf32>
    %273 = arith.subf %272, %266 : vector<8x128xf32>
    %274 = arith.mulf %273, %271 : vector<8x128xf32>
    %275 = arith.mulf %266, %252 : vector<8x128xf32>
    %276 = arith.addf %274, %275 : vector<8x128xf32>
    %277 = vector.extract_strided_slice %151 {offsets = [40, 0], sizes = [8, 384], strides = [1, 1]} : vector<48x384xf32> to vector<8x384xf32>
    %278 = arith.truncf %276 : vector<8x128xf32> to vector<8x128xbf16>
    %cst_65 = arith.constant dense<0.000000e+00> : vector<8x384xf32>
    %279 = tpu.matmul %278, %152, %cst_65 {dimension_numbers = #tpu.dot_dimension_numbers<[1], [0], [0], [1], [0, 0, 1, 1], [], []>} : vector<8x128xbf16>, vector<128x384xbf16>, vector<8x384xf32> -> vector<8x384xf32>
    %280 = arith.addf %279, %155 : vector<8x384xf32>
    %281 = vector.extract_strided_slice %277 {offsets = [0, 0], sizes = [8, 256], strides = [1, 1]} : vector<8x384xf32> to vector<8x256xf32>
    %282 = vector.extract_strided_slice %280 {offsets = [0, 0], sizes = [8, 256], strides = [1, 1]} : vector<8x384xf32> to vector<8x256xf32>
    %283 = arith.addf %281, %282 : vector<8x256xf32>
    %284 = arith.negf %283 : vector<8x256xf32>
    %285 = math.exp %284 : vector<8x256xf32>
    %cst_66 = arith.constant 1.000000e+00 : f32
    %286 = vector.broadcast %cst_66 : f32 to vector<8x256xf32>
    %287 = arith.addf %286, %285 : vector<8x256xf32>
    %288 = arith.divf %286, %287 : vector<8x256xf32>
    %289 = vector.extract_strided_slice %288 {offsets = [0, 0], sizes = [8, 128], strides = [1, 1]} : vector<8x256xf32> to vector<8x128xf32>
    %290 = vector.extract_strided_slice %288 {offsets = [0, 128], sizes = [8, 128], strides = [1, 1]} : vector<8x256xf32> to vector<8x128xf32>
    %291 = vector.extract_strided_slice %277 {offsets = [0, 256], sizes = [8, 128], strides = [1, 1]} : vector<8x384xf32> to vector<8x128xf32>
    %292 = vector.extract_strided_slice %280 {offsets = [0, 256], sizes = [8, 128], strides = [1, 1]} : vector<8x384xf32> to vector<8x128xf32>
    %293 = arith.mulf %289, %292 : vector<8x128xf32>
    %294 = arith.addf %291, %293 : vector<8x128xf32>
    %295 = math.tanh %294 : vector<8x128xf32>
    %cst_67 = arith.constant 1.000000e+00 : f32
    %296 = vector.broadcast %cst_67 : f32 to vector<8x128xf32>
    %297 = arith.subf %296, %290 : vector<8x128xf32>
    %298 = arith.mulf %297, %295 : vector<8x128xf32>
    %299 = arith.mulf %290, %276 : vector<8x128xf32>
    %300 = arith.addf %298, %299 : vector<8x128xf32>
    %301 = vector.extract_strided_slice %300 {offsets = [0, 0], sizes = [8, 32], strides = [1, 1]} : vector<8x128xf32> to vector<8x32xf32>
    %302 = vector.extract_strided_slice %300 {offsets = [0, 32], sizes = [8, 32], strides = [1, 1]} : vector<8x128xf32> to vector<8x32xf32>
    %303 = vector.extract_strided_slice %300 {offsets = [0, 64], sizes = [8, 32], strides = [1, 1]} : vector<8x128xf32> to vector<8x32xf32>
    %304 = vector.extract_strided_slice %300 {offsets = [0, 96], sizes = [8, 32], strides = [1, 1]} : vector<8x128xf32> to vector<8x32xf32>
    %305 = tpu.concatenate %143, %301, %302, %303, %304 in 0 : vector<8x32xf32>, vector<8x32xf32>, vector<8x32xf32>, vector<8x32xf32>, vector<8x32xf32> -> vector<40x32xf32>
    %306 = tpu.concatenate %304, %303, %302, %301, %143 in 0 : vector<8x32xf32>, vector<8x32xf32>, vector<8x32xf32>, vector<8x32xf32>, vector<8x32xf32> -> vector<40x32xf32>
    %307 = tpu.concatenate %305, %306 in 1 : vector<40x32xf32>, vector<40x32xf32> -> vector<40x64xf32>
    %c0_68 = arith.constant 0 : index
    %c0_69 = arith.constant 0 : index
    %308 = vector.load %arg16[%c0_68, %c0_69] : memref<64x192xbf16, #tpu.memory_space<vmem>>, vector<64x192xbf16>
    %309 = arith.truncf %307 : vector<40x64xf32> to vector<40x64xbf16>
    %cst_70 = arith.constant dense<0.000000e+00> : vector<40x192xf32>
    %310 = tpu.matmul %309, %308, %cst_70 {dimension_numbers = #tpu.dot_dimension_numbers<[1], [0], [0], [1], [0, 0, 1, 1], [], []>} : vector<40x64xbf16>, vector<64x192xbf16>, vector<40x192xf32> -> vector<40x192xf32>
    %c0_71 = arith.constant 0 : index
    %c0_72 = arith.constant 0 : index
    %311 = vector.load %arg18[%c0_71, %c0_72] : memref<1x192xf32, #tpu.memory_space<vmem>>, vector<1x192xf32>
    %312 = vector.broadcast %311 : vector<1x192xf32> to vector<40x192xf32>
    %313 = arith.addf %310, %312 : vector<40x192xf32>
    %c0_73 = arith.constant 0 : index
    %c0_74 = arith.constant 0 : index
    %314 = vector.load %arg17[%c0_73, %c0_74] : memref<64x192xbf16, #tpu.memory_space<vmem>>, vector<64x192xbf16>
    %c0_75 = arith.constant 0 : index
    %c0_76 = arith.constant 0 : index
    %315 = vector.load %arg19[%c0_75, %c0_76] : memref<1x192xf32, #tpu.memory_space<vmem>>, vector<1x192xf32>
    %316 = vector.shape_cast %315 : vector<1x192xf32> to vector<1x192xf32>
    %317 = vector.broadcast %316 : vector<1x192xf32> to vector<8x192xf32>
    %cst_77 = arith.constant 0.000000e+00 : f32
    %318 = vector.broadcast %cst_77 : f32 to vector<8x64xf32>
    %319 = vector.extract_strided_slice %313 {offsets = [0, 0], sizes = [8, 192], strides = [1, 1]} : vector<40x192xf32> to vector<8x192xf32>
    %320 = arith.truncf %318 : vector<8x64xf32> to vector<8x64xbf16>
    %cst_78 = arith.constant dense<0.000000e+00> : vector<8x192xf32>
    %321 = tpu.matmul %320, %314, %cst_78 {dimension_numbers = #tpu.dot_dimension_numbers<[1], [0], [0], [1], [0, 0, 1, 1], [], []>} : vector<8x64xbf16>, vector<64x192xbf16>, vector<8x192xf32> -> vector<8x192xf32>
    %322 = arith.addf %321, %317 : vector<8x192xf32>
    %323 = vector.extract_strided_slice %319 {offsets = [0, 0], sizes = [8, 128], strides = [1, 1]} : vector<8x192xf32> to vector<8x128xf32>
    %324 = vector.extract_strided_slice %322 {offsets = [0, 0], sizes = [8, 128], strides = [1, 1]} : vector<8x192xf32> to vector<8x128xf32>
    %325 = arith.addf %323, %324 : vector<8x128xf32>
    %326 = arith.negf %325 : vector<8x128xf32>
    %327 = math.exp %326 : vector<8x128xf32>
    %cst_79 = arith.constant 1.000000e+00 : f32
    %328 = vector.broadcast %cst_79 : f32 to vector<8x128xf32>
    %329 = arith.addf %328, %327 : vector<8x128xf32>
    %330 = arith.divf %328, %329 : vector<8x128xf32>
    %331 = vector.extract_strided_slice %330 {offsets = [0, 0], sizes = [8, 64], strides = [1, 1]} : vector<8x128xf32> to vector<8x64xf32>
    %332 = vector.extract_strided_slice %330 {offsets = [0, 64], sizes = [8, 64], strides = [1, 1]} : vector<8x128xf32> to vector<8x64xf32>
    %333 = vector.extract_strided_slice %319 {offsets = [0, 128], sizes = [8, 64], strides = [1, 1]} : vector<8x192xf32> to vector<8x64xf32>
    %334 = vector.extract_strided_slice %322 {offsets = [0, 128], sizes = [8, 64], strides = [1, 1]} : vector<8x192xf32> to vector<8x64xf32>
    %335 = arith.mulf %331, %334 : vector<8x64xf32>
    %336 = arith.addf %333, %335 : vector<8x64xf32>
    %337 = math.tanh %336 : vector<8x64xf32>
    %cst_80 = arith.constant 1.000000e+00 : f32
    %338 = vector.broadcast %cst_80 : f32 to vector<8x64xf32>
    %339 = arith.subf %338, %332 : vector<8x64xf32>
    %340 = arith.mulf %339, %337 : vector<8x64xf32>
    %341 = arith.mulf %332, %318 : vector<8x64xf32>
    %342 = arith.addf %340, %341 : vector<8x64xf32>
    %343 = vector.extract_strided_slice %313 {offsets = [8, 0], sizes = [8, 192], strides = [1, 1]} : vector<40x192xf32> to vector<8x192xf32>
    %344 = arith.truncf %342 : vector<8x64xf32> to vector<8x64xbf16>
    %cst_81 = arith.constant dense<0.000000e+00> : vector<8x192xf32>
    %345 = tpu.matmul %344, %314, %cst_81 {dimension_numbers = #tpu.dot_dimension_numbers<[1], [0], [0], [1], [0, 0, 1, 1], [], []>} : vector<8x64xbf16>, vector<64x192xbf16>, vector<8x192xf32> -> vector<8x192xf32>
    %346 = arith.addf %345, %317 : vector<8x192xf32>
    %347 = vector.extract_strided_slice %343 {offsets = [0, 0], sizes = [8, 128], strides = [1, 1]} : vector<8x192xf32> to vector<8x128xf32>
    %348 = vector.extract_strided_slice %346 {offsets = [0, 0], sizes = [8, 128], strides = [1, 1]} : vector<8x192xf32> to vector<8x128xf32>
    %349 = arith.addf %347, %348 : vector<8x128xf32>
    %350 = arith.negf %349 : vector<8x128xf32>
    %351 = math.exp %350 : vector<8x128xf32>
    %cst_82 = arith.constant 1.000000e+00 : f32
    %352 = vector.broadcast %cst_82 : f32 to vector<8x128xf32>
    %353 = arith.addf %352, %351 : vector<8x128xf32>
    %354 = arith.divf %352, %353 : vector<8x128xf32>
    %355 = vector.extract_strided_slice %354 {offsets = [0, 0], sizes = [8, 64], strides = [1, 1]} : vector<8x128xf32> to vector<8x64xf32>
    %356 = vector.extract_strided_slice %354 {offsets = [0, 64], sizes = [8, 64], strides = [1, 1]} : vector<8x128xf32> to vector<8x64xf32>
    %357 = vector.extract_strided_slice %343 {offsets = [0, 128], sizes = [8, 64], strides = [1, 1]} : vector<8x192xf32> to vector<8x64xf32>
    %358 = vector.extract_strided_slice %346 {offsets = [0, 128], sizes = [8, 64], strides = [1, 1]} : vector<8x192xf32> to vector<8x64xf32>
    %359 = arith.mulf %355, %358 : vector<8x64xf32>
    %360 = arith.addf %357, %359 : vector<8x64xf32>
    %361 = math.tanh %360 : vector<8x64xf32>
    %cst_83 = arith.constant 1.000000e+00 : f32
    %362 = vector.broadcast %cst_83 : f32 to vector<8x64xf32>
    %363 = arith.subf %362, %356 : vector<8x64xf32>
    %364 = arith.mulf %363, %361 : vector<8x64xf32>
    %365 = arith.mulf %356, %342 : vector<8x64xf32>
    %366 = arith.addf %364, %365 : vector<8x64xf32>
    %367 = vector.extract_strided_slice %313 {offsets = [16, 0], sizes = [8, 192], strides = [1, 1]} : vector<40x192xf32> to vector<8x192xf32>
    %368 = arith.truncf %366 : vector<8x64xf32> to vector<8x64xbf16>
    %cst_84 = arith.constant dense<0.000000e+00> : vector<8x192xf32>
    %369 = tpu.matmul %368, %314, %cst_84 {dimension_numbers = #tpu.dot_dimension_numbers<[1], [0], [0], [1], [0, 0, 1, 1], [], []>} : vector<8x64xbf16>, vector<64x192xbf16>, vector<8x192xf32> -> vector<8x192xf32>
    %370 = arith.addf %369, %317 : vector<8x192xf32>
    %371 = vector.extract_strided_slice %367 {offsets = [0, 0], sizes = [8, 128], strides = [1, 1]} : vector<8x192xf32> to vector<8x128xf32>
    %372 = vector.extract_strided_slice %370 {offsets = [0, 0], sizes = [8, 128], strides = [1, 1]} : vector<8x192xf32> to vector<8x128xf32>
    %373 = arith.addf %371, %372 : vector<8x128xf32>
    %374 = arith.negf %373 : vector<8x128xf32>
    %375 = math.exp %374 : vector<8x128xf32>
    %cst_85 = arith.constant 1.000000e+00 : f32
    %376 = vector.broadcast %cst_85 : f32 to vector<8x128xf32>
    %377 = arith.addf %376, %375 : vector<8x128xf32>
    %378 = arith.divf %376, %377 : vector<8x128xf32>
    %379 = vector.extract_strided_slice %378 {offsets = [0, 0], sizes = [8, 64], strides = [1, 1]} : vector<8x128xf32> to vector<8x64xf32>
    %380 = vector.extract_strided_slice %378 {offsets = [0, 64], sizes = [8, 64], strides = [1, 1]} : vector<8x128xf32> to vector<8x64xf32>
    %381 = vector.extract_strided_slice %367 {offsets = [0, 128], sizes = [8, 64], strides = [1, 1]} : vector<8x192xf32> to vector<8x64xf32>
    %382 = vector.extract_strided_slice %370 {offsets = [0, 128], sizes = [8, 64], strides = [1, 1]} : vector<8x192xf32> to vector<8x64xf32>
    %383 = arith.mulf %379, %382 : vector<8x64xf32>
    %384 = arith.addf %381, %383 : vector<8x64xf32>
    %385 = math.tanh %384 : vector<8x64xf32>
    %cst_86 = arith.constant 1.000000e+00 : f32
    %386 = vector.broadcast %cst_86 : f32 to vector<8x64xf32>
    %387 = arith.subf %386, %380 : vector<8x64xf32>
    %388 = arith.mulf %387, %385 : vector<8x64xf32>
    %389 = arith.mulf %380, %366 : vector<8x64xf32>
    %390 = arith.addf %388, %389 : vector<8x64xf32>
    %391 = vector.extract_strided_slice %313 {offsets = [24, 0], sizes = [8, 192], strides = [1, 1]} : vector<40x192xf32> to vector<8x192xf32>
    %392 = arith.truncf %390 : vector<8x64xf32> to vector<8x64xbf16>
    %cst_87 = arith.constant dense<0.000000e+00> : vector<8x192xf32>
    %393 = tpu.matmul %392, %314, %cst_87 {dimension_numbers = #tpu.dot_dimension_numbers<[1], [0], [0], [1], [0, 0, 1, 1], [], []>} : vector<8x64xbf16>, vector<64x192xbf16>, vector<8x192xf32> -> vector<8x192xf32>
    %394 = arith.addf %393, %317 : vector<8x192xf32>
    %395 = vector.extract_strided_slice %391 {offsets = [0, 0], sizes = [8, 128], strides = [1, 1]} : vector<8x192xf32> to vector<8x128xf32>
    %396 = vector.extract_strided_slice %394 {offsets = [0, 0], sizes = [8, 128], strides = [1, 1]} : vector<8x192xf32> to vector<8x128xf32>
    %397 = arith.addf %395, %396 : vector<8x128xf32>
    %398 = arith.negf %397 : vector<8x128xf32>
    %399 = math.exp %398 : vector<8x128xf32>
    %cst_88 = arith.constant 1.000000e+00 : f32
    %400 = vector.broadcast %cst_88 : f32 to vector<8x128xf32>
    %401 = arith.addf %400, %399 : vector<8x128xf32>
    %402 = arith.divf %400, %401 : vector<8x128xf32>
    %403 = vector.extract_strided_slice %402 {offsets = [0, 0], sizes = [8, 64], strides = [1, 1]} : vector<8x128xf32> to vector<8x64xf32>
    %404 = vector.extract_strided_slice %402 {offsets = [0, 64], sizes = [8, 64], strides = [1, 1]} : vector<8x128xf32> to vector<8x64xf32>
    %405 = vector.extract_strided_slice %391 {offsets = [0, 128], sizes = [8, 64], strides = [1, 1]} : vector<8x192xf32> to vector<8x64xf32>
    %406 = vector.extract_strided_slice %394 {offsets = [0, 128], sizes = [8, 64], strides = [1, 1]} : vector<8x192xf32> to vector<8x64xf32>
    %407 = arith.mulf %403, %406 : vector<8x64xf32>
    %408 = arith.addf %405, %407 : vector<8x64xf32>
    %409 = math.tanh %408 : vector<8x64xf32>
    %cst_89 = arith.constant 1.000000e+00 : f32
    %410 = vector.broadcast %cst_89 : f32 to vector<8x64xf32>
    %411 = arith.subf %410, %404 : vector<8x64xf32>
    %412 = arith.mulf %411, %409 : vector<8x64xf32>
    %413 = arith.mulf %404, %390 : vector<8x64xf32>
    %414 = arith.addf %412, %413 : vector<8x64xf32>
    %415 = vector.extract_strided_slice %313 {offsets = [32, 0], sizes = [8, 192], strides = [1, 1]} : vector<40x192xf32> to vector<8x192xf32>
    %416 = arith.truncf %414 : vector<8x64xf32> to vector<8x64xbf16>
    %cst_90 = arith.constant dense<0.000000e+00> : vector<8x192xf32>
    %417 = tpu.matmul %416, %314, %cst_90 {dimension_numbers = #tpu.dot_dimension_numbers<[1], [0], [0], [1], [0, 0, 1, 1], [], []>} : vector<8x64xbf16>, vector<64x192xbf16>, vector<8x192xf32> -> vector<8x192xf32>
    %418 = arith.addf %417, %317 : vector<8x192xf32>
    %419 = vector.extract_strided_slice %415 {offsets = [0, 0], sizes = [8, 128], strides = [1, 1]} : vector<8x192xf32> to vector<8x128xf32>
    %420 = vector.extract_strided_slice %418 {offsets = [0, 0], sizes = [8, 128], strides = [1, 1]} : vector<8x192xf32> to vector<8x128xf32>
    %421 = arith.addf %419, %420 : vector<8x128xf32>
    %422 = arith.negf %421 : vector<8x128xf32>
    %423 = math.exp %422 : vector<8x128xf32>
    %cst_91 = arith.constant 1.000000e+00 : f32
    %424 = vector.broadcast %cst_91 : f32 to vector<8x128xf32>
    %425 = arith.addf %424, %423 : vector<8x128xf32>
    %426 = arith.divf %424, %425 : vector<8x128xf32>
    %427 = vector.extract_strided_slice %426 {offsets = [0, 0], sizes = [8, 64], strides = [1, 1]} : vector<8x128xf32> to vector<8x64xf32>
    %428 = vector.extract_strided_slice %426 {offsets = [0, 64], sizes = [8, 64], strides = [1, 1]} : vector<8x128xf32> to vector<8x64xf32>
    %429 = vector.extract_strided_slice %415 {offsets = [0, 128], sizes = [8, 64], strides = [1, 1]} : vector<8x192xf32> to vector<8x64xf32>
    %430 = vector.extract_strided_slice %418 {offsets = [0, 128], sizes = [8, 64], strides = [1, 1]} : vector<8x192xf32> to vector<8x64xf32>
    %431 = arith.mulf %427, %430 : vector<8x64xf32>
    %432 = arith.addf %429, %431 : vector<8x64xf32>
    %433 = math.tanh %432 : vector<8x64xf32>
    %cst_92 = arith.constant 1.000000e+00 : f32
    %434 = vector.broadcast %cst_92 : f32 to vector<8x64xf32>
    %435 = arith.subf %434, %428 : vector<8x64xf32>
    %436 = arith.mulf %435, %433 : vector<8x64xf32>
    %437 = arith.mulf %428, %414 : vector<8x64xf32>
    %438 = arith.addf %436, %437 : vector<8x64xf32>
    %439 = tpu.concatenate %342, %366, %390, %414, %438 in 1 : vector<8x64xf32>, vector<8x64xf32>, vector<8x64xf32>, vector<8x64xf32>, vector<8x64xf32> -> vector<8x320xf32>
    %c0_93 = arith.constant 0 : index
    %c0_94 = arith.constant 0 : index
    %440 = vector.load %arg20[%c0_93, %c0_94] : memref<320x32xbf16, #tpu.memory_space<vmem>>, vector<320x32xbf16>
    %441 = arith.truncf %439 : vector<8x320xf32> to vector<8x320xbf16>
    %cst_95 = arith.constant dense<0.000000e+00> : vector<8x32xf32>
    %442 = tpu.matmul %441, %440, %cst_95 {dimension_numbers = #tpu.dot_dimension_numbers<[1], [0], [0], [1], [0, 0, 1, 1], [], []>} : vector<8x320xbf16>, vector<320x32xbf16>, vector<8x32xf32> -> vector<8x32xf32>
    %c0_96 = arith.constant 0 : index
    %c0_97 = arith.constant 0 : index
    %443 = vector.load %arg21[%c0_96, %c0_97] : memref<1x32xf32, #tpu.memory_space<vmem>>, vector<1x32xf32>
    %444 = vector.broadcast %443 : vector<1x32xf32> to vector<8x32xf32>
    %445 = arith.addf %442, %444 : vector<8x32xf32>
    %c0_98 = arith.constant 0 : index
    %c0_99 = arith.constant 0 : index
    %c0_100 = arith.constant 0 : index
    %446 = vector.load %arg3[%c0_98, %c0_99, %c0_100] : memref<1x8x8xf32, #tpu.memory_space<vmem>>, vector<1x8x8xf32>
    %447 = vector.shape_cast %446 : vector<1x8x8xf32> to vector<8x8xf32>
    %c0_101 = arith.constant 0 : index
    %c0_102 = arith.constant 0 : index
    %448 = vector.load %arg22[%c0_101, %c0_102] : memref<32x32xbf16, #tpu.memory_space<vmem>>, vector<32x32xbf16>
    %c0_103 = arith.constant 0 : index
    %c0_104 = arith.constant 0 : index
    %449 = vector.load %arg23[%c0_103, %c0_104] : memref<1x32xf32, #tpu.memory_space<vmem>>, vector<1x32xf32>
    %450 = arith.truncf %445 : vector<8x32xf32> to vector<8x32xbf16>
    %cst_105 = arith.constant dense<0.000000e+00> : vector<8x32xf32>
    %451 = tpu.matmul %450, %448, %cst_105 {dimension_numbers = #tpu.dot_dimension_numbers<[1], [0], [0], [1], [0, 0, 1, 1], [], []>} : vector<8x32xbf16>, vector<32x32xbf16>, vector<8x32xf32> -> vector<8x32xf32>
    %cst_106 = arith.constant dense<0.000000e+00> : vector<8x32xf32>
    %452 = tpu.matmul %447, %451, %cst_106 {dimension_numbers = #tpu.dot_dimension_numbers<[1], [0], [0], [1], [0, 0, 1, 1], [], []>} : vector<8x8xf32>, vector<8x32xf32>, vector<8x32xf32> -> vector<8x32xf32>
    %453 = vector.broadcast %449 : vector<1x32xf32> to vector<8x32xf32>
    %454 = arith.addf %452, %453 : vector<8x32xf32>
    %cst_107 = arith.constant 0.000000e+00 : f32
    %455 = vector.broadcast %cst_107 : f32 to vector<8x32xf32>
    %456 = arith.maximumf %454, %455 : vector<8x32xf32>
    %c0_108 = arith.constant 0 : index
    %c0_109 = arith.constant 0 : index
    %457 = vector.load %arg24[%c0_108, %c0_109] : memref<32x32xbf16, #tpu.memory_space<vmem>>, vector<32x32xbf16>
    %c0_110 = arith.constant 0 : index
    %c0_111 = arith.constant 0 : index
    %458 = vector.load %arg25[%c0_110, %c0_111] : memref<1x32xf32, #tpu.memory_space<vmem>>, vector<1x32xf32>
    %459 = arith.truncf %456 : vector<8x32xf32> to vector<8x32xbf16>
    %cst_112 = arith.constant dense<0.000000e+00> : vector<8x32xf32>
    %460 = tpu.matmul %459, %457, %cst_112 {dimension_numbers = #tpu.dot_dimension_numbers<[1], [0], [0], [1], [0, 0, 1, 1], [], []>} : vector<8x32xbf16>, vector<32x32xbf16>, vector<8x32xf32> -> vector<8x32xf32>
    %cst_113 = arith.constant dense<0.000000e+00> : vector<8x32xf32>
    %461 = tpu.matmul %447, %460, %cst_113 {dimension_numbers = #tpu.dot_dimension_numbers<[1], [0], [0], [1], [0, 0, 1, 1], [], []>} : vector<8x8xf32>, vector<8x32xf32>, vector<8x32xf32> -> vector<8x32xf32>
    %462 = vector.broadcast %458 : vector<1x32xf32> to vector<8x32xf32>
    %463 = arith.addf %461, %462 : vector<8x32xf32>
    %cst_114 = arith.constant 0.000000e+00 : f32
    %464 = vector.broadcast %cst_114 : f32 to vector<8x32xf32>
    %465 = arith.maximumf %463, %464 : vector<8x32xf32>
    %c0_115 = arith.constant 0 : index
    %c0_116 = arith.constant 0 : index
    %466 = vector.load %arg26[%c0_115, %c0_116] : memref<32x5xbf16, #tpu.memory_space<vmem>>, vector<32x5xbf16>
    %c0_117 = arith.constant 0 : index
    %c0_118 = arith.constant 0 : index
    %467 = vector.load %arg27[%c0_117, %c0_118] : memref<1x5xf32, #tpu.memory_space<vmem>>, vector<1x5xf32>
    %468 = arith.truncf %465 : vector<8x32xf32> to vector<8x32xbf16>
    %cst_119 = arith.constant dense<0.000000e+00> : vector<8x5xf32>
    %469 = tpu.matmul %468, %466, %cst_119 {dimension_numbers = #tpu.dot_dimension_numbers<[1], [0], [0], [1], [0, 0, 1, 1], [], []>} : vector<8x32xbf16>, vector<32x5xbf16>, vector<8x5xf32> -> vector<8x5xf32>
    %cst_120 = arith.constant dense<0.000000e+00> : vector<8x5xf32>
    %470 = tpu.matmul %447, %469, %cst_120 {dimension_numbers = #tpu.dot_dimension_numbers<[1], [0], [0], [1], [0, 0, 1, 1], [], []>} : vector<8x8xf32>, vector<8x5xf32>, vector<8x5xf32> -> vector<8x5xf32>
    %471 = vector.broadcast %467 : vector<1x5xf32> to vector<8x5xf32>
    %472 = arith.addf %470, %471 : vector<8x5xf32>
    %cst_121 = arith.constant dense<0xFF800000> : vector<5xf32>
    %473 = vector.multi_reduction <maximumf>, %472, %cst_121 [0] : vector<8x5xf32> to vector<5xf32>
    %474 = vector.shape_cast %473 : vector<5xf32> to vector<1x5xf32>
    %cst_122 = arith.constant dense<0xFF800000> : vector<1xf32>
    %475 = vector.multi_reduction <maximumf>, %474, %cst_122 [1] : vector<1x5xf32> to vector<1xf32>
    %476 = vector.shape_cast %475 : vector<1xf32> to vector<1x1xf32>
    %477 = vector.broadcast %476 : vector<1x1xf32> to vector<1x5xf32>
    %478 = arith.subf %474, %477 : vector<1x5xf32>
    %479 = math.exp %478 : vector<1x5xf32>
    %cst_123 = arith.constant dense<0.000000e+00> : vector<1xf32>
    %480 = vector.multi_reduction <add>, %479, %cst_123 [1] : vector<1x5xf32> to vector<1xf32>
    %481 = vector.shape_cast %480 : vector<1xf32> to vector<1x1xf32>
    %482 = vector.broadcast %481 : vector<1x1xf32> to vector<1x5xf32>
    %483 = arith.divf %479, %482 : vector<1x5xf32>
    %c0_124 = arith.constant 0 : index
    %c0_125 = arith.constant 0 : index
    %c0_126 = arith.constant 0 : index
    %484 = vector.load %arg28[%c0_124, %c0_125, %c0_126] : memref<1x1x5xf32, #tpu.memory_space<vmem>>, vector<1x1x5xf32>
    %485 = vector.shape_cast %484 : vector<1x1x5xf32> to vector<1x5xf32>
    %486 = vector.shape_cast %483 : vector<1x5xf32> to vector<1x1x5xf32>
    tpu.vector_store %arg28[%c0_124, %c0_125, %c0_126], %486 {strides = array<i32>} : memref<1x1x5xf32, #tpu.memory_space<vmem>>, vector<1x1x5xf32>,
    return
  }
  func.func @transform_0(%arg0: i32) -> (i32, i32, i32) {
    %c0_i32 = arith.constant 0 : i32
    %c0_i32_0 = arith.constant 0 : i32
    %c0_i32_1 = arith.constant 0 : i32
    return %arg0, %c0_i32, %c0_i32_0 : i32, i32, i32
  }
  func.func @transform_1(%arg0: i32) -> (i32, i32, i32) {
    %c0_i32 = arith.constant 0 : i32
    %c0_i32_0 = arith.constant 0 : i32
    %c0_i32_1 = arith.constant 0 : i32
    return %arg0, %c0_i32, %c0_i32_0 : i32, i32, i32
  }
  func.func @transform_2(%arg0: i32) -> (i32, i32, i32) {
    %c0_i32 = arith.constant 0 : i32
    %c0_i32_0 = arith.constant 0 : i32
    %c0_i32_1 = arith.constant 0 : i32
    return %arg0, %c0_i32, %c0_i32_0 : i32, i32, i32
  }
  func.func @transform_3(%arg0: i32) -> (i32, i32) {
    %c0_i32 = arith.constant 0 : i32
    %c0_i32_0 = arith.constant 0 : i32
    %c0_i32_1 = arith.constant 0 : i32
    return %c0_i32, %c0_i32_0 : i32, i32
  }
  func.func @transform_4(%arg0: i32) -> (i32, i32) {
    %c0_i32 = arith.constant 0 : i32
    %c0_i32_0 = arith.constant 0 : i32
    %c0_i32_1 = arith.constant 0 : i32
    return %c0_i32, %c0_i32_0 : i32, i32
  }
  func.func @transform_5(%arg0: i32) -> (i32, i32) {
    %c0_i32 = arith.constant 0 : i32
    %c0_i32_0 = arith.constant 0 : i32
    %c0_i32_1 = arith.constant 0 : i32
    return %c0_i32, %c0_i32_0 : i32, i32
  }
  func.func @transform_6(%arg0: i32) -> (i32, i32) {
    %c0_i32 = arith.constant 0 : i32
    %c0_i32_0 = arith.constant 0 : i32
    %c0_i32_1 = arith.constant 0 : i32
    return %c0_i32, %c0_i32_0 : i32, i32
  }
  func.func @transform_7(%arg0: i32) -> (i32, i32) {
    %c0_i32 = arith.constant 0 : i32
    %c0_i32_0 = arith.constant 0 : i32
    %c0_i32_1 = arith.constant 0 : i32
    return %c0_i32, %c0_i32_0 : i32, i32
  }
  func.func @transform_8(%arg0: i32) -> (i32, i32) {
    %c0_i32 = arith.constant 0 : i32
    %c0_i32_0 = arith.constant 0 : i32
    %c0_i32_1 = arith.constant 0 : i32
    return %c0_i32, %c0_i32_0 : i32, i32
  }
  func.func @transform_9(%arg0: i32) -> (i32, i32) {
    %c0_i32 = arith.constant 0 : i32
    %c0_i32_0 = arith.constant 0 : i32
    %c0_i32_1 = arith.constant 0 : i32
    return %c0_i32, %c0_i32_0 : i32, i32
  }
  func.func @transform_10(%arg0: i32) -> (i32, i32) {
    %c0_i32 = arith.constant 0 : i32
    %c0_i32_0 = arith.constant 0 : i32
    %c0_i32_1 = arith.constant 0 : i32
    return %c0_i32, %c0_i32_0 : i32, i32
  }
  func.func @transform_11(%arg0: i32) -> (i32, i32) {
    %c0_i32 = arith.constant 0 : i32
    %c0_i32_0 = arith.constant 0 : i32
    %c0_i32_1 = arith.constant 0 : i32
    return %c0_i32, %c0_i32_0 : i32, i32
  }
  func.func @transform_12(%arg0: i32) -> (i32, i32) {
    %c0_i32 = arith.constant 0 : i32
    %c0_i32_0 = arith.constant 0 : i32
    %c0_i32_1 = arith.constant 0 : i32
    return %c0_i32, %c0_i32_0 : i32, i32
  }
  func.func @transform_13(%arg0: i32) -> (i32, i32) {
    %c0_i32 = arith.constant 0 : i32
    %c0_i32_0 = arith.constant 0 : i32
    %c0_i32_1 = arith.constant 0 : i32
    return %c0_i32, %c0_i32_0 : i32, i32
  }
  func.func @transform_14(%arg0: i32) -> (i32, i32) {
    %c0_i32 = arith.constant 0 : i32
    %c0_i32_0 = arith.constant 0 : i32
    %c0_i32_1 = arith.constant 0 : i32
    return %c0_i32, %c0_i32_0 : i32, i32
  }
  func.func @transform_15(%arg0: i32) -> (i32, i32) {
    %c0_i32 = arith.constant 0 : i32
    %c0_i32_0 = arith.constant 0 : i32
    %c0_i32_1 = arith.constant 0 : i32
    return %c0_i32, %c0_i32_0 : i32, i32
  }
  func.func @transform_16(%arg0: i32) -> (i32, i32) {
    %c0_i32 = arith.constant 0 : i32
    %c0_i32_0 = arith.constant 0 : i32
    %c0_i32_1 = arith.constant 0 : i32
    return %c0_i32, %c0_i32_0 : i32, i32
  }
  func.func @transform_17(%arg0: i32) -> (i32, i32) {
    %c0_i32 = arith.constant 0 : i32
    %c0_i32_0 = arith.constant 0 : i32
    %c0_i32_1 = arith.constant 0 : i32
    return %c0_i32, %c0_i32_0 : i32, i32
  }
  func.func @transform_18(%arg0: i32) -> (i32, i32) {
    %c0_i32 = arith.constant 0 : i32
    %c0_i32_0 = arith.constant 0 : i32
    %c0_i32_1 = arith.constant 0 : i32
    return %c0_i32, %c0_i32_0 : i32, i32
  }
  func.func @transform_19(%arg0: i32) -> (i32, i32) {
    %c0_i32 = arith.constant 0 : i32
    %c0_i32_0 = arith.constant 0 : i32
    %c0_i32_1 = arith.constant 0 : i32
    return %c0_i32, %c0_i32_0 : i32, i32
  }
  func.func @transform_20(%arg0: i32) -> (i32, i32) {
    %c0_i32 = arith.constant 0 : i32
    %c0_i32_0 = arith.constant 0 : i32
    %c0_i32_1 = arith.constant 0 : i32
    return %c0_i32, %c0_i32_0 : i32, i32
  }
  func.func @transform_21(%arg0: i32) -> (i32, i32) {
    %c0_i32 = arith.constant 0 : i32
    %c0_i32_0 = arith.constant 0 : i32
    %c0_i32_1 = arith.constant 0 : i32
    return %c0_i32, %c0_i32_0 : i32, i32
  }
  func.func @transform_22(%arg0: i32) -> (i32, i32) {
    %c0_i32 = arith.constant 0 : i32
    %c0_i32_0 = arith.constant 0 : i32
    %c0_i32_1 = arith.constant 0 : i32
    return %c0_i32, %c0_i32_0 : i32, i32
  }
  func.func @transform_23(%arg0: i32) -> (i32, i32) {
    %c0_i32 = arith.constant 0 : i32
    %c0_i32_0 = arith.constant 0 : i32
    %c0_i32_1 = arith.constant 0 : i32
    return %c0_i32, %c0_i32_0 : i32, i32
  }
  func.func @transform_24(%arg0: i32) -> (i32, i32) {
    %c0_i32 = arith.constant 0 : i32
    %c0_i32_0 = arith.constant 0 : i32
    %c0_i32_1 = arith.constant 0 : i32
    return %c0_i32, %c0_i32_0 : i32, i32
  }
  func.func @transform_25(%arg0: i32) -> (i32, i32) {
    %c0_i32 = arith.constant 0 : i32
    %c0_i32_0 = arith.constant 0 : i32
    %c0_i32_1 = arith.constant 0 : i32
    return %c0_i32, %c0_i32_0 : i32, i32
  }
  func.func @transform_26(%arg0: i32) -> (i32, i32) {
    %c0_i32 = arith.constant 0 : i32
    %c0_i32_0 = arith.constant 0 : i32
    %c0_i32_1 = arith.constant 0 : i32
    return %c0_i32, %c0_i32_0 : i32, i32
  }
  func.func @transform_27(%arg0: i32) -> (i32, i32, i32) {
    %c0_i32 = arith.constant 0 : i32
    %c0_i32_0 = arith.constant 0 : i32
    %c0_i32_1 = arith.constant 0 : i32
    return %arg0, %c0_i32, %c0_i32_0 : i32, i32, i32
  }
}

</mosaic_0001>

<llo_original>
// kernel: vulnerability_forward.1
$region0: #{vulnerability_forward.1}
  #allocation0 [shape = 'u32[]', space=smem, size = 0x4, offset = 0x4, fixed_abs, tag = 'smem constant byte address 0x4 - core index']
  #allocation1 [shape = 'u32[72,128]{1,0:T(1,128)}', space=vmem, size = 0x9000, scoped, tag = 'internal scratch']
  %s0 = inlined_call_operand.vmem [shape: f32[2,32,16], index: 0, kind: input, shape index: {}]
  %s1 = inlined_call_operand.vmem [shape: f32[2,48,64], index: 1, kind: input, shape index: {}]
  %s2 = inlined_call_operand.vmem [shape: f32[2,8,8], index: 2, kind: input, shape index: {}]
  %s3 = inlined_call_operand.vmem [shape: bf16[16,96], index: 3, kind: input, shape index: {}]
  %s4 = inlined_call_operand.vmem [shape: bf16[32,96], index: 4, kind: input, shape index: {}]
  %s5 = inlined_call_operand.vmem [shape: f32[1,96], index: 5, kind: input, shape index: {}]
  %s6 = inlined_call_operand.vmem [shape: f32[1,96], index: 6, kind: input, shape index: {}]
  %s7 = inlined_call_operand.vmem [shape: bf16[16,32], index: 7, kind: input, shape index: {}]
  %s8 = inlined_call_operand.vmem [shape: bf16[32,32], index: 8, kind: input, shape index: {}]
  %s9 = inlined_call_operand.vmem [shape: f32[1,32], index: 9, kind: input, shape index: {}]
  %s10 = inlined_call_operand.vmem [shape: f32[1,32], index: 10, kind: input, shape index: {}]
  %s11 = inlined_call_operand.vmem [shape: bf16[64,384], index: 11, kind: input, shape index: {}]
  %s12 = inlined_call_operand.vmem [shape: bf16[128,384], index: 12, kind: input, shape index: {}]
  %s13 = inlined_call_operand.vmem [shape: f32[1,384], index: 13, kind: input, shape index: {}]
  %s14 = inlined_call_operand.vmem [shape: f32[1,384], index: 14, kind: input, shape index: {}]
  %s15 = inlined_call_operand.vmem [shape: bf16[64,192], index: 15, kind: input, shape index: {}]
  %s16 = inlined_call_operand.vmem [shape: bf16[64,192], index: 16, kind: input, shape index: {}]
  %s17 = inlined_call_operand.vmem [shape: f32[1,192], index: 17, kind: input, shape index: {}]
  %s18 = inlined_call_operand.vmem [shape: f32[1,192], index: 18, kind: input, shape index: {}]
  %s19 = inlined_call_operand.vmem [shape: bf16[320,32], index: 19, kind: input, shape index: {}]
  %s20 = inlined_call_operand.vmem [shape: f32[1,32], index: 20, kind: input, shape index: {}]
  %s21 = inlined_call_operand.vmem [shape: bf16[32,32], index: 21, kind: input, shape index: {}]
  %s22 = inlined_call_operand.vmem [shape: f32[1,32], index: 22, kind: input, shape index: {}]
  %s23 = inlined_call_operand.vmem [shape: bf16[32,32], index: 23, kind: input, shape index: {}]
  %s24 = inlined_call_operand.vmem [shape: f32[1,32], index: 24, kind: input, shape index: {}]
  %s25 = inlined_call_operand.vmem [shape: bf16[32,5], index: 25, kind: input, shape index: {}]
  %s26 = inlined_call_operand.vmem [shape: f32[1,5], index: 26, kind: input, shape index: {}]
  %s27 = inlined_call_operand.hbm [shape: f32[2,1,5], index: 27, kind: output, shape index: {}]
  %s28 = sld [smem:[#allocation0]]
  $region141: #{vulnerability_forward.1} parent=0
    _
  %s30 = ssub.s32 1, %s28
  %s31 = scalar_select 0, %s30, %s28
  $region1: #{vulnerability_forward.1} parent=0
    #allocation2 [shape = 'u8[1024]{0}', space=vmem, size = 0x400, scoped, tag = 'output window, operand 0']
    #allocation3 [shape = 's32[2]{0}', space=sflag, size = 0x8, scoped, tag = 'scoped memory for vulnerability_forward.1']
    %32 = vsyncpa [#allocation3], 0
    %s33 = scalar_lea.sflag [#allocation3], 1
    %34 = vsyncpa %s33, 0
    loop: start=0, step=1, limit=4
    $region2: #{vulnerability_forward.1} parent=1 // loop_pre_header
      _
    $region3: #{vulnerability_forward.1} parent=1 // loop_header
      %s36 = sphi 0, %s40
      %p37 = scmp.ge.s32.totalorder %s36, 4
      %s46 = sphi 0, %s48
      %s49 = sphi 0, %s46
      %s50 = sphi 0, %s49
      %s66 = sphi 0, %s50
      %s72 = sphi 0, %s74
      %s75 = sphi 0, %s72
      %s76 = sphi 0, %s75
      %s92 = sphi 0, %s76
      %s98 = sphi 0, %s100
      %s101 = sphi 0, %s98
      %s102 = sphi 0, %s101
      %s118 = sphi 0, %s102
      %s122 = sphi 0, %s122
      %s124 = sphi 0, %s122
      %s125 = sphi 0, %s124
      %s139 = sphi 0, %s125
      %s143 = sphi 0, %s143
      %s145 = sphi 0, %s143
      %s146 = sphi 0, %s145
      %s160 = sphi 0, %s146
      %s164 = sphi 0, %s164
      %s166 = sphi 0, %s164
      %s167 = sphi 0, %s166
      %s181 = sphi 0, %s167
      %s185 = sphi 0, %s185
      %s187 = sphi 0, %s185
      %s188 = sphi 0, %s187
      %s202 = sphi 0, %s188
      %s206 = sphi 0, %s206
      %s208 = sphi 0, %s206
      %s209 = sphi 0, %s208
      %s223 = sphi 0, %s209
      %s227 = sphi 0, %s227
      %s229 = sphi 0, %s227
      %s230 = sphi 0, %s229
      %s244 = sphi 0, %s230
      %s248 = sphi 0, %s248
      %s250 = sphi 0, %s248
      %s251 = sphi 0, %s250
      %s265 = sphi 0, %s251
      %s269 = sphi 0, %s269
      %s271 = sphi 0, %s269
      %s272 = sphi 0, %s271
      %s286 = sphi 0, %s272
      %s290 = sphi 0, %s290
      %s292 = sphi 0, %s290
      %s293 = sphi 0, %s292
      %s307 = sphi 0, %s293
      %s311 = sphi 0, %s311
      %s313 = sphi 0, %s311
      %s314 = sphi 0, %s313
      %s328 = sphi 0, %s314
      %s332 = sphi 0, %s332
      %s334 = sphi 0, %s332
      %s335 = sphi 0, %s334
      %s349 = sphi 0, %s335
      %s353 = sphi 0, %s353
      %s355 = sphi 0, %s353
      %s356 = sphi 0, %s355
      %s370 = sphi 0, %s356
      %s374 = sphi 0, %s374
      %s376 = sphi 0, %s374
      %s377 = sphi 0, %s376
      %s391 = sphi 0, %s377
      %s395 = sphi 0, %s395
      %s397 = sphi 0, %s395
      %s398 = sphi 0, %s397
      %s412 = sphi 0, %s398
      %s416 = sphi 0, %s416
      %s418 = sphi 0, %s416
      %s419 = sphi 0, %s418
      %s433 = sphi 0, %s419
      %s437 = sphi 0, %s437
      %s439 = sphi 0, %s437
      %s440 = sphi 0, %s439
      %s454 = sphi 0, %s440
      %s458 = sphi 0, %s458
      %s460 = sphi 0, %s458
      %s461 = sphi 0, %s460
      %s475 = sphi 0, %s461
      %s479 = sphi 0, %s479
      %s481 = sphi 0, %s479
      %s482 = sphi 0, %s481
      %s496 = sphi 0, %s482
      %s500 = sphi 0, %s500
      %s502 = sphi 0, %s500
      %s503 = sphi 0, %s502
      %s517 = sphi 0, %s503
      %s521 = sphi 0, %s521
      %s523 = sphi 0, %s521
      %s524 = sphi 0, %s523
      %s538 = sphi 0, %s524
      %s542 = sphi 0, %s542
      %s544 = sphi 0, %s542
      %s545 = sphi 0, %s544
      %s559 = sphi 0, %s545
      %s563 = sphi 0, %s563
      %s565 = sphi 0, %s563
      %s566 = sphi 0, %s565
      %s580 = sphi 0, %s566
      %s584 = sphi 0, %s584
      %s586 = sphi 0, %s584
      %s587 = sphi 0, %s586
      %s601 = sphi 0, %s587
      %s605 = sphi 0, %s605
      %s607 = sphi 0, %s605
      %s608 = sphi 0, %s607
      %s622 = sphi 0, %s608
      %s628 = sphi 0, %s630
      %s631 = sphi 0, %s628
      %s632 = sphi 0, %s631
      %s648 = sphi 0, %s632
    $region4: #{vulnerability_forward.1} parent=1 // loop_header_branch
      %39 = sbr.rel (%p37) target = $region8
    $region5: #{vulnerability_forward.1} parent=1 // loop_body
      %s41 = ssub.s32 %s36, 1
      %s42 = ssub.s32 %s36, 2
      %s43 = sadd.s32 %s36, 1
      %s44 = ssub.s32 %s36, %s43
      %p45 = scmp.eq.s32.totalorder %s44, 0
      %s47 = sadd.s32 %s46, 1
      %s48 = scalar_select %p45, %s46, %s47
      %p51 = pneg %p45
      %p52 = scmp.eq.s32.totalorder %s36, 1
      %p53 = por %p51, %p52
      %p54 = scmp.ne.s32.totalorder %s46, %s49
      %p55 = scmp.eq.s32.totalorder %s36, 0
      %p56 = por %p54, %p55
      %p57 = scmp.ne.s32.totalorder %s46, %s49
      %p58 = scmp.eq.s32.totalorder %s41, 1
      %p59 = por %p57, %p58
      %p60 = scmp.ne.s32.totalorder %s49, %s50
      %p61 = scmp.eq.s32.totalorder %s41, 0
      %p62 = por %p60, %p61
      %p63 = scmp.ne.s32.totalorder %s49, %s50
      %p64 = scmp.eq.s32.totalorder %s42, 1
      %p65 = por %p63, %p64
      %p67 = scmp.ne.s32.totalorder %s50, %s66
      %p68 = scmp.eq.s32.totalorder %s42, 0
      %p69 = por %p67, %p68
      %s70 = ssub.s32 %s36, %s43
      %p71 = scmp.eq.s32.totalorder %s70, 0
      %s73 = sadd.s32 %s72, 1
      %s74 = scalar_select %p71, %s72, %s73
      %p77 = pneg %p71
      %p78 = scmp.eq.s32.totalorder %s36, 1
      %p79 = por %p77, %p78
      %p80 = scmp.ne.s32.totalorder %s72, %s75
      %p81 = scmp.eq.s32.totalorder %s36, 0
      %p82 = por %p80, %p81
      %p83 = scmp.ne.s32.totalorder %s72, %s75
      %p84 = scmp.eq.s32.totalorder %s41, 1
      %p85 = por %p83, %p84
      %p86 = scmp.ne.s32.totalorder %s75, %s76
      %p87 = scmp.eq.s32.totalorder %s41, 0
      %p88 = por %p86, %p87
      %p89 = scmp.ne.s32.totalorder %s75, %s76
      %p90 = scmp.eq.s32.totalorder %s42, 1
      %p91 = por %p89, %p90
      %p93 = scmp.ne.s32.totalorder %s76, %s92
      %p94 = scmp.eq.s32.totalorder %s42, 0
      %p95 = por %p93, %p94
      %s96 = ssub.s32 %s36, %s43
      %p97 = scmp.eq.s32.totalorder %s96, 0
      %s99 = sadd.s32 %s98, 1
      %s100 = scalar_select %p97, %s98, %s99
      %p103 = pneg %p97
      %p104 = scmp.eq.s32.totalorder %s36, 1
      %p105 = por %p103, %p104
      %p106 = scmp.ne.s32.totalorder %s98, %s101
      %p107 = scmp.eq.s32.totalorder %s36, 0
      %p108 = por %p106, %p107
      %p109 = scmp.ne.s32.totalorder %s98, %s101
      %p110 = scmp.eq.s32.totalorder %s41, 1
      %p111 = por %p109, %p110
      %p112 = scmp.ne.s32.totalorder %s101, %s102
      %p113 = scmp.eq.s32.totalorder %s41, 0
      %p114 = por %p112, %p113
      %p115 = scmp.ne.s32.totalorder %s101, %s102
      %p116 = scmp.eq.s32.totalorder %s42, 1
      %p117 = por %p115, %p116
      %p119 = scmp.ne.s32.totalorder %s102, %s118
      %p120 = scmp.eq.s32.totalorder %s42, 0
      %p121 = por %p119, %p120
      %s123 = sadd.s32 %s122, 1
      %p126 = scmp.eq.s32.totalorder %s36, 1
      %p127 = scmp.ne.s32.totalorder %s122, %s124
      %p128 = scmp.eq.s32.totalorder %s36, 0
      %p129 = por %p127, %p128
      %p130 = scmp.ne.s32.totalorder %s122, %s124
      %p131 = scmp.eq.s32.totalorder %s41, 1
      %p132 = por %p130, %p131
      %p133 = scmp.ne.s32.totalorder %s124, %s125
      %p134 = scmp.eq.s32.totalorder %s41, 0
      %p135 = por %p133, %p134
      %p136 = scmp.ne.s32.totalorder %s124, %s125
      %p137 = scmp.eq.s32.totalorder %s42, 1
      %p138 = por %p136, %p137
      %p140 = scmp.ne.s32.totalorder %s125, %s139
      %p141 = scmp.eq.s32.totalorder %s42, 0
      %p142 = por %p140, %p141
      %s144 = sadd.s32 %s143, 1
      %p147 = scmp.eq.s32.totalorder %s36, 1
      %p148 = scmp.ne.s32.totalorder %s143, %s145
      %p149 = scmp.eq.s32.totalorder %s36, 0
      %p150 = por %p148, %p149
      %p151 = scmp.ne.s32.totalorder %s143, %s145
      %p152 = scmp.eq.s32.totalorder %s41, 1
      %p153 = por %p151, %p152
      %p154 = scmp.ne.s32.totalorder %s145, %s146
      %p155 = scmp.eq.s32.totalorder %s41, 0
      %p156 = por %p154, %p155
      %p157 = scmp.ne.s32.totalorder %s145, %s146
      %p158 = scmp.eq.s32.totalorder %s42, 1
      %p159 = por %p157, %p158
      %p161 = scmp.ne.s32.totalorder %s146, %s160
      %p162 = scmp.eq.s32.totalorder %s42, 0
      %p163 = por %p161, %p162
      %s165 = sadd.s32 %s164, 1
      %p168 = scmp.eq.s32.totalorder %s36, 1
      %p169 = scmp.ne.s32.totalorder %s164, %s166
      %p170 = scmp.eq.s32.totalorder %s36, 0
      %p171 = por %p169, %p170
      %p172 = scmp.ne.s32.totalorder %s164, %s166
      %p173 = scmp.eq.s32.totalorder %s41, 1
      %p174 = por %p172, %p173
      %p175 = scmp.ne.s32.totalorder %s166, %s167
      %p176 = scmp.eq.s32.totalorder %s41, 0
      %p177 = por %p175, %p176
      %p178 = scmp.ne.s32.totalorder %s166, %s167
      %p179 = scmp.eq.s32.totalorder %s42, 1
      %p180 = por %p178, %p179
      %p182 = scmp.ne.s32.totalorder %s167, %s181
      %p183 = scmp.eq.s32.totalorder %s42, 0
      %p184 = por %p182, %p183
      %s186 = sadd.s32 %s185, 1
      %p189 = scmp.eq.s32.totalorder %s36, 1
      %p190 = scmp.ne.s32.totalorder %s185, %s187
      %p191 = scmp.eq.s32.totalorder %s36, 0
      %p192 = por %p190, %p191
      %p193 = scmp.ne.s32.totalorder %s185, %s187
      %p194 = scmp.eq.s32.totalorder %s41, 1
      %p195 = por %p193, %p194
      %p196 = scmp.ne.s32.totalorder %s187, %s188
      %p197 = scmp.eq.s32.totalorder %s41, 0
      %p198 = por %p196, %p197
      %p199 = scmp.ne.s32.totalorder %s187, %s188
      %p200 = scmp.eq.s32.totalorder %s42, 1
      %p201 = por %p199, %p200
      %p203 = scmp.ne.s32.totalorder %s188, %s202
      %p204 = scmp.eq.s32.totalorder %s42, 0
      %p205 = por %p203, %p204
      %s207 = sadd.s32 %s206, 1
      %p210 = scmp.eq.s32.totalorder %s36, 1
      %p211 = scmp.ne.s32.totalorder %s206, %s208
      %p212 = scmp.eq.s32.totalorder %s36, 0
      %p213 = por %p211, %p212
      %p214 = scmp.ne.s32.totalorder %s206, %s208
      %p215 = scmp.eq.s32.totalorder %s41, 1
      %p216 = por %p214, %p215
      %p217 = scmp.ne.s32.totalorder %s208, %s209
      %p218 = scmp.eq.s32.totalorder %s41, 0
      %p219 = por %p217, %p218
      %p220 = scmp.ne.s32.totalorder %s208, %s209
      %p221 = scmp.eq.s32.totalorder %s42, 1
      %p222 = por %p220, %p221
      %p224 = scmp.ne.s32.totalorder %s209, %s223
      %p225 = scmp.eq.s32.totalorder %s42, 0
      %p226 = por %p224, %p225
      %s228 = sadd.s32 %s227, 1
      %p231 = scmp.eq.s32.totalorder %s36, 1
      %p232 = scmp.ne.s32.totalorder %s227, %s229
      %p233 = scmp.eq.s32.totalorder %s36, 0
      %p234 = por %p232, %p233
      %p235 = scmp.ne.s32.totalorder %s227, %s229
      %p236 = scmp.eq.s32.totalorder %s41, 1
      %p237 = por %p235, %p236
      %p238 = scmp.ne.s32.totalorder %s229, %s230
      %p239 = scmp.eq.s32.totalorder %s41, 0
      %p240 = por %p238, %p239
      %p241 = scmp.ne.s32.totalorder %s229, %s230
      %p242 = scmp.eq.s32.totalorder %s42, 1
      %p243 = por %p241, %p242
      %p245 = scmp.ne.s32.totalorder %s230, %s244
      %p246 = scmp.eq.s32.totalorder %s42, 0
      %p247 = por %p245, %p246
      %s249 = sadd.s32 %s248, 1
      %p252 = scmp.eq.s32.totalorder %s36, 1
      %p253 = scmp.ne.s32.totalorder %s248, %s250
      %p254 = scmp.eq.s32.totalorder %s36, 0
      %p255 = por %p253, %p254
      %p256 = scmp.ne.s32.totalorder %s248, %s250
      %p257 = scmp.eq.s32.totalorder %s41, 1
      %p258 = por %p256, %p257
      %p259 = scmp.ne.s32.totalorder %s250, %s251
      %p260 = scmp.eq.s32.totalorder %s41, 0
      %p261 = por %p259, %p260
      %p262 = scmp.ne.s32.totalorder %s250, %s251
      %p263 = scmp.eq.s32.totalorder %s42, 1
      %p264 = por %p262, %p263
      %p266 = scmp.ne.s32.totalorder %s251, %s265
      %p267 = scmp.eq.s32.totalorder %s42, 0
      %p268 = por %p266, %p267
      %s270 = sadd.s32 %s269, 1
      %p273 = scmp.eq.s32.totalorder %s36, 1
      %p274 = scmp.ne.s32.totalorder %s269, %s271
      %p275 = scmp.eq.s32.totalorder %s36, 0
      %p276 = por %p274, %p275
      %p277 = scmp.ne.s32.totalorder %s269, %s271
      %p278 = scmp.eq.s32.totalorder %s41, 1
      %p279 = por %p277, %p278
      %p280 = scmp.ne.s32.totalorder %s271, %s272
      %p281 = scmp.eq.s32.totalorder %s41, 0
      %p282 = por %p280, %p281
      %p283 = scmp.ne.s32.totalorder %s271, %s272
      %p284 = scmp.eq.s32.totalorder %s42, 1
      %p285 = por %p283, %p284
      %p287 = scmp.ne.s32.totalorder %s272, %s286
      %p288 = scmp.eq.s32.totalorder %s42, 0
      %p289 = por %p287, %p288
      %s291 = sadd.s32 %s290, 1
      %p294 = scmp.eq.s32.totalorder %s36, 1
      %p295 = scmp.ne.s32.totalorder %s290, %s292
      %p296 = scmp.eq.s32.totalorder %s36, 0
      %p297 = por %p295, %p296
      %p298 = scmp.ne.s32.totalorder %s290, %s292
      %p299 = scmp.eq.s32.totalorder %s41, 1
      %p300 = por %p298, %p299
      %p301 = scmp.ne.s32.totalorder %s292, %s293
      %p302 = scmp.eq.s32.totalorder %s41, 0
      %p303 = por %p301, %p302
      %p304 = scmp.ne.s32.totalorder %s292, %s293
      %p305 = scmp.eq.s32.totalorder %s42, 1
      %p306 = por %p304, %p305
      %p308 = scmp.ne.s32.totalorder %s293, %s307
      %p309 = scmp.eq.s32.totalorder %s42, 0
      %p310 = por %p308, %p309
      %s312 = sadd.s32 %s311, 1
      %p315 = scmp.eq.s32.totalorder %s36, 1
      %p316 = scmp.ne.s32.totalorder %s311, %s313
      %p317 = scmp.eq.s32.totalorder %s36, 0
      %p318 = por %p316, %p317
      %p319 = scmp.ne.s32.totalorder %s311, %s313
      %p320 = scmp.eq.s32.totalorder %s41, 1
      %p321 = por %p319, %p320
      %p322 = scmp.ne.s32.totalorder %s313, %s314
      %p323 = scmp.eq.s32.totalorder %s41, 0
      %p324 = por %p322, %p323
      %p325 = scmp.ne.s32.totalorder %s313, %s314
      %p326 = scmp.eq.s32.totalorder %s42, 1
      %p327 = por %p325, %p326
      %p329 = scmp.ne.s32.totalorder %s314, %s328
      %p330 = scmp.eq.s32.totalorder %s42, 0
      %p331 = por %p329, %p330
      %s333 = sadd.s32 %s332, 1
      %p336 = scmp.eq.s32.totalorder %s36, 1
      %p337 = scmp.ne.s32.totalorder %s332, %s334
      %p338 = scmp.eq.s32.totalorder %s36, 0
      %p339 = por %p337, %p338
      %p340 = scmp.ne.s32.totalorder %s332, %s334
      %p341 = scmp.eq.s32.totalorder %s41, 1
      %p342 = por %p340, %p341
      %p343 = scmp.ne.s32.totalorder %s334, %s335
      %p344 = scmp.eq.s32.totalorder %s41, 0
      %p345 = por %p343, %p344
      %p346 = scmp.ne.s32.totalorder %s334, %s335
      %p347 = scmp.eq.s32.totalorder %s42, 1
      %p348 = por %p346, %p347
      %p350 = scmp.ne.s32.totalorder %s335, %s349
      %p351 = scmp.eq.s32.totalorder %s42, 0
      %p352 = por %p350, %p351
      %s354 = sadd.s32 %s353, 1
      %p357 = scmp.eq.s32.totalorder %s36, 1
      %p358 = scmp.ne.s32.totalorder %s353, %s355
      %p359 = scmp.eq.s32.totalorder %s36, 0
      %p360 = por %p358, %p359
      %p361 = scmp.ne.s32.totalorder %s353, %s355
      %p362 = scmp.eq.s32.totalorder %s41, 1
      %p363 = por %p361, %p362
      %p364 = scmp.ne.s32.totalorder %s355, %s356
      %p365 = scmp.eq.s32.totalorder %s41, 0
      %p366 = por %p364, %p365
      %p367 = scmp.ne.s32.totalorder %s355, %s356
      %p368 = scmp.eq.s32.totalorder %s42, 1
      %p369 = por %p367, %p368
      %p371 = scmp.ne.s32.totalorder %s356, %s370
      %p372 = scmp.eq.s32.totalorder %s42, 0
      %p373 = por %p371, %p372
      %s375 = sadd.s32 %s374, 1
      %p378 = scmp.eq.s32.totalorder %s36, 1
      %p379 = scmp.ne.s32.totalorder %s374, %s376
      %p380 = scmp.eq.s32.totalorder %s36, 0
      %p381 = por %p379, %p380
      %p382 = scmp.ne.s32.totalorder %s374, %s376
      %p383 = scmp.eq.s32.totalorder %s41, 1
      %p384 = por %p382, %p383
      %p385 = scmp.ne.s32.totalorder %s376, %s377
      %p386 = scmp.eq.s32.totalorder %s41, 0
      %p387 = por %p385, %p386
      %p388 = scmp.ne.s32.totalorder %s376, %s377
      %p389 = scmp.eq.s32.totalorder %s42, 1
      %p390 = por %p388, %p389
      %p392 = scmp.ne.s32.totalorder %s377, %s391
      %p393 = scmp.eq.s32.totalorder %s42, 0
      %p394 = por %p392, %p393
      %s396 = sadd.s32 %s395, 1
      %p399 = scmp.eq.s32.totalorder %s36, 1
      %p400 = scmp.ne.s32.totalorder %s395, %s397
      %p401 = scmp.eq.s32.totalorder %s36, 0
      %p402 = por %p400, %p401
      %p403 = scmp.ne.s32.totalorder %s395, %s397
      %p404 = scmp.eq.s32.totalorder %s41, 1
      %p405 = por %p403, %p404
      %p406 = scmp.ne.s32.totalorder %s397, %s398
      %p407 = scmp.eq.s32.totalorder %s41, 0
      %p408 = por %p406, %p407
      %p409 = scmp.ne.s32.totalorder %s397, %s398
      %p410 = scmp.eq.s32.totalorder %s42, 1
      %p411 = por %p409, %p410
      %p413 = scmp.ne.s32.totalorder %s398, %s412
      %p414 = scmp.eq.s32.totalorder %s42, 0
      %p415 = por %p413, %p414
      %s417 = sadd.s32 %s416, 1
      %p420 = scmp.eq.s32.totalorder %s36, 1
      %p421 = scmp.ne.s32.totalorder %s416, %s418
      %p422 = scmp.eq.s32.totalorder %s36, 0
      %p423 = por %p421, %p422
      %p424 = scmp.ne.s32.totalorder %s416, %s418
      %p425 = scmp.eq.s32.totalorder %s41, 1
      %p426 = por %p424, %p425
      %p427 = scmp.ne.s32.totalorder %s418, %s419
      %p428 = scmp.eq.s32.totalorder %s41, 0
      %p429 = por %p427, %p428
      %p430 = scmp.ne.s32.totalorder %s418, %s419
      %p431 = scmp.eq.s32.totalorder %s42, 1
      %p432 = por %p430, %p431
      %p434 = scmp.ne.s32.totalorder %s419, %s433
      %p435 = scmp.eq.s32.totalorder %s42, 0
      %p436 = por %p434, %p435
      %s438 = sadd.s32 %s437, 1
      %p441 = scmp.eq.s32.totalorder %s36, 1
      %p442 = scmp.ne.s32.totalorder %s437, %s439
      %p443 = scmp.eq.s32.totalorder %s36, 0
      %p444 = por %p442, %p443
      %p445 = scmp.ne.s32.totalorder %s437, %s439
      %p446 = scmp.eq.s32.totalorder %s41, 1
      %p447 = por %p445, %p446
      %p448 = scmp.ne.s32.totalorder %s439, %s440
      %p449 = scmp.eq.s32.totalorder %s41, 0
      %p450 = por %p448, %p449
      %p451 = scmp.ne.s32.totalorder %s439, %s440
      %p452 = scmp.eq.s32.totalorder %s42, 1
      %p453 = por %p451, %p452
      %p455 = scmp.ne.s32.totalorder %s440, %s454
      %p456 = scmp.eq.s32.totalorder %s42, 0
      %p457 = por %p455, %p456
      %s459 = sadd.s32 %s458, 1
      %p462 = scmp.eq.s32.totalorder %s36, 1
      %p463 = scmp.ne.s32.totalorder %s458, %s460
      %p464 = scmp.eq.s32.totalorder %s36, 0
      %p465 = por %p463, %p464
      %p466 = scmp.ne.s32.totalorder %s458, %s460
      %p467 = scmp.eq.s32.totalorder %s41, 1
      %p468 = por %p466, %p467
      %p469 = scmp.ne.s32.totalorder %s460, %s461
      %p470 = scmp.eq.s32.totalorder %s41, 0
      %p471 = por %p469, %p470
      %p472 = scmp.ne.s32.totalorder %s460, %s461
      %p473 = scmp.eq.s32.totalorder %s42, 1
      %p474 = por %p472, %p473
      %p476 = scmp.ne.s32.totalorder %s461, %s475
      %p477 = scmp.eq.s32.totalorder %s42, 0
      %p478 = por %p476, %p477
      %s480 = sadd.s32 %s479, 1
      %p483 = scmp.eq.s32.totalorder %s36, 1
      %p484 = scmp.ne.s32.totalorder %s479, %s481
      %p485 = scmp.eq.s32.totalorder %s36, 0
      %p486 = por %p484, %p485
      %p487 = scmp.ne.s32.totalorder %s479, %s481
      %p488 = scmp.eq.s32.totalorder %s41, 1
      %p489 = por %p487, %p488
      %p490 = scmp.ne.s32.totalorder %s481, %s482
      %p491 = scmp.eq.s32.totalorder %s41, 0
      %p492 = por %p490, %p491
      %p493 = scmp.ne.s32.totalorder %s481, %s482
      %p494 = scmp.eq.s32.totalorder %s42, 1
      %p495 = por %p493, %p494
      %p497 = scmp.ne.s32.totalorder %s482, %s496
      %p498 = scmp.eq.s32.totalorder %s42, 0
      %p499 = por %p497, %p498
      %s501 = sadd.s32 %s500, 1
      %p504 = scmp.eq.s32.totalorder %s36, 1
      %p505 = scmp.ne.s32.totalorder %s500, %s502
      %p506 = scmp.eq.s32.totalorder %s36, 0
      %p507 = por %p505, %p506
      %p508 = scmp.ne.s32.totalorder %s500, %s502
      %p509 = scmp.eq.s32.totalorder %s41, 1
      %p510 = por %p508, %p509
      %p511 = scmp.ne.s32.totalorder %s502, %s503
      %p512 = scmp.eq.s32.totalorder %s41, 0
      %p513 = por %p511, %p512
      %p514 = scmp.ne.s32.totalorder %s502, %s503
      %p515 = scmp.eq.s32.totalorder %s42, 1
      %p516 = por %p514, %p515
      %p518 = scmp.ne.s32.totalorder %s503, %s517
      %p519 = scmp.eq.s32.totalorder %s42, 0
      %p520 = por %p518, %p519
      %s522 = sadd.s32 %s521, 1
      %p525 = scmp.eq.s32.totalorder %s36, 1
      %p526 = scmp.ne.s32.totalorder %s521, %s523
      %p527 = scmp.eq.s32.totalorder %s36, 0
      %p528 = por %p526, %p527
      %p529 = scmp.ne.s32.totalorder %s521, %s523
      %p530 = scmp.eq.s32.totalorder %s41, 1
      %p531 = por %p529, %p530
      %p532 = scmp.ne.s32.totalorder %s523, %s524
      %p533 = scmp.eq.s32.totalorder %s41, 0
      %p534 = por %p532, %p533
      %p535 = scmp.ne.s32.totalorder %s523, %s524
      %p536 = scmp.eq.s32.totalorder %s42, 1
      %p537 = por %p535, %p536
      %p539 = scmp.ne.s32.totalorder %s524, %s538
      %p540 = scmp.eq.s32.totalorder %s42, 0
      %p541 = por %p539, %p540
      %s543 = sadd.s32 %s542, 1
      %p546 = scmp.eq.s32.totalorder %s36, 1
      %p547 = scmp.ne.s32.totalorder %s542, %s544
      %p548 = scmp.eq.s32.totalorder %s36, 0
      %p549 = por %p547, %p548
      %p550 = scmp.ne.s32.totalorder %s542, %s544
      %p551 = scmp.eq.s32.totalorder %s41, 1
      %p552 = por %p550, %p551
      %p553 = scmp.ne.s32.totalorder %s544, %s545
      %p554 = scmp.eq.s32.totalorder %s41, 0
      %p555 = por %p553, %p554
      %p556 = scmp.ne.s32.totalorder %s544, %s545
      %p557 = scmp.eq.s32.totalorder %s42, 1
      %p558 = por %p556, %p557
      %p560 = scmp.ne.s32.totalorder %s545, %s559
      %p561 = scmp.eq.s32.totalorder %s42, 0
      %p562 = por %p560, %p561
      %s564 = sadd.s32 %s563, 1
      %p567 = scmp.eq.s32.totalorder %s36, 1
      %p568 = scmp.ne.s32.totalorder %s563, %s565
      %p569 = scmp.eq.s32.totalorder %s36, 0
      %p570 = por %p568, %p569
      %p571 = scmp.ne.s32.totalorder %s563, %s565
      %p572 = scmp.eq.s32.totalorder %s41, 1
      %p573 = por %p571, %p572
      %p574 = scmp.ne.s32.totalorder %s565, %s566
      %p575 = scmp.eq.s32.totalorder %s41, 0
      %p576 = por %p574, %p575
      %p577 = scmp.ne.s32.totalorder %s565, %s566
      %p578 = scmp.eq.s32.totalorder %s42, 1
      %p579 = por %p577, %p578
      %p581 = scmp.ne.s32.totalorder %s566, %s580
      %p582 = scmp.eq.s32.totalorder %s42, 0
      %p583 = por %p581, %p582
      %s585 = sadd.s32 %s584, 1
      %p588 = scmp.eq.s32.totalorder %s36, 1
      %p589 = scmp.ne.s32.totalorder %s584, %s586
      %p590 = scmp.eq.s32.totalorder %s36, 0
      %p591 = por %p589, %p590
      %p592 = scmp.ne.s32.totalorder %s584, %s586
      %p593 = scmp.eq.s32.totalorder %s41, 1
      %p594 = por %p592, %p593
      %p595 = scmp.ne.s32.totalorder %s586, %s587
      %p596 = scmp.eq.s32.totalorder %s41, 0
      %p597 = por %p595, %p596
      %p598 = scmp.ne.s32.totalorder %s586, %s587
      %p599 = scmp.eq.s32.totalorder %s42, 1
      %p600 = por %p598, %p599
      %p602 = scmp.ne.s32.totalorder %s587, %s601
      %p603 = scmp.eq.s32.totalorder %s42, 0
      %p604 = por %p602, %p603
      %s606 = sadd.s32 %s605, 1
      %p609 = scmp.eq.s32.totalorder %s36, 1
      %p610 = scmp.ne.s32.totalorder %s605, %s607
      %p611 = scmp.eq.s32.totalorder %s36, 0
      %p612 = por %p610, %p611
      %p613 = scmp.ne.s32.totalorder %s605, %s607
      %p614 = scmp.eq.s32.totalorder %s41, 1
      %p615 = por %p613, %p614
      %p616 = scmp.ne.s32.totalorder %s607, %s608
      %p617 = scmp.eq.s32.totalorder %s41, 0
      %p618 = por %p616, %p617
      %p619 = scmp.ne.s32.totalorder %s607, %s608
      %p620 = scmp.eq.s32.totalorder %s42, 1
      %p621 = por %p619, %p620
      %p623 = scmp.ne.s32.totalorder %s608, %s622
      %p624 = scmp.eq.s32.totalorder %s42, 0
      %p625 = por %p623, %p624
      %s626 = ssub.s32 %s36, %s43
      %p627 = scmp.eq.s32.totalorder %s626, 0
      %s629 = sadd.s32 %s628, 1
      %s630 = scalar_select %p627, %s628, %s629
      %p633 = pneg %p627
      %p634 = scmp.eq.s32.totalorder %s36, 1
      %p635 = por %p633, %p634
      %p636 = scmp.ne.s32.totalorder %s628, %s631
      %p637 = scmp.eq.s32.totalorder %s36, 0
      %p638 = por %p636, %p637
      %p639 = scmp.ne.s32.totalorder %s628, %s631
      %p640 = scmp.eq.s32.totalorder %s41, 1
      %p641 = por %p639, %p640
      %p642 = scmp.ne.s32.totalorder %s631, %s632
      %p643 = scmp.eq.s32.totalorder %s41, 0
      %p644 = por %p642, %p643
      %p645 = scmp.ne.s32.totalorder %s631, %s632
      %p646 = scmp.eq.s32.totalorder %s42, 1
      %p647 = por %p645, %p646
      %p649 = scmp.ne.s32.totalorder %s632, %s648
      %p650 = scmp.eq.s32.totalorder %s42, 0
      %p651 = por %p649, %p650
      %p652 = scmp.le.s32.totalorder 1, %s36
      %p653 = scmp.lt.s32.totalorder %s36, 3
      %p654 = pnand %p652, %p653
      %p655 = pneg %p654
      // Predicated region
      $region9: #{vulnerability_forward.1} parent=5 // pred_check
        _
      $region10: #{vulnerability_forward.1} parent=5 // pred_check_branch
        %657 = sbr.rel (%p654) target = $region12
      $region11: #{vulnerability_forward.1} parent=5 // pred_region
        %s658 = ssub.s32 %s36, 1
        // Predicated region
        $region13: #{vulnerability_forward.1} parent=11 // pred_check
          %p659 = pneg %p135
        $region14: #{vulnerability_forward.1} parent=11 // pred_check_branch
          %661 = sbr.rel (%p659) target = $region16
        $region15: #{vulnerability_forward.1} parent=11 // pred_region
          _
        $region16: #{vulnerability_forward.1} parent=11 // pred_fallthru
          _
        // Predicated region
        $region17: #{vulnerability_forward.1} parent=11 // pred_check
          %p662 = pneg %p156
        $region18: #{vulnerability_forward.1} parent=11 // pred_check_branch
          %664 = sbr.rel (%p662) target = $region20
        $region19: #{vulnerability_forward.1} parent=11 // pred_region
          _
        $region20: #{vulnerability_forward.1} parent=11 // pred_fallthru
          _
        // Predicated region
        $region21: #{vulnerability_forward.1} parent=11 // pred_check
          %p665 = pneg %p177
        $region22: #{vulnerability_forward.1} parent=11 // pred_check_branch
          %667 = sbr.rel (%p665) target = $region24
        $region23: #{vulnerability_forward.1} parent=11 // pred_region
          _
        $region24: #{vulnerability_forward.1} parent=11 // pred_fallthru
          _
        // Predicated region
        $region25: #{vulnerability_forward.1} parent=11 // pred_check
          %p668 = pneg %p198
        $region26: #{vulnerability_forward.1} parent=11 // pred_check_branch
          %670 = sbr.rel (%p668) target = $region28
        $region27: #{vulnerability_forward.1} parent=11 // pred_region
          _
        $region28: #{vulnerability_forward.1} parent=11 // pred_fallthru
          _
        // Predicated region
        $region29: #{vulnerability_forward.1} parent=11 // pred_check
          %p671 = pneg %p219
        $region30: #{vulnerability_forward.1} parent=11 // pred_check_branch
          %673 = sbr.rel (%p671) target = $region32
        $region31: #{vulnerability_forward.1} parent=11 // pred_region
          _
        $region32: #{vulnerability_forward.1} parent=11 // pred_fallthru
          _
        // Predicated region
        $region33: #{vulnerability_forward.1} parent=11 // pred_check
          %p674 = pneg %p240
        $region34: #{vulnerability_forward.1} parent=11 // pred_check_branch
          %676 = sbr.rel (%p674) target = $region36
        $region35: #{vulnerability_forward.1} parent=11 // pred_region
          _
        $region36: #{vulnerability_forward.1} parent=11 // pred_fallthru
          _
        // Predicated region
        $region37: #{vulnerability_forward.1} parent=11 // pred_check
          %p677 = pneg %p261
        $region38: #{vulnerability_forward.1} parent=11 // pred_check_branch
          %679 = sbr.rel (%p677) target = $region40
        $region39: #{vulnerability_forward.1} parent=11 // pred_region
          _
        $region40: #{vulnerability_forward.1} parent=11 // pred_fallthru
          _
        // Predicated region
        $region41: #{vulnerability_forward.1} parent=11 // pred_check
          %p680 = pneg %p282
        $region42: #{vulnerability_forward.1} parent=11 // pred_check_branch
          %682 = sbr.rel (%p680) target = $region44
        $region43: #{vulnerability_forward.1} parent=11 // pred_region
          _
        $region44: #{vulnerability_forward.1} parent=11 // pred_fallthru
          _
        // Predicated region
        $region45: #{vulnerability_forward.1} parent=11 // pred_check
          %p683 = pneg %p303
        $region46: #{vulnerability_forward.1} parent=11 // pred_check_branch
          %685 = sbr.rel (%p683) target = $region48
        $region47: #{vulnerability_forward.1} parent=11 // pred_region
          _
        $region48: #{vulnerability_forward.1} parent=11 // pred_fallthru
          _
        // Predicated region
        $region49: #{vulnerability_forward.1} parent=11 // pred_check
          %p686 = pneg %p324
        $region50: #{vulnerability_forward.1} parent=11 // pred_check_branch
          %688 = sbr.rel (%p686) target = $region52
        $region51: #{vulnerability_forward.1} parent=11 // pred_region
          _
        $region52: #{vulnerability_forward.1} parent=11 // pred_fallthru
          _
        // Predicated region
        $region53: #{vulnerability_forward.1} parent=11 // pred_check
          %p689 = pneg %p345
        $region54: #{vulnerability_forward.1} parent=11 // pred_check_branch
          %691 = sbr.rel (%p689) target = $region56
        $region55: #{vulnerability_forward.1} parent=11 // pred_region
          _
        $region56: #{vulnerability_forward.1} parent=11 // pred_fallthru
          _
        // Predicated region
        $region57: #{vulnerability_forward.1} parent=11 // pred_check
          %p692 = pneg %p366
        $region58: #{vulnerability_forward.1} parent=11 // pred_check_branch
          %694 = sbr.rel (%p692) target = $region60
        $region59: #{vulnerability_forward.1} parent=11 // pred_region
          _
        $region60: #{vulnerability_forward.1} parent=11 // pred_fallthru
          _
        // Predicated region
        $region61: #{vulnerability_forward.1} parent=11 // pred_check
          %p695 = pneg %p387
        $region62: #{vulnerability_forward.1} parent=11 // pred_check_branch
          %697 = sbr.rel (%p695) target = $region64
        $region63: #{vulnerability_forward.1} parent=11 // pred_region
          _
        $region64: #{vulnerability_forward.1} parent=11 // pred_fallthru
          _
        // Predicated region
        $region65: #{vulnerability_forward.1} parent=11 // pred_check
          %p698 = pneg %p408
        $region66: #{vulnerability_forward.1} parent=11 // pred_check_branch
          %700 = sbr.rel (%p698) target = $region68
        $region67: #{vulnerability_forward.1} parent=11 // pred_region
          _
        $region68: #{vulnerability_forward.1} parent=11 // pred_fallthru
          _
        // Predicated region
        $region69: #{vulnerability_forward.1} parent=11 // pred_check
          %p701 = pneg %p429
        $region70: #{vulnerability_forward.1} parent=11 // pred_check_branch
          %703 = sbr.rel (%p701) target = $region72
        $region71: #{vulnerability_forward.1} parent=11 // pred_region
          _
        $region72: #{vulnerability_forward.1} parent=11 // pred_fallthru
          _
        // Predicated region
        $region73: #{vulnerability_forward.1} parent=11 // pred_check
          %p704 = pneg %p450
        $region74: #{vulnerability_forward.1} parent=11 // pred_check_branch
          %706 = sbr.rel (%p704) target = $region76
        $region75: #{vulnerability_forward.1} parent=11 // pred_region
          _
        $region76: #{vulnerability_forward.1} parent=11 // pred_fallthru
          _
        // Predicated region
        $region77: #{vulnerability_forward.1} parent=11 // pred_check
          %p707 = pneg %p471
        $region78: #{vulnerability_forward.1} parent=11 // pred_check_branch
          %709 = sbr.rel (%p707) target = $region80
        $region79: #{vulnerability_forward.1} parent=11 // pred_region
          _
        $region80: #{vulnerability_forward.1} parent=11 // pred_fallthru
          _
        // Predicated region
        $region81: #{vulnerability_forward.1} parent=11 // pred_check
          %p710 = pneg %p492
        $region82: #{vulnerability_forward.1} parent=11 // pred_check_branch
          %712 = sbr.rel (%p710) target = $region84
        $region83: #{vulnerability_forward.1} parent=11 // pred_region
          _
        $region84: #{vulnerability_forward.1} parent=11 // pred_fallthru
          _
        // Predicated region
        $region85: #{vulnerability_forward.1} parent=11 // pred_check
          %p713 = pneg %p513
        $region86: #{vulnerability_forward.1} parent=11 // pred_check_branch
          %715 = sbr.rel (%p713) target = $region88
        $region87: #{vulnerability_forward.1} parent=11 // pred_region
          _
        $region88: #{vulnerability_forward.1} parent=11 // pred_fallthru
          _
        // Predicated region
        $region89: #{vulnerability_forward.1} parent=11 // pred_check
          %p716 = pneg %p534
        $region90: #{vulnerability_forward.1} parent=11 // pred_check_branch
          %718 = sbr.rel (%p716) target = $region92
        $region91: #{vulnerability_forward.1} parent=11 // pred_region
          _
        $region92: #{vulnerability_forward.1} parent=11 // pred_fallthru
          _
        // Predicated region
        $region93: #{vulnerability_forward.1} parent=11 // pred_check
          %p719 = pneg %p555
        $region94: #{vulnerability_forward.1} parent=11 // pred_check_branch
          %721 = sbr.rel (%p719) target = $region96
        $region95: #{vulnerability_forward.1} parent=11 // pred_region
          _
        $region96: #{vulnerability_forward.1} parent=11 // pred_fallthru
          _
        // Predicated region
        $region97: #{vulnerability_forward.1} parent=11 // pred_check
          %p722 = pneg %p576
        $region98: #{vulnerability_forward.1} parent=11 // pred_check_branch
          %724 = sbr.rel (%p722) target = $region100
        $region99: #{vulnerability_forward.1} parent=11 // pred_region
          _
        $region100: #{vulnerability_forward.1} parent=11 // pred_fallthru
          _
        // Predicated region
        $region101: #{vulnerability_forward.1} parent=11 // pred_check
          %p725 = pneg %p597
        $region102: #{vulnerability_forward.1} parent=11 // pred_check_branch
          %727 = sbr.rel (%p725) target = $region104
        $region103: #{vulnerability_forward.1} parent=11 // pred_region
          _
        $region104: #{vulnerability_forward.1} parent=11 // pred_fallthru
          _
        // Predicated region
        $region105: #{vulnerability_forward.1} parent=11 // pred_check
          %p728 = pneg %p618
        $region106: #{vulnerability_forward.1} parent=11 // pred_check_branch
          %730 = sbr.rel (%p728) target = $region108
        $region107: #{vulnerability_forward.1} parent=11 // pred_region
          _
        $region108: #{vulnerability_forward.1} parent=11 // pred_fallthru
          _
      $region12: #{vulnerability_forward.1} parent=5 // pred_fallthru
        _
      %p731 = scmp.lt.s32.totalorder %s36, 2
      // Predicated region
      $region109: #{vulnerability_forward.1} parent=5 // pred_check
        %p732 = pneg %p731
      $region110: #{vulnerability_forward.1} parent=5 // pred_check_branch
        %734 = sbr.rel (%p732) target = $region112
      $region111: #{vulnerability_forward.1} parent=5 // pred_region
        // Predicated region
        $region113: #{vulnerability_forward.1} parent=111 // pred_check
          %p735 = pneg %p56
        $region114: #{vulnerability_forward.1} parent=111 // pred_check_branch
          %737 = sbr.rel (%p735) target = $region116
        $region115: #{vulnerability_forward.1} parent=111 // pred_region
          %p738 = scmp.lt.s32.totalorder %s36, 1
          %s739 = scalar_select %p738, %s36, 1
          %s740 = smul.addr %s739, 4
          %s741 = smul.addr %s740, 8
          %s742 = scalar_lea.vmem %s0, %s741
        $region116: #{vulnerability_forward.1} parent=111 // pred_fallthru
          _
        // Predicated region
        $region117: #{vulnerability_forward.1} parent=111 // pred_check
          %p743 = pneg %p82
        $region118: #{vulnerability_forward.1} parent=111 // pred_check_branch
          %745 = sbr.rel (%p743) target = $region120
        $region119: #{vulnerability_forward.1} parent=111 // pred_region
          %p746 = scmp.lt.s32.totalorder %s36, 1
          %s747 = scalar_select %p746, %s36, 1
          %s748 = smul.addr %s747, 6
          %s749 = smul.addr %s748, 8
          %s750 = scalar_lea.vmem %s1, %s749
        $region120: #{vulnerability_forward.1} parent=111 // pred_fallthru
          _
        // Predicated region
        $region121: #{vulnerability_forward.1} parent=111 // pred_check
          %p751 = pneg %p108
        $region122: #{vulnerability_forward.1} parent=111 // pred_check_branch
          %753 = sbr.rel (%p751) target = $region124
        $region123: #{vulnerability_forward.1} parent=111 // pred_region
          %p754 = scmp.lt.s32.totalorder %s36, 1
          %s755 = scalar_select %p754, %s36, 1
          %s756 = smul.addr %s755, 8
          %s757 = scalar_lea.vmem %s2, %s756
        $region124: #{vulnerability_forward.1} parent=111 // pred_fallthru
          _
      $region112: #{vulnerability_forward.1} parent=5 // pred_fallthru
        _
      %p758 = scmp.le.s32.totalorder 1, %s36
      %p759 = scmp.lt.s32.totalorder %s36, 3
      %p760 = pnand %p758, %p759
      %p761 = pneg %p760
      // Predicated region
      $region125: #{vulnerability_forward.1} parent=5 // pred_check
        _
      $region126: #{vulnerability_forward.1} parent=5 // pred_check_branch
        %763 = sbr.rel (%p760) target = $region128
      $region127: #{vulnerability_forward.1} parent=5 // pred_region
        %s764 = ssub.s32 %s36, 1
        %p765 = scmp.lt.s32.totalorder %s41, 1
        %s766 = scalar_select %p765, %s41, 1
        %s767 = smul.addr %s766, 4
        %s768 = smul.addr %s767, 8
        %s769 = scalar_lea.vmem %s0, %s768
        %p770 = pneg %p62
        %p771 = pneg %p59
        %p772 = scmp.lt.s32.totalorder %s41, 1
        %s773 = scalar_select %p772, %s41, 1
        %s774 = smul.addr %s773, 6
        %s775 = smul.addr %s774, 8
        %s776 = scalar_lea.vmem %s1, %s775
        %p777 = pneg %p88
        %p778 = pneg %p85
        %p779 = scmp.lt.s32.totalorder %s41, 1
        %s780 = scalar_select %p779, %s41, 1
        %s781 = smul.addr %s780, 8
        %s782 = scalar_lea.vmem %s2, %s781
        %p783 = pneg %p114
        %p784 = pneg %p111
        %p785 = pneg %p135
        %p786 = pneg %p132
        %p787 = pneg %p156
        %p788 = pneg %p153
        %p789 = pneg %p177
        %p790 = pneg %p174
        %p791 = pneg %p198
        %p792 = pneg %p195
        %p793 = pneg %p219
        %p794 = pneg %p216
        %p795 = pneg %p240
        %p796 = pneg %p237
        %p797 = pneg %p261
        %p798 = pneg %p258
        %p799 = pneg %p282
        %p800 = pneg %p279
        %p801 = pneg %p303
        %p802 = pneg %p300
        %p803 = pneg %p324
        %p804 = pneg %p321
        %p805 = pneg %p345
        %p806 = pneg %p342
        %p807 = pneg %p366
        %p808 = pneg %p363
        %p809 = pneg %p387
        %p810 = pneg %p384
        %p811 = pneg %p408
        %p812 = pneg %p405
        %p813 = pneg %p429
        %p814 = pneg %p426
        %p815 = pneg %p450
        %p816 = pneg %p447
        %p817 = pneg %p471
        %p818 = pneg %p468
        %p819 = pneg %p492
        %p820 = pneg %p489
        %p821 = pneg %p513
        %p822 = pneg %p510
        %p823 = pneg %p534
        %p824 = pneg %p531
        %p825 = pneg %p555
        %p826 = pneg %p552
        %p827 = pneg %p576
        %p828 = pneg %p573
        %p829 = pneg %p597
        %p830 = pneg %p594
        %p831 = pneg %p618
        %p832 = pneg %p615
        %p833 = pneg %p644
        %p834 = pneg %p641
        %s835 = sand.u32 %s631, 1
        %s836 = scalar_lea.sflag [#allocation3], %s835
        %s837 = sand.u32 %s631, 1
        %s838 = scalar_lea.vmem [#allocation2], %s837
        %p839 = scmp.lt.s32.totalorder %s41, 1
        %s840 = scalar_select %p839, %s41, 1
        %s841 = smul.addr %s840, 4
        %s842 = smul.addr %s841, 8
        %s843 = scalar_lea.vmem %s0, %s842
        %p844 = scmp.lt.s32.totalorder %s41, 1
        %s845 = scalar_select %p844, %s41, 1
        %s846 = smul.addr %s845, 6
        %s847 = smul.addr %s846, 8
        %s848 = scalar_lea.vmem %s1, %s847
        %p849 = scmp.lt.s32.totalorder %s41, 1
        %s850 = scalar_select %p849, %s41, 1
        %s851 = smul.addr %s850, 8
        %s852 = scalar_lea.vmem %s2, %s851
        %v854 = vld [vmem:[%s843] sm:$0xff]
        %v855 = vld [vmem:[%s843 + $0x8] sm:$0xff]
        %v856 = vld [vmem:[%s843 + $0x10] sm:$0xff]
        %v857 = vld [vmem:[%s843 + $0x18] sm:$0xff]
        %v858 = vld [vmem:[%s4] sm:$0xf]
        %v859 = vld [vmem:[%s4 + $0x4] sm:$0xf]
        %v860 = vld [vmem:[%s4 + $0x8] sm:$0xf]
        %v861 = vld [vmem:[%s4 + $0xc] sm:$0xf]
        %v862 = vld [vmem:[%s8] sm:$0xf]
        %v863 = vld [vmem:[%s8 + $0x4] sm:$0xf]
        %v864 = vld [vmem:[%s8 + $0x8] sm:$0xf]
        %v865 = vld [vmem:[%s8 + $0xc] sm:$0xf]
        %v866 = vld [vmem:[%s3] sm:$0xf]
        %v867 = vld [vmem:[%s3 + $0x4] sm:$0xf]
        %v868 = vpack.c.bf16 %v855, %v854
        %v869 = vpack.c.bf16 %v857, %v856
        %v870 = vld [vmem:[%s5] sm:$0x1]
        %v872 = vperm.slane %v870, 0
        %v876 = vunpack.c.l.b16 %v866
        %v877 = vunpack.c.l.b16 %v867
        %v878 = vpack.c.b16 %v877, %v876
        %vm880 = vcmask 130048
        %v882 = vsel %vm880, %v868, 0
        %v885 = vsel %vm880, %v869, 0
        %887 = vmatpush.bf16.msra.mxu0 0
        %888 = vmatpush.bf16.msra.mxu0 0
        %889 = vmatpush.bf16.msra.mxu0 0
        %890 = vmatpush.bf16.msra.mxu0 0
        %891 = vmatpush.bf16.msra.mxu0 0
        %892 = vmatpush.bf16.msra.mxu0 0
        %893 = vmatpush.bf16.msra.mxu0 0
        %894 = vmatpush.bf16.msra.mxu0 %v878
        %895 = vmatmul.bf16.gmra.mxu0 %v882
        %v896 = vpop.f32.mrf.mxu0
        %v897 = vadd.f32 %v872, %v896
        %v898 = vpop.f32.mrf.mxu0
        %v899 = vadd.f32 %v872, %v898
        %900 = vmatmul.bf16.gmra.mxu0 %v885
        %v901 = vpop.f32.mrf.mxu0
        %v902 = vadd.f32 %v872, %v901
        %v903 = vpop.f32.mrf.mxu0
        %v904 = vadd.f32 %v872, %v903
        %905 = vdwg.mxu0
        %v906 = vld [vmem:[%s7] sm:$0xf]
        %v907 = vld [vmem:[%s7 + $0x4] sm:$0xf]
        %v908 = vld [vmem:[%s9] sm:$0x1]
        %v910 = vperm.slane %v908, 0
        %v914 = vunpack.c.l.b16 %v906
        %v915 = vunpack.c.l.b16 %v907
        %v916 = vpack.c.b16 %v915, %v914
        %918 = vmatpush.bf16.msra.mxu0 0
        %919 = vmatpush.bf16.msra.mxu0 0
        %920 = vmatpush.bf16.msra.mxu0 0
        %921 = vmatpush.bf16.msra.mxu0 0
        %922 = vmatpush.bf16.msra.mxu0 0
        %923 = vmatpush.bf16.msra.mxu0 0
        %924 = vmatpush.bf16.msra.mxu0 0
        %925 = vmatpush.bf16.msra.mxu0 %v916
        %926 = vmatmul.bf16.gmra.mxu0 %v882
        %v927 = vpop.f32.mrf.mxu0
        %v928 = vadd.f32 %v910, %v927
        %v929 = vpop.f32.mrf.mxu0
        %v930 = vadd.f32 %v910, %v929
        %931 = vmatmul.bf16.gmra.mxu0 %v885
        %v932 = vpop.f32.mrf.mxu0
        %v933 = vadd.f32 %v910, %v932
        %v934 = vpop.f32.mrf.mxu0
        %v935 = vadd.f32 %v910, %v934
        %936 = vdwg.mxu0
        %v937 = vld [vmem:[%s6] sm:$0x1]
        %v939 = vperm.slane %v937, 0
        %v941 = vld [vmem:[%s10] sm:$0x1]
        %v943 = vperm.slane %v941, 0
        %v949 = vunpack.c.l.b16 %v858
        %v950 = vunpack.c.l.b16 %v859
        %v951 = vunpack.c.l.b16 %v860
        %v952 = vunpack.c.l.b16 %v861
        %v953 = vpack.c.b16 %v950, %v949
        %v954 = vpack.c.b16 %v952, %v951
        %vm957 = vcmask 261120
        %v959 = vsel %vm957, 0, 0
        %961 = vmatpush.bf16.msra.mxu0 0
        %962 = vmatpush.bf16.msra.mxu0 0
        %963 = vmatpush.bf16.msra.mxu0 0
        %964 = vmatpush.bf16.msra.mxu0 0
        %965 = vmatpush.bf16.msra.mxu0 0
        %966 = vmatpush.bf16.msra.mxu0 0
        %967 = vmatpush.bf16.msra.mxu0 %v954
        %968 = vmatpush.bf16.msra.mxu0 %v953
        %969 = vmatmul.bf16.gmra.mxu0 %v959
        %v970 = vpop.f32.mrf.mxu0
        %v971 = vadd.f32 0.0, %v970
        %v972 = vpop.f32.mrf.mxu0
        %973 = vdwg.mxu0
        %v974 = vadd.f32 %v904, %v971
        %v975 = vadd.f32 %v974, %v939
        %v976 = vxor.u32 %v975, 2147483648
        %v977 = vmul.f32 %v976, 1.442695
        %v978 = vpow.pop %v977
        %v979 = vadd.f32 %v978, 1.0
        %v980 = vrcp.pop %v979
        %v981 = vmul.f32 %v979, %v980
        %v982 = vsub.f32 1.0, %v981
        %v983 = vmul.f32 %v980, %v982
        %v984 = vadd.f32 %v980, %v983
        %vm985 = vweird.f32 %v979
        %vm986 = vweird.f32 %v980
        %vm987 = vmor %vm985, %vm986
        %v988 = vsel %vm987, %v980, %v984
        %v989 = vand.u32 2147483647, %v979
        %vm990 = vcmp.eq.f32.partialorder %v989, 8.507059e+37
        %v991 = vand.u32 %v979, 2147483648
        %v992 = vor.u32 1.1754944e-38, %v991
        %v993 = vsel %vm990, %v992, %v988
        %v994 = vmul.f32 1.0, %v993
        %v995 = vtanh.pop %v975
        %v1000 = vunpack.c.l.b16 %v862
        %v1001 = vunpack.c.l.b16 %v863
        %v1002 = vunpack.c.l.b16 %v864
        %v1003 = vunpack.c.l.b16 %v865
        %v1004 = vpack.c.b16 %v1001, %v1000
        %v1005 = vpack.c.b16 %v1003, %v1002
        %1008 = vmatpush.bf16.msra.mxu0 0
        %1009 = vmatpush.bf16.msra.mxu0 0
        %1010 = vmatpush.bf16.msra.mxu0 0
        %1011 = vmatpush.bf16.msra.mxu0 0
        %1012 = vmatpush.bf16.msra.mxu0 0
        %1013 = vmatpush.bf16.msra.mxu0 0
        %1014 = vmatpush.bf16.msra.mxu0 %v1005
        %1015 = vmatpush.bf16.msra.mxu0 %v1004
        %1016 = vmatmul.bf16.gmra.mxu0 %v959
        %v1017 = vpop.f32.mrf.mxu0
        %v1018 = vadd.f32 0.0, %v1017
        %v1019 = vpop.f32.mrf.mxu0
        %1020 = vdwg.mxu0
        %v1021 = vadd.f32 %v935, %v1018
        %v1022 = vadd.f32 %v1021, %v943
        %v1023 = vxor.u32 %v1022, 2147483648
        %v1024 = vmul.f32 %v1023, 1.442695
        %v1025 = vpow.pop %v1024
        %v1026 = vadd.f32 %v1025, 1.0
        %v1027 = vrcp.pop %v1026
        %v1028 = vmul.f32 %v1026, %v1027
        %v1029 = vsub.f32 1.0, %v1028
        %v1030 = vmul.f32 %v1027, %v1029
        %v1031 = vadd.f32 %v1027, %v1030
        %vm1032 = vweird.f32 %v1026
        %vm1033 = vweird.f32 %v1027
        %vm1034 = vmor %vm1032, %vm1033
        %v1035 = vsel %vm1034, %v1027, %v1031
        %v1036 = vand.u32 2147483647, %v1026
        %vm1037 = vcmp.eq.f32.partialorder %v1036, 8.507059e+37
        %v1038 = vand.u32 %v1026, 2147483648
        %v1039 = vor.u32 1.1754944e-38, %v1038
        %v1040 = vsel %vm1037, %v1039, %v1035
        %v1041 = vmul.f32 1.0, %v1040
        %1043 = vrot.lane.b32.xlu0 %v995, 64
        %v1044 = vpop.permute.xlu0 %1043
        %v1046 = vmul.f32 %v994, %v1044
        %v1047 = vmul.f32 %v1041, 0.0
        %v1048 = vadd.f32 %v1046, %v1047
        %v1049 = vtanh.pop %v1048
        %1051 = vrot.lane.b32.xlu0 %v1049, 32
        %v1052 = vpop.permute.xlu0 %1051
        %v1054 = vmul.f32 %v994, %v1052
        %v1055 = vpack.c.bf16 %v1054, %v1054
        %1057 = vrot.lane.b32.xlu0 %v1055, 96
        %v1058 = vpop.permute.xlu0 %1057
        %v1060 = vsel %vm957, %v1058, 0
        %1062 = vmatpush.bf16.msra.mxu0 0
        %1063 = vmatpush.bf16.msra.mxu0 0
        %1064 = vmatpush.bf16.msra.mxu0 0
        %1065 = vmatpush.bf16.msra.mxu0 0
        %1066 = vmatpush.bf16.msra.mxu0 0
        %1067 = vmatpush.bf16.msra.mxu0 0
        %1068 = vmatpush.bf16.msra.mxu0 %v954
        %1069 = vmatpush.bf16.msra.mxu0 %v953
        %1070 = vmatmul.bf16.gmra.mxu0 %v1060
        %v1071 = vpop.f32.mrf.mxu0
        %v1072 = vadd.f32 0.0, %v1071
        %v1073 = vpop.f32.mrf.mxu0
        %1074 = vdwg.mxu0
        %v1075 = vadd.f32 %v902, %v1072
        %v1076 = vadd.f32 %v1075, %v939
        %v1077 = vxor.u32 %v1076, 2147483648
        %v1078 = vmul.f32 %v1077, 1.442695
        %v1079 = vpow.pop %v1078
        %v1080 = vadd.f32 %v1079, 1.0
        %v1081 = vrcp.pop %v1080
        %v1082 = vmul.f32 %v1080, %v1081
        %v1083 = vsub.f32 1.0, %v1082
        %v1084 = vmul.f32 %v1081, %v1083
        %v1085 = vadd.f32 %v1081, %v1084
        %vm1086 = vweird.f32 %v1080
        %vm1087 = vweird.f32 %v1081
        %vm1088 = vmor %vm1086, %vm1087
        %v1089 = vsel %vm1088, %v1081, %v1085
        %v1090 = vand.u32 2147483647, %v1080
        %vm1091 = vcmp.eq.f32.partialorder %v1090, 8.507059e+37
        %v1092 = vand.u32 %v1080, 2147483648
        %v1093 = vor.u32 1.1754944e-38, %v1092
        %v1094 = vsel %vm1091, %v1093, %v1089
        %v1095 = vmul.f32 1.0, %v1094
        %v1096 = vtanh.pop %v1076
        %1097 = vmatpush.bf16.msra.mxu0 0
        %1098 = vmatpush.bf16.msra.mxu0 0
        %1099 = vmatpush.bf16.msra.mxu0 0
        %1100 = vmatpush.bf16.msra.mxu0 0
        %1101 = vmatpush.bf16.msra.mxu0 0
        %1102 = vmatpush.bf16.msra.mxu0 0
        %1103 = vmatpush.bf16.msra.mxu0 %v1005
        %1104 = vmatpush.bf16.msra.mxu0 %v1004
        %1105 = vmatmul.bf16.gmra.mxu0 %v1060
        %v1106 = vpop.f32.mrf.mxu0
        %v1107 = vadd.f32 0.0, %v1106
        %v1108 = vpop.f32.mrf.mxu0
        %1109 = vdwg.mxu0
        %v1110 = vadd.f32 %v933, %v1107
        %v1111 = vadd.f32 %v1110, %v943
        %v1112 = vxor.u32 %v1111, 2147483648
        %v1113 = vmul.f32 %v1112, 1.442695
        %v1114 = vpow.pop %v1113
        %v1115 = vadd.f32 %v1114, 1.0
        %v1116 = vrcp.pop %v1115
        %v1117 = vmul.f32 %v1115, %v1116
        %v1118 = vsub.f32 1.0, %v1117
        %v1119 = vmul.f32 %v1116, %v1118
        %v1120 = vadd.f32 %v1116, %v1119
        %vm1121 = vweird.f32 %v1115
        %vm1122 = vweird.f32 %v1116
        %vm1123 = vmor %vm1121, %vm1122
        %v1124 = vsel %vm1123, %v1116, %v1120
        %v1125 = vand.u32 2147483647, %v1115
        %vm1126 = vcmp.eq.f32.partialorder %v1125, 8.507059e+37
        %v1127 = vand.u32 %v1115, 2147483648
        %v1128 = vor.u32 1.1754944e-38, %v1127
        %v1129 = vsel %vm1126, %v1128, %v1124
        %v1130 = vmul.f32 1.0, %v1129
        %1132 = vrot.lane.b32.xlu0 %v1096, 64
        %v1133 = vpop.permute.xlu0 %1132
        %v1135 = vmul.f32 %v1095, %v1133
        %v1136 = vmul.f32 %v1130, %v1048
        %v1137 = vadd.f32 %v1135, %v1136
        %v1138 = vtanh.pop %v1137
        %1140 = vrot.lane.b32.xlu0 %v1138, 32
        %v1141 = vpop.permute.xlu0 %1140
        %v1143 = vmul.f32 %v1095, %v1141
        %v1144 = vpack.c.bf16 %v1143, %v1143
        %1146 = vrot.lane.b32.xlu0 %v1144, 96
        %v1147 = vpop.permute.xlu0 %1146
        %v1149 = vsel %vm957, %v1147, 0
        %1151 = vmatpush.bf16.msra.mxu0 0
        %1152 = vmatpush.bf16.msra.mxu0 0
        %1153 = vmatpush.bf16.msra.mxu0 0
        %1154 = vmatpush.bf16.msra.mxu0 0
        %1155 = vmatpush.bf16.msra.mxu0 0
        %1156 = vmatpush.bf16.msra.mxu0 0
        %1157 = vmatpush.bf16.msra.mxu0 %v954
        %1158 = vmatpush.bf16.msra.mxu0 %v953
        %1159 = vmatmul.bf16.gmra.mxu0 %v1149
        %v1160 = vpop.f32.mrf.mxu0
        %v1161 = vadd.f32 0.0, %v1160
        %v1162 = vpop.f32.mrf.mxu0
        %1163 = vdwg.mxu0
        %v1164 = vadd.f32 %v899, %v1161
        %v1165 = vadd.f32 %v1164, %v939
        %v1166 = vxor.u32 %v1165, 2147483648
        %v1167 = vmul.f32 %v1166, 1.442695
        %v1168 = vpow.pop %v1167
        %v1169 = vadd.f32 %v1168, 1.0
        %v1170 = vrcp.pop %v1169
        %v1171 = vmul.f32 %v1169, %v1170
        %v1172 = vsub.f32 1.0, %v1171
        %v1173 = vmul.f32 %v1170, %v1172
        %v1174 = vadd.f32 %v1170, %v1173
        %vm1175 = vweird.f32 %v1169
        %vm1176 = vweird.f32 %v1170
        %vm1177 = vmor %vm1175, %vm1176
        %v1178 = vsel %vm1177, %v1170, %v1174
        %v1179 = vand.u32 2147483647, %v1169
        %vm1180 = vcmp.eq.f32.partialorder %v1179, 8.507059e+37
        %v1181 = vand.u32 %v1169, 2147483648
        %v1182 = vor.u32 1.1754944e-38, %v1181
        %v1183 = vsel %vm1180, %v1182, %v1178
        %v1184 = vmul.f32 1.0, %v1183
        %v1185 = vtanh.pop %v1165
        %1186 = vmatpush.bf16.msra.mxu0 0
        %1187 = vmatpush.bf16.msra.mxu0 0
        %1188 = vmatpush.bf16.msra.mxu0 0
        %1189 = vmatpush.bf16.msra.mxu0 0
        %1190 = vmatpush.bf16.msra.mxu0 0
        %1191 = vmatpush.bf16.msra.mxu0 0
        %1192 = vmatpush.bf16.msra.mxu0 %v1005
        %1193 = vmatpush.bf16.msra.mxu0 %v1004
        %1194 = vmatmul.bf16.gmra.mxu0 %v1149
        %v1195 = vpop.f32.mrf.mxu0
        %v1196 = vadd.f32 0.0, %v1195
        %v1197 = vpop.f32.mrf.mxu0
        %1198 = vdwg.mxu0
        %v1199 = vadd.f32 %v930, %v1196
        %v1200 = vadd.f32 %v1199, %v943
        %v1201 = vxor.u32 %v1200, 2147483648
        %v1202 = vmul.f32 %v1201, 1.442695
        %v1203 = vpow.pop %v1202
        %v1204 = vadd.f32 %v1203, 1.0
        %v1205 = vrcp.pop %v1204
        %v1206 = vmul.f32 %v1204, %v1205
        %v1207 = vsub.f32 1.0, %v1206
        %v1208 = vmul.f32 %v1205, %v1207
        %v1209 = vadd.f32 %v1205, %v1208
        %vm1210 = vweird.f32 %v1204
        %vm1211 = vweird.f32 %v1205
        %vm1212 = vmor %vm1210, %vm1211
        %v1213 = vsel %vm1212, %v1205, %v1209
        %v1214 = vand.u32 2147483647, %v1204
        %vm1215 = vcmp.eq.f32.partialorder %v1214, 8.507059e+37
        %v1216 = vand.u32 %v1204, 2147483648
        %v1217 = vor.u32 1.1754944e-38, %v1216
        %v1218 = vsel %vm1215, %v1217, %v1213
        %v1219 = vmul.f32 1.0, %v1218
        %1221 = vrot.lane.b32.xlu0 %v1185, 64
        %v1222 = vpop.permute.xlu0 %1221
        %v1224 = vmul.f32 %v1184, %v1222
        %v1225 = vmul.f32 %v1219, %v1137
        %v1226 = vadd.f32 %v1224, %v1225
        %v1227 = vtanh.pop %v1226
        %1229 = vrot.lane.b32.xlu0 %v1227, 32
        %v1230 = vpop.permute.xlu0 %1229
        %v1232 = vmul.f32 %v1184, %v1230
        %v1233 = vpack.c.bf16 %v1232, %v1232
        %1235 = vrot.lane.b32.xlu0 %v1233, 96
        %v1236 = vpop.permute.xlu0 %1235
        %v1238 = vsel %vm957, %v1236, 0
        %1240 = vmatpush.bf16.msra.mxu0 0
        %1241 = vmatpush.bf16.msra.mxu0 0
        %1242 = vmatpush.bf16.msra.mxu0 0
        %1243 = vmatpush.bf16.msra.mxu0 0
        %1244 = vmatpush.bf16.msra.mxu0 0
        %1245 = vmatpush.bf16.msra.mxu0 0
        %1246 = vmatpush.bf16.msra.mxu0 %v954
        %1247 = vmatpush.bf16.msra.mxu0 %v953
        %1248 = vmatmul.bf16.gmra.mxu0 %v1238
        %v1249 = vpop.f32.mrf.mxu0
        %v1250 = vadd.f32 0.0, %v1249
        %v1251 = vpop.f32.mrf.mxu0
        %1252 = vdwg.mxu0
        %v1253 = vadd.f32 %v897, %v1250
        %v1254 = vadd.f32 %v1253, %v939
        %v1255 = vxor.u32 %v1254, 2147483648
        %v1256 = vmul.f32 %v1255, 1.442695
        %v1257 = vpow.pop %v1256
        %v1258 = vadd.f32 %v1257, 1.0
        %v1259 = vrcp.pop %v1258
        %v1260 = vmul.f32 %v1258, %v1259
        %v1261 = vsub.f32 1.0, %v1260
        %v1262 = vmul.f32 %v1259, %v1261
        %v1263 = vadd.f32 %v1259, %v1262
        %vm1264 = vweird.f32 %v1258
        %vm1265 = vweird.f32 %v1259
        %vm1266 = vmor %vm1264, %vm1265
        %v1267 = vsel %vm1266, %v1259, %v1263
        %v1268 = vand.u32 2147483647, %v1258
        %vm1269 = vcmp.eq.f32.partialorder %v1268, 8.507059e+37
        %v1270 = vand.u32 %v1258, 2147483648
        %v1271 = vor.u32 1.1754944e-38, %v1270
        %v1272 = vsel %vm1269, %v1271, %v1267
        %v1273 = vmul.f32 1.0, %v1272
        %v1274 = vtanh.pop %v1254
        %1275 = vmatpush.bf16.msra.mxu0 0
        %1276 = vmatpush.bf16.msra.mxu0 0
        %1277 = vmatpush.bf16.msra.mxu0 0
        %1278 = vmatpush.bf16.msra.mxu0 0
        %1279 = vmatpush.bf16.msra.mxu0 0
        %1280 = vmatpush.bf16.msra.mxu0 0
        %1281 = vmatpush.bf16.msra.mxu0 %v1005
        %1282 = vmatpush.bf16.msra.mxu0 %v1004
        %1283 = vmatmul.bf16.gmra.mxu0 %v1238
        %v1284 = vpop.f32.mrf.mxu0
        %v1285 = vadd.f32 0.0, %v1284
        %v1286 = vpop.f32.mrf.mxu0
        %1287 = vdwg.mxu0
        %v1288 = vadd.f32 %v928, %v1285
        %v1289 = vadd.f32 %v1288, %v943
        %v1290 = vxor.u32 %v1289, 2147483648
        %v1291 = vmul.f32 %v1290, 1.442695
        %v1292 = vpow.pop %v1291
        %v1293 = vadd.f32 %v1292, 1.0
        %v1294 = vrcp.pop %v1293
        %v1295 = vmul.f32 %v1293, %v1294
        %v1296 = vsub.f32 1.0, %v1295
        %v1297 = vmul.f32 %v1294, %v1296
        %v1298 = vadd.f32 %v1294, %v1297
        %vm1299 = vweird.f32 %v1293
        %vm1300 = vweird.f32 %v1294
        %vm1301 = vmor %vm1299, %vm1300
        %v1302 = vsel %vm1301, %v1294, %v1298
        %v1303 = vand.u32 2147483647, %v1293
        %vm1304 = vcmp.eq.f32.partialorder %v1303, 8.507059e+37
        %v1305 = vand.u32 %v1293, 2147483648
        %v1306 = vor.u32 1.1754944e-38, %v1305
        %v1307 = vsel %vm1304, %v1306, %v1302
        %v1308 = vmul.f32 1.0, %v1307
        %1310 = vrot.lane.b32.xlu0 %v1274, 64
        %v1311 = vpop.permute.xlu0 %1310
        %v1313 = vmul.f32 %v1273, %v1311
        %v1314 = vmul.f32 %v1308, %v1226
        %v1315 = vadd.f32 %v1313, %v1314
        %v1316 = vtanh.pop %v1315
        %1318 = vrot.lane.b32.xlu0 %v1316, 32
        %v1319 = vpop.permute.xlu0 %1318
        %v1321 = vmul.f32 %v1273, %v1319
        %v1322 = vld [vmem:[%s848] sm:$0xff]
        %v1323 = vld [vmem:[%s848 + $0x8] sm:$0xff]
        %v1324 = vld [vmem:[%s848 + $0x10] sm:$0xff]
        %v1325 = vld [vmem:[%s848 + $0x18] sm:$0xff]
        %v1326 = vld [vmem:[%s848 + $0x20] sm:$0xff]
        %v1327 = vld [vmem:[%s848 + $0x28] sm:$0xff]
        %v1328 = vld [vmem:[%s11] sm:$0xff]
        %v1329 = vld [vmem:[%s11 + $0x8] sm:$0xf]
        %v1330 = vld [vmem:[%s11 + $0xc] sm:$0xff]
        %v1331 = vld [vmem:[%s11 + $0x14] sm:$0xf]
        %v1332 = vld [vmem:[%s11 + $0x18] sm:$0xff]
        %v1333 = vld [vmem:[%s11 + $0x20] sm:$0xf]
        %v1334 = vld [vmem:[%s11 + $0x24] sm:$0xff]
        %v1335 = vld [vmem:[%s11 + $0x2c] sm:$0xf]
        %v1336 = vld [vmem:[%s11 + $0x30] sm:$0xff]
        %v1337 = vld [vmem:[%s11 + $0x38] sm:$0xf]
        %v1338 = vld [vmem:[%s11 + $0x3c] sm:$0xff]
        %v1339 = vld [vmem:[%s11 + $0x44] sm:$0xf]
        %v1340 = vld [vmem:[%s11 + $0x48] sm:$0xff]
        %v1341 = vld [vmem:[%s11 + $0x50] sm:$0xf]
        %v1342 = vld [vmem:[%s11 + $0x54] sm:$0xff]
        %v1343 = vld [vmem:[%s11 + $0x5c] sm:$0xf]
        %v1344 = vpack.c.bf16 %v1323, %v1322
        %v1345 = vpack.c.bf16 %v1325, %v1324
        %v1346 = vpack.c.bf16 %v1327, %v1326
        %v1347 = vld [vmem:[%s13] sm:$0x7]
        %v1349 = vperm.slane %v1347, 0
        %v1350 = vperm.slane %v1347, 1
        %v1351 = vperm.slane %v1347, 2
        %v1371 = vunpack.c.l.b16 %v1328
        %v1372 = vunpack.c.h.b16 %v1328
        %v1373 = vunpack.c.l.b16 %v1329
        %v1374 = vunpack.c.l.b16 %v1330
        %v1375 = vunpack.c.h.b16 %v1330
        %v1376 = vunpack.c.l.b16 %v1331
        %v1377 = vunpack.c.l.b16 %v1332
        %v1378 = vunpack.c.h.b16 %v1332
        %v1379 = vunpack.c.l.b16 %v1333
        %v1380 = vunpack.c.l.b16 %v1334
        %v1381 = vunpack.c.h.b16 %v1334
        %v1382 = vunpack.c.l.b16 %v1335
        %v1383 = vunpack.c.l.b16 %v1336
        %v1384 = vunpack.c.h.b16 %v1336
        %v1385 = vunpack.c.l.b16 %v1337
        %v1386 = vunpack.c.l.b16 %v1338
        %v1387 = vunpack.c.h.b16 %v1338
        %v1388 = vunpack.c.l.b16 %v1339
        %v1389 = vunpack.c.l.b16 %v1340
        %v1390 = vunpack.c.h.b16 %v1340
        %v1391 = vunpack.c.l.b16 %v1341
        %v1392 = vunpack.c.l.b16 %v1342
        %v1393 = vunpack.c.h.b16 %v1342
        %v1394 = vunpack.c.l.b16 %v1343
        %v1395 = vpack.c.b16 %v1374, %v1371
        %v1396 = vpack.c.b16 %v1375, %v1372
        %v1397 = vpack.c.b16 %v1376, %v1373
        %v1398 = vpack.c.b16 %v1380, %v1377
        %v1399 = vpack.c.b16 %v1381, %v1378
        %v1400 = vpack.c.b16 %v1382, %v1379
        %v1401 = vpack.c.b16 %v1386, %v1383
        %v1402 = vpack.c.b16 %v1387, %v1384
        %v1403 = vpack.c.b16 %v1388, %v1385
        %v1404 = vpack.c.b16 %v1392, %v1389
        %v1405 = vpack.c.b16 %v1393, %v1390
        %v1406 = vpack.c.b16 %v1394, %v1391
        %vm1419 = vcmask 523264
        %v1421 = vsel %vm1419, %v1344, 0
        %v1424 = vsel %vm1419, %v1345, 0
        %v1427 = vsel %vm1419, %v1346, 0
        %1429 = vmatpush.bf16.msra.mxu0 0
        %1430 = vmatpush.bf16.msra.mxu0 0
        %1431 = vmatpush.bf16.msra.mxu0 0
        %1432 = vmatpush.bf16.msra.mxu0 0
        %1433 = vmatpush.bf16.msra.mxu0 %v1404
        %1434 = vmatpush.bf16.msra.mxu0 %v1401
        %1435 = vmatpush.bf16.msra.mxu0 %v1398
        %1436 = vmatpush.bf16.msra.mxu0 %v1395
        %1437 = vmatmul.bf16.gmra.mxu0 %v1421
        %v1438 = vpop.f32.mrf.mxu0
        %v1439 = vadd.f32 %v1349, %v1438
        %v1440 = vpop.f32.mrf.mxu0
        %v1441 = vadd.f32 %v1349, %v1440
        %1442 = vmatmul.bf16.gmra.mxu0 %v1424
        %v1443 = vpop.f32.mrf.mxu0
        %v1444 = vadd.f32 %v1349, %v1443
        %v1445 = vpop.f32.mrf.mxu0
        %v1446 = vadd.f32 %v1349, %v1445
        %1447 = vmatmul.bf16.gmra.mxu0 %v1427
        %v1448 = vpop.f32.mrf.mxu0
        %v1449 = vadd.f32 %v1349, %v1448
        %v1450 = vpop.f32.mrf.mxu0
        %v1451 = vadd.f32 %v1349, %v1450
        %1452 = vdwg.mxu0
        %1453 = vmatpush.bf16.msra.mxu0 0
        %1454 = vmatpush.bf16.msra.mxu0 0
        %1455 = vmatpush.bf16.msra.mxu0 0
        %1456 = vmatpush.bf16.msra.mxu0 0
        %1457 = vmatpush.bf16.msra.mxu0 %v1405
        %1458 = vmatpush.bf16.msra.mxu0 %v1402
        %1459 = vmatpush.bf16.msra.mxu0 %v1399
        %1460 = vmatpush.bf16.msra.mxu0 %v1396
        %1461 = vmatmul.bf16.gmra.mxu0 %v1421
        %v1462 = vpop.f32.mrf.mxu0
        %v1463 = vadd.f32 %v1350, %v1462
        %v1464 = vpop.f32.mrf.mxu0
        %v1465 = vadd.f32 %v1350, %v1464
        %1466 = vmatmul.bf16.gmra.mxu0 %v1424
        %v1467 = vpop.f32.mrf.mxu0
        %v1468 = vadd.f32 %v1350, %v1467
        %v1469 = vpop.f32.mrf.mxu0
        %v1470 = vadd.f32 %v1350, %v1469
        %1471 = vmatmul.bf16.gmra.mxu0 %v1427
        %v1472 = vpop.f32.mrf.mxu0
        %v1473 = vadd.f32 %v1350, %v1472
        %v1474 = vpop.f32.mrf.mxu0
        %v1475 = vadd.f32 %v1350, %v1474
        %1476 = vdwg.mxu0
        %1477 = vmatpush.bf16.msra.mxu0 0
        %1478 = vmatpush.bf16.msra.mxu0 0
        %1479 = vmatpush.bf16.msra.mxu0 0
        %1480 = vmatpush.bf16.msra.mxu0 0
        %1481 = vmatpush.bf16.msra.mxu0 %v1406
        %1482 = vmatpush.bf16.msra.mxu0 %v1403
        %1483 = vmatpush.bf16.msra.mxu0 %v1400
        %1484 = vmatpush.bf16.msra.mxu0 %v1397
        %1485 = vmatmul.bf16.gmra.mxu0 %v1421
        %v1486 = vpop.f32.mrf.mxu0
        %v1487 = vadd.f32 %v1351, %v1486
        %v1488 = vpop.f32.mrf.mxu0
        %v1489 = vadd.f32 %v1351, %v1488
        %1490 = vmatmul.bf16.gmra.mxu0 %v1424
        %v1491 = vpop.f32.mrf.mxu0
        %v1492 = vadd.f32 %v1351, %v1491
        %v1493 = vpop.f32.mrf.mxu0
        %v1494 = vadd.f32 %v1351, %v1493
        %1495 = vmatmul.bf16.gmra.mxu0 %v1427
        %v1496 = vpop.f32.mrf.mxu0
        %v1497 = vadd.f32 %v1351, %v1496
        %v1498 = vpop.f32.mrf.mxu0
        %v1499 = vadd.f32 %v1351, %v1498
        %1500 = vdwg.mxu0
        %v1501 = vld [vmem:[%s12] sm:$0xff]
        %v1502 = vld [vmem:[%s12 + $0x8] sm:$0xf]
        %v1503 = vld [vmem:[%s12 + $0xc] sm:$0xff]
        %v1504 = vld [vmem:[%s12 + $0x14] sm:$0xf]
        %v1505 = vld [vmem:[%s12 + $0x18] sm:$0xff]
        %v1506 = vld [vmem:[%s12 + $0x20] sm:$0xf]
        %v1507 = vld [vmem:[%s12 + $0x24] sm:$0xff]
        %v1508 = vld [vmem:[%s12 + $0x2c] sm:$0xf]
        %v1509 = vld [vmem:[%s12 + $0x30] sm:$0xff]
        %v1510 = vld [vmem:[%s12 + $0x38] sm:$0xf]
        %v1511 = vld [vmem:[%s12 + $0x3c] sm:$0xff]
        %v1512 = vld [vmem:[%s12 + $0x44] sm:$0xf]
        %v1513 = vld [vmem:[%s12 + $0x48] sm:$0xff]
        %v1514 = vld [vmem:[%s12 + $0x50] sm:$0xf]
        %v1515 = vld [vmem:[%s12 + $0x54] sm:$0xff]
        %v1516 = vld [vmem:[%s12 + $0x5c] sm:$0xf]
        %v1517 = vld [vmem:[%s12 + $0x60] sm:$0xff]
        %v1518 = vld [vmem:[%s12 + $0x68] sm:$0xf]
        %v1519 = vld [vmem:[%s12 + $0x6c] sm:$0xff]
        %v1520 = vld [vmem:[%s12 + $0x74] sm:$0xf]
        %v1521 = vld [vmem:[%s12 + $0x78] sm:$0xff]
        %v1522 = vld [vmem:[%s12 + $0x80] sm:$0xf]
        %v1523 = vld [vmem:[%s12 + $0x84] sm:$0xff]
        %v1524 = vld [vmem:[%s12 + $0x8c] sm:$0xf]
        %v1525 = vld [vmem:[%s12 + $0x90] sm:$0xff]
        %v1526 = vld [vmem:[%s12 + $0x98] sm:$0xf]
        %v1527 = vld [vmem:[%s12 + $0x9c] sm:$0xff]
        %v1528 = vld [vmem:[%s12 + $0xa4] sm:$0xf]
        %v1529 = vld [vmem:[%s12 + $0xa8] sm:$0xff]
        %v1530 = vld [vmem:[%s12 + $0xb0] sm:$0xf]
        %v1531 = vld [vmem:[%s12 + $0xb4] sm:$0xff]
        %v1532 = vld [vmem:[%s12 + $0xbc] sm:$0xf]
        %v1533 = vld [vmem:[%s14] sm:$0x7]
        %v1535 = vperm.slane %v1533, 0
        %v1536 = vperm.slane %v1533, 1
        %v1537 = vperm.slane %v1533, 2
        %v1573 = vunpack.c.l.b16 %v1501
        %v1574 = vunpack.c.h.b16 %v1501
        %v1575 = vunpack.c.l.b16 %v1502
        %v1576 = vunpack.c.l.b16 %v1503
        %v1577 = vunpack.c.h.b16 %v1503
        %v1578 = vunpack.c.l.b16 %v1504
        %v1579 = vunpack.c.l.b16 %v1505
        %v1580 = vunpack.c.h.b16 %v1505
        %v1581 = vunpack.c.l.b16 %v1506
        %v1582 = vunpack.c.l.b16 %v1507
        %v1583 = vunpack.c.h.b16 %v1507
        %v1584 = vunpack.c.l.b16 %v1508
        %v1585 = vunpack.c.l.b16 %v1509
        %v1586 = vunpack.c.h.b16 %v1509
        %v1587 = vunpack.c.l.b16 %v1510
        %v1588 = vunpack.c.l.b16 %v1511
        %v1589 = vunpack.c.h.b16 %v1511
        %v1590 = vunpack.c.l.b16 %v1512
        %v1591 = vunpack.c.l.b16 %v1513
        %v1592 = vunpack.c.h.b16 %v1513
        %v1593 = vunpack.c.l.b16 %v1514
        %v1594 = vunpack.c.l.b16 %v1515
        %v1595 = vunpack.c.h.b16 %v1515
        %v1596 = vunpack.c.l.b16 %v1516
        %v1597 = vunpack.c.l.b16 %v1517
        %v1598 = vunpack.c.h.b16 %v1517
        %v1599 = vunpack.c.l.b16 %v1518
        %v1600 = vunpack.c.l.b16 %v1519
        %v1601 = vunpack.c.h.b16 %v1519
        %v1602 = vunpack.c.l.b16 %v1520
        %v1603 = vunpack.c.l.b16 %v1521
        %v1604 = vunpack.c.h.b16 %v1521
        %v1605 = vunpack.c.l.b16 %v1522
        %v1606 = vunpack.c.l.b16 %v1523
        %v1607 = vunpack.c.h.b16 %v1523
        %v1608 = vunpack.c.l.b16 %v1524
        %v1609 = vunpack.c.l.b16 %v1525
        %v1610 = vunpack.c.h.b16 %v1525
        %v1611 = vunpack.c.l.b16 %v1526
        %v1612 = vunpack.c.l.b16 %v1527
        %v1613 = vunpack.c.h.b16 %v1527
        %v1614 = vunpack.c.l.b16 %v1528
        %v1615 = vunpack.c.l.b16 %v1529
        %v1616 = vunpack.c.h.b16 %v1529
        %v1617 = vunpack.c.l.b16 %v1530
        %v1618 = vunpack.c.l.b16 %v1531
        %v1619 = vunpack.c.h.b16 %v1531
        %v1620 = vunpack.c.l.b16 %v1532
        %v1621 = vpack.c.b16 %v1576, %v1573
        %v1622 = vpack.c.b16 %v1577, %v1574
        %v1623 = vpack.c.b16 %v1578, %v1575
        %v1624 = vpack.c.b16 %v1582, %v1579
        %v1625 = vpack.c.b16 %v1583, %v1580
        %v1626 = vpack.c.b16 %v1584, %v1581
        %v1627 = vpack.c.b16 %v1588, %v1585
        %v1628 = vpack.c.b16 %v1589, %v1586
        %v1629 = vpack.c.b16 %v1590, %v1587
        %v1630 = vpack.c.b16 %v1594, %v1591
        %v1631 = vpack.c.b16 %v1595, %v1592
        %v1632 = vpack.c.b16 %v1596, %v1593
        %v1633 = vpack.c.b16 %v1600, %v1597
        %v1634 = vpack.c.b16 %v1601, %v1598
        %v1635 = vpack.c.b16 %v1602, %v1599
        %v1636 = vpack.c.b16 %v1606, %v1603
        %v1637 = vpack.c.b16 %v1607, %v1604
        %v1638 = vpack.c.b16 %v1608, %v1605
        %v1639 = vpack.c.b16 %v1612, %v1609
        %v1640 = vpack.c.b16 %v1613, %v1610
        %v1641 = vpack.c.b16 %v1614, %v1611
        %v1642 = vpack.c.b16 %v1618, %v1615
        %v1643 = vpack.c.b16 %v1619, %v1616
        %v1644 = vpack.c.b16 %v1620, %v1617
        %1669 = vmatpush.bf16.msra.mxu0 %v1642
        %1670 = vmatpush.bf16.msra.mxu0 %v1639
        %1671 = vmatpush.bf16.msra.mxu0 %v1636
        %1672 = vmatpush.bf16.msra.mxu0 %v1633
        %1673 = vmatpush.bf16.msra.mxu0 %v1630
        %1674 = vmatpush.bf16.msra.mxu0 %v1627
        %1675 = vmatpush.bf16.msra.mxu0 %v1624
        %1676 = vmatpush.bf16.msra.mxu0 %v1621
        %1677 = vmatmul.bf16.gmra.mxu0 0
        %v1678 = vpop.f32.mrf.mxu0
        %v1679 = vadd.f32 %v1535, %v1678
        %v1680 = vpop.f32.mrf.mxu0
        %1681 = vdwg.mxu0
        %1682 = vmatpush.bf16.msra.mxu0 %v1643
        %1683 = vmatpush.bf16.msra.mxu0 %v1640
        %1684 = vmatpush.bf16.msra.mxu0 %v1637
        %1685 = vmatpush.bf16.msra.mxu0 %v1634
        %1686 = vmatpush.bf16.msra.mxu0 %v1631
        %1687 = vmatpush.bf16.msra.mxu0 %v1628
        %1688 = vmatpush.bf16.msra.mxu0 %v1625
        %1689 = vmatpush.bf16.msra.mxu0 %v1622
        %1690 = vmatmul.bf16.gmra.mxu0 0
        %v1691 = vpop.f32.mrf.mxu0
        %v1692 = vadd.f32 %v1536, %v1691
        %v1693 = vpop.f32.mrf.mxu0
        %1694 = vdwg.mxu0
        %1695 = vmatpush.bf16.msra.mxu0 %v1644
        %1696 = vmatpush.bf16.msra.mxu0 %v1641
        %1697 = vmatpush.bf16.msra.mxu0 %v1638
        %1698 = vmatpush.bf16.msra.mxu0 %v1635
        %1699 = vmatpush.bf16.msra.mxu0 %v1632
        %1700 = vmatpush.bf16.msra.mxu0 %v1629
        %1701 = vmatpush.bf16.msra.mxu0 %v1626
        %1702 = vmatpush.bf16.msra.mxu0 %v1623
        %1703 = vmatmul.bf16.gmra.mxu0 0
        %v1704 = vpop.f32.mrf.mxu0
        %v1705 = vadd.f32 %v1537, %v1704
        %v1706 = vpop.f32.mrf.mxu0
        %1707 = vdwg.mxu0
        %v1708 = vadd.f32 %v1439, %v1679
        %v1709 = vadd.f32 %v1463, %v1692
        %v1710 = vxor.u32 %v1708, 2147483648
        %v1711 = vxor.u32 %v1709, 2147483648
        %v1712 = vmul.f32 %v1710, 1.442695
        %v1713 = vpow.pop %v1712
        %v1714 = vmul.f32 %v1711, 1.442695
        %v1715 = vpow.pop %v1714
        %v1716 = vadd.f32 %v1713, 1.0
        %v1717 = vadd.f32 %v1715, 1.0
        %v1718 = vrcp.pop %v1716
        %v1719 = vmul.f32 %v1716, %v1718
        %v1720 = vsub.f32 1.0, %v1719
        %v1721 = vmul.f32 %v1718, %v1720
        %v1722 = vadd.f32 %v1718, %v1721
        %vm1723 = vweird.f32 %v1716
        %vm1724 = vweird.f32 %v1718
        %vm1725 = vmor %vm1723, %vm1724
        %v1726 = vsel %vm1725, %v1718, %v1722
        %v1727 = vand.u32 2147483647, %v1716
        %vm1728 = vcmp.eq.f32.partialorder %v1727, 8.507059e+37
        %v1729 = vand.u32 %v1716, 2147483648
        %v1730 = vor.u32 1.1754944e-38, %v1729
        %v1731 = vsel %vm1728, %v1730, %v1726
        %v1732 = vmul.f32 1.0, %v1731
        %v1733 = vrcp.pop %v1717
        %v1734 = vmul.f32 %v1717, %v1733
        %v1735 = vsub.f32 1.0, %v1734
        %v1736 = vmul.f32 %v1733, %v1735
        %v1737 = vadd.f32 %v1733, %v1736
        %vm1738 = vweird.f32 %v1717
        %vm1739 = vweird.f32 %v1733
        %vm1740 = vmor %vm1738, %vm1739
        %v1741 = vsel %vm1740, %v1733, %v1737
        %v1742 = vand.u32 2147483647, %v1717
        %vm1743 = vcmp.eq.f32.partialorder %v1742, 8.507059e+37
        %v1744 = vand.u32 %v1717, 2147483648
        %v1745 = vor.u32 1.1754944e-38, %v1744
        %v1746 = vsel %vm1743, %v1745, %v1741
        %v1747 = vmul.f32 1.0, %v1746
        %v1748 = vmul.f32 %v1732, %v1705
        %v1749 = vadd.f32 %v1487, %v1748
        %v1750 = vtanh.pop %v1749
        %v1751 = vsub.f32 1.0, %v1747
        %v1752 = vmul.f32 %v1751, %v1750
        %v1753 = vmul.f32 %v1747, 0.0
        %v1754 = vadd.f32 %v1752, %v1753
        %v1755 = vpack.c.bf16 %v1754, %v1754
        %1756 = vmatpush.bf16.msra.mxu0 %v1642
        %1757 = vmatpush.bf16.msra.mxu0 %v1639
        %1758 = vmatpush.bf16.msra.mxu0 %v1636
        %1759 = vmatpush.bf16.msra.mxu0 %v1633
        %1760 = vmatpush.bf16.msra.mxu0 %v1630
        %1761 = vmatpush.bf16.msra.mxu0 %v1627
        %1762 = vmatpush.bf16.msra.mxu0 %v1624
        %1763 = vmatpush.bf16.msra.mxu0 %v1621
        %1764 = vmatmul.bf16.gmra.mxu0 %v1755
        %v1765 = vpop.f32.mrf.mxu0
        %v1766 = vadd.f32 %v1535, %v1765
        %v1767 = vpop.f32.mrf.mxu0
        %1768 = vdwg.mxu0
        %1769 = vmatpush.bf16.msra.mxu0 %v1643
        %1770 = vmatpush.bf16.msra.mxu0 %v1640
        %1771 = vmatpush.bf16.msra.mxu0 %v1637
        %1772 = vmatpush.bf16.msra.mxu0 %v1634
        %1773 = vmatpush.bf16.msra.mxu0 %v1631
        %1774 = vmatpush.bf16.msra.mxu0 %v1628
        %1775 = vmatpush.bf16.msra.mxu0 %v1625
        %1776 = vmatpush.bf16.msra.mxu0 %v1622
        %1777 = vmatmul.bf16.gmra.mxu0 %v1755
        %v1778 = vpop.f32.mrf.mxu0
        %v1779 = vadd.f32 %v1536, %v1778
        %v1780 = vpop.f32.mrf.mxu0
        %1781 = vdwg.mxu0
        %1782 = vmatpush.bf16.msra.mxu0 %v1644
        %1783 = vmatpush.bf16.msra.mxu0 %v1641
        %1784 = vmatpush.bf16.msra.mxu0 %v1638
        %1785 = vmatpush.bf16.msra.mxu0 %v1635
        %1786 = vmatpush.bf16.msra.mxu0 %v1632
        %1787 = vmatpush.bf16.msra.mxu0 %v1629
        %1788 = vmatpush.bf16.msra.mxu0 %v1626
        %1789 = vmatpush.bf16.msra.mxu0 %v1623
        %1790 = vmatmul.bf16.gmra.mxu0 %v1755
        %v1791 = vpop.f32.mrf.mxu0
        %v1792 = vadd.f32 %v1537, %v1791
        %v1793 = vpop.f32.mrf.mxu0
        %1794 = vdwg.mxu0
        %v1795 = vadd.f32 %v1441, %v1766
        %v1796 = vadd.f32 %v1465, %v1779
        %v1797 = vxor.u32 %v1795, 2147483648
        %v1798 = vxor.u32 %v1796, 2147483648
        %v1799 = vmul.f32 %v1797, 1.442695
        %v1800 = vpow.pop %v1799
        %v1801 = vmul.f32 %v1798, 1.442695
        %v1802 = vpow.pop %v1801
        %v1803 = vadd.f32 %v1800, 1.0
        %v1804 = vadd.f32 %v1802, 1.0
        %v1805 = vrcp.pop %v1803
        %v1806 = vmul.f32 %v1803, %v1805
        %v1807 = vsub.f32 1.0, %v1806
        %v1808 = vmul.f32 %v1805, %v1807
        %v1809 = vadd.f32 %v1805, %v1808
        %vm1810 = vweird.f32 %v1803
        %vm1811 = vweird.f32 %v1805
        %vm1812 = vmor %vm1810, %vm1811
        %v1813 = vsel %vm1812, %v1805, %v1809
        %v1814 = vand.u32 2147483647, %v1803
        %vm1815 = vcmp.eq.f32.partialorder %v1814, 8.507059e+37
        %v1816 = vand.u32 %v1803, 2147483648
        %v1817 = vor.u32 1.1754944e-38, %v1816
        %v1818 = vsel %vm1815, %v1817, %v1813
        %v1819 = vmul.f32 1.0, %v1818
        %v1820 = vrcp.pop %v1804
        %v1821 = vmul.f32 %v1804, %v1820
        %v1822 = vsub.f32 1.0, %v1821
        %v1823 = vmul.f32 %v1820, %v1822
        %v1824 = vadd.f32 %v1820, %v1823
        %vm1825 = vweird.f32 %v1804
        %vm1826 = vweird.f32 %v1820
        %vm1827 = vmor %vm1825, %vm1826
        %v1828 = vsel %vm1827, %v1820, %v1824
        %v1829 = vand.u32 2147483647, %v1804
        %vm1830 = vcmp.eq.f32.partialorder %v1829, 8.507059e+37
        %v1831 = vand.u32 %v1804, 2147483648
        %v1832 = vor.u32 1.1754944e-38, %v1831
        %v1833 = vsel %vm1830, %v1832, %v1828
        %v1834 = vmul.f32 1.0, %v1833
        %v1835 = vmul.f32 %v1819, %v1792
        %v1836 = vadd.f32 %v1489, %v1835
        %v1837 = vtanh.pop %v1836
        %v1838 = vsub.f32 1.0, %v1834
        %v1839 = vmul.f32 %v1838, %v1837
        %v1840 = vmul.f32 %v1834, %v1754
        %v1841 = vadd.f32 %v1839, %v1840
        %v1842 = vpack.c.bf16 %v1841, %v1841
        %1843 = vmatpush.bf16.msra.mxu0 %v1642
        %1844 = vmatpush.bf16.msra.mxu0 %v1639
        %1845 = vmatpush.bf16.msra.mxu0 %v1636
        %1846 = vmatpush.bf16.msra.mxu0 %v1633
        %1847 = vmatpush.bf16.msra.mxu0 %v1630
        %1848 = vmatpush.bf16.msra.mxu0 %v1627
        %1849 = vmatpush.bf16.msra.mxu0 %v1624
        %1850 = vmatpush.bf16.msra.mxu0 %v1621
        %1851 = vmatmul.bf16.gmra.mxu0 %v1842
        %v1852 = vpop.f32.mrf.mxu0
        %v1853 = vadd.f32 %v1535, %v1852
        %v1854 = vpop.f32.mrf.mxu0
        %1855 = vdwg.mxu0
        %1856 = vmatpush.bf16.msra.mxu0 %v1643
        %1857 = vmatpush.bf16.msra.mxu0 %v1640
        %1858 = vmatpush.bf16.msra.mxu0 %v1637
        %1859 = vmatpush.bf16.msra.mxu0 %v1634
        %1860 = vmatpush.bf16.msra.mxu0 %v1631
        %1861 = vmatpush.bf16.msra.mxu0 %v1628
        %1862 = vmatpush.bf16.msra.mxu0 %v1625
        %1863 = vmatpush.bf16.msra.mxu0 %v1622
        %1864 = vmatmul.bf16.gmra.mxu0 %v1842
        %v1865 = vpop.f32.mrf.mxu0
        %v1866 = vadd.f32 %v1536, %v1865
        %v1867 = vpop.f32.mrf.mxu0
        %1868 = vdwg.mxu0
        %1869 = vmatpush.bf16.msra.mxu0 %v1644
        %1870 = vmatpush.bf16.msra.mxu0 %v1641
        %1871 = vmatpush.bf16.msra.mxu0 %v1638
        %1872 = vmatpush.bf16.msra.mxu0 %v1635
        %1873 = vmatpush.bf16.msra.mxu0 %v1632
        %1874 = vmatpush.bf16.msra.mxu0 %v1629
        %1875 = vmatpush.bf16.msra.mxu0 %v1626
        %1876 = vmatpush.bf16.msra.mxu0 %v1623
        %1877 = vmatmul.bf16.gmra.mxu0 %v1842
        %v1878 = vpop.f32.mrf.mxu0
        %v1879 = vadd.f32 %v1537, %v1878
        %v1880 = vpop.f32.mrf.mxu0
        %1881 = vdwg.mxu0
        %v1882 = vadd.f32 %v1444, %v1853
        %v1883 = vadd.f32 %v1468, %v1866
        %v1884 = vxor.u32 %v1882, 2147483648
        %v1885 = vxor.u32 %v1883, 2147483648
        %v1886 = vmul.f32 %v1884, 1.442695
        %v1887 = vpow.pop %v1886
        %v1888 = vmul.f32 %v1885, 1.442695
        %v1889 = vpow.pop %v1888
        %v1890 = vadd.f32 %v1887, 1.0
        %v1891 = vadd.f32 %v1889, 1.0
        %v1892 = vrcp.pop %v1890
        %v1893 = vmul.f32 %v1890, %v1892
        %v1894 = vsub.f32 1.0, %v1893
        %v1895 = vmul.f32 %v1892, %v1894
        %v1896 = vadd.f32 %v1892, %v1895
        %vm1897 = vweird.f32 %v1890
        %vm1898 = vweird.f32 %v1892
        %vm1899 = vmor %vm1897, %vm1898
        %v1900 = vsel %vm1899, %v1892, %v1896
        %v1901 = vand.u32 2147483647, %v1890
        %vm1902 = vcmp.eq.f32.partialorder %v1901, 8.507059e+37
        %v1903 = vand.u32 %v1890, 2147483648
        %v1904 = vor.u32 1.1754944e-38, %v1903
        %v1905 = vsel %vm1902, %v1904, %v1900
        %v1906 = vmul.f32 1.0, %v1905
        %v1907 = vrcp.pop %v1891
        %v1908 = vmul.f32 %v1891, %v1907
        %v1909 = vsub.f32 1.0, %v1908
        %v1910 = vmul.f32 %v1907, %v1909
        %v1911 = vadd.f32 %v1907, %v1910
        %vm1912 = vweird.f32 %v1891
        %vm1913 = vweird.f32 %v1907
        %vm1914 = vmor %vm1912, %vm1913
        %v1915 = vsel %vm1914, %v1907, %v1911
        %v1916 = vand.u32 2147483647, %v1891
        %vm1917 = vcmp.eq.f32.partialorder %v1916, 8.507059e+37
        %v1918 = vand.u32 %v1891, 2147483648
        %v1919 = vor.u32 1.1754944e-38, %v1918
        %v1920 = vsel %vm1917, %v1919, %v1915
        %v1921 = vmul.f32 1.0, %v1920
        %v1922 = vmul.f32 %v1906, %v1879
        %v1923 = vadd.f32 %v1492, %v1922
        %v1924 = vtanh.pop %v1923
        %v1925 = vsub.f32 1.0, %v1921
        %v1926 = vmul.f32 %v1925, %v1924
        %v1927 = vmul.f32 %v1921, %v1841
        %v1928 = vadd.f32 %v1926, %v1927
        %v1929 = vpack.c.bf16 %v1928, %v1928
        %1930 = vmatpush.bf16.msra.mxu0 %v1642
        %1931 = vmatpush.bf16.msra.mxu0 %v1639
        %1932 = vmatpush.bf16.msra.mxu0 %v1636
        %1933 = vmatpush.bf16.msra.mxu0 %v1633
        %1934 = vmatpush.bf16.msra.mxu0 %v1630
        %1935 = vmatpush.bf16.msra.mxu0 %v1627
        %1936 = vmatpush.bf16.msra.mxu0 %v1624
        %1937 = vmatpush.bf16.msra.mxu0 %v1621
        %1938 = vmatmul.bf16.gmra.mxu0 %v1929
        %v1939 = vpop.f32.mrf.mxu0
        %v1940 = vadd.f32 %v1535, %v1939
        %v1941 = vpop.f32.mrf.mxu0
        %1942 = vdwg.mxu0
        %1943 = vmatpush.bf16.msra.mxu0 %v1643
        %1944 = vmatpush.bf16.msra.mxu0 %v1640
        %1945 = vmatpush.bf16.msra.mxu0 %v1637
        %1946 = vmatpush.bf16.msra.mxu0 %v1634
        %1947 = vmatpush.bf16.msra.mxu0 %v1631
        %1948 = vmatpush.bf16.msra.mxu0 %v1628
        %1949 = vmatpush.bf16.msra.mxu0 %v1625
        %1950 = vmatpush.bf16.msra.mxu0 %v1622
        %1951 = vmatmul.bf16.gmra.mxu0 %v1929
        %v1952 = vpop.f32.mrf.mxu0
        %v1953 = vadd.f32 %v1536, %v1952
        %v1954 = vpop.f32.mrf.mxu0
        %1955 = vdwg.mxu0
        %1956 = vmatpush.bf16.msra.mxu0 %v1644
        %1957 = vmatpush.bf16.msra.mxu0 %v1641
        %1958 = vmatpush.bf16.msra.mxu0 %v1638
        %1959 = vmatpush.bf16.msra.mxu0 %v1635
        %1960 = vmatpush.bf16.msra.mxu0 %v1632
        %1961 = vmatpush.bf16.msra.mxu0 %v1629
        %1962 = vmatpush.bf16.msra.mxu0 %v1626
        %1963 = vmatpush.bf16.msra.mxu0 %v1623
        %1964 = vmatmul.bf16.gmra.mxu0 %v1929
        %v1965 = vpop.f32.mrf.mxu0
        %v1966 = vadd.f32 %v1537, %v1965
        %v1967 = vpop.f32.mrf.mxu0
        %1968 = vdwg.mxu0
        %v1969 = vadd.f32 %v1446, %v1940
        %v1970 = vadd.f32 %v1470, %v1953
        %v1971 = vxor.u32 %v1969, 2147483648
        %v1972 = vxor.u32 %v1970, 2147483648
        %v1973 = vmul.f32 %v1971, 1.442695
        %v1974 = vpow.pop %v1973
        %v1975 = vmul.f32 %v1972, 1.442695
        %v1976 = vpow.pop %v1975
        %v1977 = vadd.f32 %v1974, 1.0
        %v1978 = vadd.f32 %v1976, 1.0
        %v1979 = vrcp.pop %v1977
        %v1980 = vmul.f32 %v1977, %v1979
        %v1981 = vsub.f32 1.0, %v1980
        %v1982 = vmul.f32 %v1979, %v1981
        %v1983 = vadd.f32 %v1979, %v1982
        %vm1984 = vweird.f32 %v1977
        %vm1985 = vweird.f32 %v1979
        %vm1986 = vmor %vm1984, %vm1985
        %v1987 = vsel %vm1986, %v1979, %v1983
        %v1988 = vand.u32 2147483647, %v1977
        %vm1989 = vcmp.eq.f32.partialorder %v1988, 8.507059e+37
        %v1990 = vand.u32 %v1977, 2147483648
        %v1991 = vor.u32 1.1754944e-38, %v1990
        %v1992 = vsel %vm1989, %v1991, %v1987
        %v1993 = vmul.f32 1.0, %v1992
        %v1994 = vrcp.pop %v1978
        %v1995 = vmul.f32 %v1978, %v1994
        %v1996 = vsub.f32 1.0, %v1995
        %v1997 = vmul.f32 %v1994, %v1996
        %v1998 = vadd.f32 %v1994, %v1997
        %vm1999 = vweird.f32 %v1978
        %vm2000 = vweird.f32 %v1994
        %vm2001 = vmor %vm1999, %vm2000
        %v2002 = vsel %vm2001, %v1994, %v1998
        %v2003 = vand.u32 2147483647, %v1978
        %vm2004 = vcmp.eq.f32.partialorder %v2003, 8.507059e+37
        %v2005 = vand.u32 %v1978, 2147483648
        %v2006 = vor.u32 1.1754944e-38, %v2005
        %v2007 = vsel %vm2004, %v2006, %v2002
        %v2008 = vmul.f32 1.0, %v2007
        %v2009 = vmul.f32 %v1993, %v1966
        %v2010 = vadd.f32 %v1494, %v2009
        %v2011 = vtanh.pop %v2010
        %v2012 = vsub.f32 1.0, %v2008
        %v2013 = vmul.f32 %v2012, %v2011
        %v2014 = vmul.f32 %v2008, %v1928
        %v2015 = vadd.f32 %v2013, %v2014
        %v2016 = vpack.c.bf16 %v2015, %v2015
        %2017 = vmatpush.bf16.msra.mxu0 %v1642
        %2018 = vmatpush.bf16.msra.mxu0 %v1639
        %2019 = vmatpush.bf16.msra.mxu0 %v1636
        %2020 = vmatpush.bf16.msra.mxu0 %v1633
        %2021 = vmatpush.bf16.msra.mxu0 %v1630
        %2022 = vmatpush.bf16.msra.mxu0 %v1627
        %2023 = vmatpush.bf16.msra.mxu0 %v1624
        %2024 = vmatpush.bf16.msra.mxu0 %v1621
        %2025 = vmatmul.bf16.gmra.mxu0 %v2016
        %v2026 = vpop.f32.mrf.mxu0
        %v2027 = vadd.f32 %v1535, %v2026
        %v2028 = vpop.f32.mrf.mxu0
        %2029 = vdwg.mxu0
        %2030 = vmatpush.bf16.msra.mxu0 %v1643
        %2031 = vmatpush.bf16.msra.mxu0 %v1640
        %2032 = vmatpush.bf16.msra.mxu0 %v1637
        %2033 = vmatpush.bf16.msra.mxu0 %v1634
        %2034 = vmatpush.bf16.msra.mxu0 %v1631
        %2035 = vmatpush.bf16.msra.mxu0 %v1628
        %2036 = vmatpush.bf16.msra.mxu0 %v1625
        %2037 = vmatpush.bf16.msra.mxu0 %v1622
        %2038 = vmatmul.bf16.gmra.mxu0 %v2016
        %v2039 = vpop.f32.mrf.mxu0
        %v2040 = vadd.f32 %v1536, %v2039
        %v2041 = vpop.f32.mrf.mxu0
        %2042 = vdwg.mxu0
        %2043 = vmatpush.bf16.msra.mxu0 %v1644
        %2044 = vmatpush.bf16.msra.mxu0 %v1641
        %2045 = vmatpush.bf16.msra.mxu0 %v1638
        %2046 = vmatpush.bf16.msra.mxu0 %v1635
        %2047 = vmatpush.bf16.msra.mxu0 %v1632
        %2048 = vmatpush.bf16.msra.mxu0 %v1629
        %2049 = vmatpush.bf16.msra.mxu0 %v1626
        %2050 = vmatpush.bf16.msra.mxu0 %v1623
        %2051 = vmatmul.bf16.gmra.mxu0 %v2016
        %v2052 = vpop.f32.mrf.mxu0
        %v2053 = vadd.f32 %v1537, %v2052
        %v2054 = vpop.f32.mrf.mxu0
        %2055 = vdwg.mxu0
        %v2056 = vadd.f32 %v1449, %v2027
        %v2057 = vadd.f32 %v1473, %v2040
        %v2058 = vxor.u32 %v2056, 2147483648
        %v2059 = vxor.u32 %v2057, 2147483648
        %v2060 = vmul.f32 %v2058, 1.442695
        %v2061 = vpow.pop %v2060
        %v2062 = vmul.f32 %v2059, 1.442695
        %v2063 = vpow.pop %v2062
        %v2064 = vadd.f32 %v2061, 1.0
        %v2065 = vadd.f32 %v2063, 1.0
        %v2066 = vrcp.pop %v2064
        %v2067 = vmul.f32 %v2064, %v2066
        %v2068 = vsub.f32 1.0, %v2067
        %v2069 = vmul.f32 %v2066, %v2068
        %v2070 = vadd.f32 %v2066, %v2069
        %vm2071 = vweird.f32 %v2064
        %vm2072 = vweird.f32 %v2066
        %vm2073 = vmor %vm2071, %vm2072
        %v2074 = vsel %vm2073, %v2066, %v2070
        %v2075 = vand.u32 2147483647, %v2064
        %vm2076 = vcmp.eq.f32.partialorder %v2075, 8.507059e+37
        %v2077 = vand.u32 %v2064, 2147483648
        %v2078 = vor.u32 1.1754944e-38, %v2077
        %v2079 = vsel %vm2076, %v2078, %v2074
        %v2080 = vmul.f32 1.0, %v2079
        %v2081 = vrcp.pop %v2065
        %v2082 = vmul.f32 %v2065, %v2081
        %v2083 = vsub.f32 1.0, %v2082
        %v2084 = vmul.f32 %v2081, %v2083
        %v2085 = vadd.f32 %v2081, %v2084
        %vm2086 = vweird.f32 %v2065
        %vm2087 = vweird.f32 %v2081
        %vm2088 = vmor %vm2086, %vm2087
        %v2089 = vsel %vm2088, %v2081, %v2085
        %v2090 = vand.u32 2147483647, %v2065
        %vm2091 = vcmp.eq.f32.partialorder %v2090, 8.507059e+37
        %v2092 = vand.u32 %v2065, 2147483648
        %v2093 = vor.u32 1.1754944e-38, %v2092
        %v2094 = vsel %vm2091, %v2093, %v2089
        %v2095 = vmul.f32 1.0, %v2094
        %v2096 = vmul.f32 %v2080, %v2053
        %v2097 = vadd.f32 %v1497, %v2096
        %v2098 = vtanh.pop %v2097
        %v2099 = vsub.f32 1.0, %v2095
        %v2100 = vmul.f32 %v2099, %v2098
        %v2101 = vmul.f32 %v2095, %v2015
        %v2102 = vadd.f32 %v2100, %v2101
        %v2103 = vpack.c.bf16 %v2102, %v2102
        %2104 = vmatpush.bf16.msra.mxu0 %v1642
        %2105 = vmatpush.bf16.msra.mxu0 %v1639
        %2106 = vmatpush.bf16.msra.mxu0 %v1636
        %2107 = vmatpush.bf16.msra.mxu0 %v1633
        %2108 = vmatpush.bf16.msra.mxu0 %v1630
        %2109 = vmatpush.bf16.msra.mxu0 %v1627
        %2110 = vmatpush.bf16.msra.mxu0 %v1624
        %2111 = vmatpush.bf16.msra.mxu0 %v1621
        %2112 = vmatmul.bf16.gmra.mxu0 %v2103
        %v2113 = vpop.f32.mrf.mxu0
        %v2114 = vadd.f32 %v1535, %v2113
        %v2115 = vpop.f32.mrf.mxu0
        %2116 = vdwg.mxu0
        %2117 = vmatpush.bf16.msra.mxu0 %v1643
        %2118 = vmatpush.bf16.msra.mxu0 %v1640
        %2119 = vmatpush.bf16.msra.mxu0 %v1637
        %2120 = vmatpush.bf16.msra.mxu0 %v1634
        %2121 = vmatpush.bf16.msra.mxu0 %v1631
        %2122 = vmatpush.bf16.msra.mxu0 %v1628
        %2123 = vmatpush.bf16.msra.mxu0 %v1625
        %2124 = vmatpush.bf16.msra.mxu0 %v1622
        %2125 = vmatmul.bf16.gmra.mxu0 %v2103
        %v2126 = vpop.f32.mrf.mxu0
        %v2127 = vadd.f32 %v1536, %v2126
        %v2128 = vpop.f32.mrf.mxu0
        %2129 = vdwg.mxu0
        %2130 = vmatpush.bf16.msra.mxu0 %v1644
        %2131 = vmatpush.bf16.msra.mxu0 %v1641
        %2132 = vmatpush.bf16.msra.mxu0 %v1638
        %2133 = vmatpush.bf16.msra.mxu0 %v1635
        %2134 = vmatpush.bf16.msra.mxu0 %v1632
        %2135 = vmatpush.bf16.msra.mxu0 %v1629
        %2136 = vmatpush.bf16.msra.mxu0 %v1626
        %2137 = vmatpush.bf16.msra.mxu0 %v1623
        %2138 = vmatmul.bf16.gmra.mxu0 %v2103
        %v2139 = vpop.f32.mrf.mxu0
        %v2140 = vadd.f32 %v1537, %v2139
        %v2141 = vpop.f32.mrf.mxu0
        %2142 = vdwg.mxu0
        %v2143 = vadd.f32 %v1451, %v2114
        %v2144 = vadd.f32 %v1475, %v2127
        %v2145 = vxor.u32 %v2143, 2147483648
        %v2146 = vxor.u32 %v2144, 2147483648
        %v2147 = vmul.f32 %v2145, 1.442695
        %v2148 = vpow.pop %v2147
        %v2149 = vmul.f32 %v2146, 1.442695
        %v2150 = vpow.pop %v2149
        %v2151 = vadd.f32 %v2148, 1.0
        %v2152 = vadd.f32 %v2150, 1.0
        %v2153 = vrcp.pop %v2151
        %v2154 = vmul.f32 %v2151, %v2153
        %v2155 = vsub.f32 1.0, %v2154
        %v2156 = vmul.f32 %v2153, %v2155
        %v2157 = vadd.f32 %v2153, %v2156
        %vm2158 = vweird.f32 %v2151
        %vm2159 = vweird.f32 %v2153
        %vm2160 = vmor %vm2158, %vm2159
        %v2161 = vsel %vm2160, %v2153, %v2157
        %v2162 = vand.u32 2147483647, %v2151
        %vm2163 = vcmp.eq.f32.partialorder %v2162, 8.507059e+37
        %v2164 = vand.u32 %v2151, 2147483648
        %v2165 = vor.u32 1.1754944e-38, %v2164
        %v2166 = vsel %vm2163, %v2165, %v2161
        %v2167 = vmul.f32 1.0, %v2166
        %v2168 = vrcp.pop %v2152
        %v2169 = vmul.f32 %v2152, %v2168
        %v2170 = vsub.f32 1.0, %v2169
        %v2171 = vmul.f32 %v2168, %v2170
        %v2172 = vadd.f32 %v2168, %v2171
        %vm2173 = vweird.f32 %v2152
        %vm2174 = vweird.f32 %v2168
        %vm2175 = vmor %vm2173, %vm2174
        %v2176 = vsel %vm2175, %v2168, %v2172
        %v2177 = vand.u32 2147483647, %v2152
        %vm2178 = vcmp.eq.f32.partialorder %v2177, 8.507059e+37
        %v2179 = vand.u32 %v2152, 2147483648
        %v2180 = vor.u32 1.1754944e-38, %v2179
        %v2181 = vsel %vm2178, %v2180, %v2176
        %v2182 = vmul.f32 1.0, %v2181
        %v2183 = vmul.f32 %v2167, %v2140
        %v2184 = vadd.f32 %v1499, %v2183
        %v2185 = vtanh.pop %v2184
        %v2186 = vsub.f32 1.0, %v2182
        %v2187 = vmul.f32 %v2186, %v2185
        %v2188 = vmul.f32 %v2182, %v2102
        %v2189 = vadd.f32 %v2187, %v2188
        %2191 = vrot.lane.b32.xlu0 %v2189, 32
        %v2192 = vpop.permute.xlu0 %2191
        %2193 = vrot.lane.b32.xlu0 %v2189, 96
        %v2194 = vpop.permute.xlu0 %2193
        %2195 = vrot.lane.b32.xlu0 %v2189, 64
        %v2196 = vpop.permute.xlu0 %2195
        %2198 = vrot.lane.b32.xlu0 %v1321, 64
        %v2199 = vpop.permute.xlu0 %2198
        %2200 = vrot.lane.b32.xlu0 %v1321, 96
        %v2201 = vpop.permute.xlu0 %2200
        %2202 = vrot.lane.b32.xlu0 %v2192, 96
        %v2203 = vpop.permute.xlu0 %2202
        %2204 = vrot.lane.b32.xlu0 %v2194, 96
        %v2205 = vpop.permute.xlu0 %2204
        %2206 = vrot.lane.b32.xlu0 %v2196, 96
        %v2207 = vpop.permute.xlu0 %2206
        %2213 = vrot.lane.b32.xlu0 %v2192, 64
        %v2214 = vpop.permute.xlu0 %2213
        %2215 = vrot.lane.b32.xlu0 %v2196, 64
        %v2216 = vpop.permute.xlu0 %2215
        %2217 = vrot.lane.b32.xlu0 %v2194, 64
        %v2218 = vpop.permute.xlu0 %2217
        %2219 = vrot.lane.b32.xlu0 %v2199, 64
        %v2220 = vpop.permute.xlu0 %2219
        %v2226 = vsel %vm957, %v2201, %v2196
        %v2227 = vsel %vm957, %v2203, %v2214
        %v2228 = vsel %vm957, %v2194, %v2216
        %v2229 = vsel %vm957, %v2205, %v2218
        %v2230 = vsel %vm957, %v2207, %v2220
        %v2231 = vld [vmem:[%s15] sm:$0xff]
        %v2232 = vld [vmem:[%s15 + $0x8] sm:$0xff]
        %v2233 = vld [vmem:[%s15 + $0x10] sm:$0xff]
        %v2234 = vld [vmem:[%s15 + $0x18] sm:$0xff]
        %v2235 = vld [vmem:[%s15 + $0x20] sm:$0xff]
        %v2236 = vld [vmem:[%s15 + $0x28] sm:$0xff]
        %v2237 = vld [vmem:[%s15 + $0x30] sm:$0xff]
        %v2238 = vld [vmem:[%s15 + $0x38] sm:$0xff]
        %v2239 = vpack.c.bf16 %v2227, %v2226
        %v2240 = vpack.c.bf16 %v2229, %v2228
        %v2241 = vpack.c.bf16 %v2230, %v2230
        %v2242 = vld [vmem:[%s17] sm:$0x3]
        %v2244 = vperm.slane %v2242, 0
        %v2245 = vperm.slane %v2242, 1
        %v2256 = vunpack.c.l.b16 %v2231
        %v2257 = vunpack.c.h.b16 %v2231
        %v2258 = vunpack.c.l.b16 %v2232
        %v2259 = vunpack.c.h.b16 %v2232
        %v2260 = vunpack.c.l.b16 %v2233
        %v2261 = vunpack.c.h.b16 %v2233
        %v2262 = vunpack.c.l.b16 %v2234
        %v2263 = vunpack.c.h.b16 %v2234
        %v2264 = vunpack.c.l.b16 %v2235
        %v2265 = vunpack.c.h.b16 %v2235
        %v2266 = vunpack.c.l.b16 %v2236
        %v2267 = vunpack.c.h.b16 %v2236
        %v2268 = vunpack.c.l.b16 %v2237
        %v2269 = vunpack.c.h.b16 %v2237
        %v2270 = vunpack.c.l.b16 %v2238
        %v2271 = vunpack.c.h.b16 %v2238
        %v2272 = vpack.c.b16 %v2258, %v2256
        %v2273 = vpack.c.b16 %v2259, %v2257
        %v2274 = vpack.c.b16 %v2262, %v2260
        %v2275 = vpack.c.b16 %v2263, %v2261
        %v2276 = vpack.c.b16 %v2266, %v2264
        %v2277 = vpack.c.b16 %v2267, %v2265
        %v2278 = vpack.c.b16 %v2270, %v2268
        %v2279 = vpack.c.b16 %v2271, %v2269
        %v2289 = vsel %vm1419, %v2239, 0
        %v2292 = vsel %vm1419, %v2240, 0
        %v2295 = vsel %vm1419, %v2241, 0
        %2297 = vmatpush.bf16.msra.mxu0 0
        %2298 = vmatpush.bf16.msra.mxu0 0
        %2299 = vmatpush.bf16.msra.mxu0 0
        %2300 = vmatpush.bf16.msra.mxu0 0
        %2301 = vmatpush.bf16.msra.mxu0 %v2278
        %2302 = vmatpush.bf16.msra.mxu0 %v2276
        %2303 = vmatpush.bf16.msra.mxu0 %v2274
        %2304 = vmatpush.bf16.msra.mxu0 %v2272
        %2305 = vmatmul.bf16.gmra.mxu0 %v2289
        %v2306 = vpop.f32.mrf.mxu0
        %v2307 = vadd.f32 %v2244, %v2306
        %v2308 = vpop.f32.mrf.mxu0
        %v2309 = vadd.f32 %v2244, %v2308
        %2310 = vmatmul.bf16.gmra.mxu0 %v2292
        %v2311 = vpop.f32.mrf.mxu0
        %v2312 = vadd.f32 %v2244, %v2311
        %v2313 = vpop.f32.mrf.mxu0
        %v2314 = vadd.f32 %v2244, %v2313
        %2315 = vmatmul.bf16.gmra.mxu0 %v2295
        %v2316 = vpop.f32.mrf.mxu0
        %v2317 = vadd.f32 %v2244, %v2316
        %v2318 = vpop.f32.mrf.mxu0
        %2319 = vdwg.mxu0
        %2320 = vmatpush.bf16.msra.mxu0 0
        %2321 = vmatpush.bf16.msra.mxu0 0
        %2322 = vmatpush.bf16.msra.mxu0 0
        %2323 = vmatpush.bf16.msra.mxu0 0
        %2324 = vmatpush.bf16.msra.mxu0 %v2279
        %2325 = vmatpush.bf16.msra.mxu0 %v2277
        %2326 = vmatpush.bf16.msra.mxu0 %v2275
        %2327 = vmatpush.bf16.msra.mxu0 %v2273
        %2328 = vmatmul.bf16.gmra.mxu0 %v2289
        %v2329 = vpop.f32.mrf.mxu0
        %v2330 = vadd.f32 %v2245, %v2329
        %v2331 = vpop.f32.mrf.mxu0
        %v2332 = vadd.f32 %v2245, %v2331
        %2333 = vmatmul.bf16.gmra.mxu0 %v2292
        %v2334 = vpop.f32.mrf.mxu0
        %v2335 = vadd.f32 %v2245, %v2334
        %v2336 = vpop.f32.mrf.mxu0
        %v2337 = vadd.f32 %v2245, %v2336
        %2338 = vmatmul.bf16.gmra.mxu0 %v2295
        %v2339 = vpop.f32.mrf.mxu0
        %v2340 = vadd.f32 %v2245, %v2339
        %v2341 = vpop.f32.mrf.mxu0
        %2342 = vdwg.mxu0
        %v2343 = vld [vmem:[%s16] sm:$0xff]
        %v2344 = vld [vmem:[%s16 + $0x8] sm:$0xff]
        %v2345 = vld [vmem:[%s16 + $0x10] sm:$0xff]
        %v2346 = vld [vmem:[%s16 + $0x18] sm:$0xff]
        %v2347 = vld [vmem:[%s16 + $0x20] sm:$0xff]
        %v2348 = vld [vmem:[%s16 + $0x28] sm:$0xff]
        %v2349 = vld [vmem:[%s16 + $0x30] sm:$0xff]
        %v2350 = vld [vmem:[%s16 + $0x38] sm:$0xff]
        %v2351 = vld [vmem:[%s18] sm:$0x3]
        %v2353 = vperm.slane %v2351, 0
        %v2354 = vperm.slane %v2351, 1
        %v2365 = vunpack.c.l.b16 %v2343
        %v2366 = vunpack.c.h.b16 %v2343
        %v2367 = vunpack.c.l.b16 %v2344
        %v2368 = vunpack.c.h.b16 %v2344
        %v2369 = vunpack.c.l.b16 %v2345
        %v2370 = vunpack.c.h.b16 %v2345
        %v2371 = vunpack.c.l.b16 %v2346
        %v2372 = vunpack.c.h.b16 %v2346
        %v2373 = vunpack.c.l.b16 %v2347
        %v2374 = vunpack.c.h.b16 %v2347
        %v2375 = vunpack.c.l.b16 %v2348
        %v2376 = vunpack.c.h.b16 %v2348
        %v2377 = vunpack.c.l.b16 %v2349
        %v2378 = vunpack.c.h.b16 %v2349
        %v2379 = vunpack.c.l.b16 %v2350
        %v2380 = vunpack.c.h.b16 %v2350
        %v2381 = vpack.c.b16 %v2367, %v2365
        %v2382 = vpack.c.b16 %v2368, %v2366
        %v2383 = vpack.c.b16 %v2371, %v2369
        %v2384 = vpack.c.b16 %v2372, %v2370
        %v2385 = vpack.c.b16 %v2375, %v2373
        %v2386 = vpack.c.b16 %v2376, %v2374
        %v2387 = vpack.c.b16 %v2379, %v2377
        %v2388 = vpack.c.b16 %v2380, %v2378
        %v2397 = vsel %vm1419, 0, 0
        %2399 = vmatpush.bf16.msra.mxu0 0
        %2400 = vmatpush.bf16.msra.mxu0 0
        %2401 = vmatpush.bf16.msra.mxu0 0
        %2402 = vmatpush.bf16.msra.mxu0 0
        %2403 = vmatpush.bf16.msra.mxu0 %v2387
        %2404 = vmatpush.bf16.msra.mxu0 %v2385
        %2405 = vmatpush.bf16.msra.mxu0 %v2383
        %2406 = vmatpush.bf16.msra.mxu0 %v2381
        %2407 = vmatmul.bf16.gmra.mxu0 %v2397
        %v2408 = vpop.f32.mrf.mxu0
        %v2409 = vadd.f32 %v2353, %v2408
        %v2410 = vpop.f32.mrf.mxu0
        %2411 = vdwg.mxu0
        %2412 = vmatpush.bf16.msra.mxu0 0
        %2413 = vmatpush.bf16.msra.mxu0 0
        %2414 = vmatpush.bf16.msra.mxu0 0
        %2415 = vmatpush.bf16.msra.mxu0 0
        %2416 = vmatpush.bf16.msra.mxu0 %v2388
        %2417 = vmatpush.bf16.msra.mxu0 %v2386
        %2418 = vmatpush.bf16.msra.mxu0 %v2384
        %2419 = vmatpush.bf16.msra.mxu0 %v2382
        %2420 = vmatmul.bf16.gmra.mxu0 %v2397
        %v2421 = vpop.f32.mrf.mxu0
        %v2422 = vadd.f32 %v2354, %v2421
        %v2423 = vpop.f32.mrf.mxu0
        %2424 = vdwg.mxu0
        %v2425 = vadd.f32 %v2307, %v2409
        %v2426 = vxor.u32 %v2425, 2147483648
        %v2427 = vmul.f32 %v2426, 1.442695
        %v2428 = vpow.pop %v2427
        %v2429 = vadd.f32 %v2428, 1.0
        %v2430 = vrcp.pop %v2429
        %v2431 = vmul.f32 %v2429, %v2430
        %v2432 = vsub.f32 1.0, %v2431
        %v2433 = vmul.f32 %v2430, %v2432
        %v2434 = vadd.f32 %v2430, %v2433
        %vm2435 = vweird.f32 %v2429
        %vm2436 = vweird.f32 %v2430
        %vm2437 = vmor %vm2435, %vm2436
        %v2438 = vsel %vm2437, %v2430, %v2434
        %v2439 = vand.u32 2147483647, %v2429
        %vm2440 = vcmp.eq.f32.partialorder %v2439, 8.507059e+37
        %v2441 = vand.u32 %v2429, 2147483648
        %v2442 = vor.u32 1.1754944e-38, %v2441
        %v2443 = vsel %vm2440, %v2442, %v2438
        %v2444 = vmul.f32 1.0, %v2443
        %v2445 = vmul.f32 %v2444, %v2422
        %v2446 = vadd.f32 %v2330, %v2445
        %v2447 = vtanh.pop %v2446
        %v2448 = vsub.f32 1.0, %v2444
        %2450 = vrot.lane.b32.xlu0 %v2447, 64
        %v2451 = vpop.permute.xlu0 %2450
        %v2453 = vmul.f32 %v2448, %v2451
        %v2454 = vmul.f32 %v2444, 0.0
        %v2455 = vadd.f32 %v2453, %v2454
        %v2456 = vpack.c.bf16 %v2455, %v2455
        %2458 = vrot.lane.b32.xlu0 %v2456, 64
        %v2459 = vpop.permute.xlu0 %2458
        %v2461 = vsel %vm1419, %v2459, 0
        %2463 = vmatpush.bf16.msra.mxu0 0
        %2464 = vmatpush.bf16.msra.mxu0 0
        %2465 = vmatpush.bf16.msra.mxu0 0
        %2466 = vmatpush.bf16.msra.mxu0 0
        %2467 = vmatpush.bf16.msra.mxu0 %v2387
        %2468 = vmatpush.bf16.msra.mxu0 %v2385
        %2469 = vmatpush.bf16.msra.mxu0 %v2383
        %2470 = vmatpush.bf16.msra.mxu0 %v2381
        %2471 = vmatmul.bf16.gmra.mxu0 %v2461
        %v2472 = vpop.f32.mrf.mxu0
        %v2473 = vadd.f32 %v2353, %v2472
        %v2474 = vpop.f32.mrf.mxu0
        %2475 = vdwg.mxu0
        %2476 = vmatpush.bf16.msra.mxu0 0
        %2477 = vmatpush.bf16.msra.mxu0 0
        %2478 = vmatpush.bf16.msra.mxu0 0
        %2479 = vmatpush.bf16.msra.mxu0 0
        %2480 = vmatpush.bf16.msra.mxu0 %v2388
        %2481 = vmatpush.bf16.msra.mxu0 %v2386
        %2482 = vmatpush.bf16.msra.mxu0 %v2384
        %2483 = vmatpush.bf16.msra.mxu0 %v2382
        %2484 = vmatmul.bf16.gmra.mxu0 %v2461
        %v2485 = vpop.f32.mrf.mxu0
        %v2486 = vadd.f32 %v2354, %v2485
        %v2487 = vpop.f32.mrf.mxu0
        %2488 = vdwg.mxu0
        %v2489 = vadd.f32 %v2309, %v2473
        %v2490 = vxor.u32 %v2489, 2147483648
        %v2491 = vmul.f32 %v2490, 1.442695
        %v2492 = vpow.pop %v2491
        %v2493 = vadd.f32 %v2492, 1.0
        %v2494 = vrcp.pop %v2493
        %v2495 = vmul.f32 %v2493, %v2494
        %v2496 = vsub.f32 1.0, %v2495
        %v2497 = vmul.f32 %v2494, %v2496
        %v2498 = vadd.f32 %v2494, %v2497
        %vm2499 = vweird.f32 %v2493
        %vm2500 = vweird.f32 %v2494
        %vm2501 = vmor %vm2499, %vm2500
        %v2502 = vsel %vm2501, %v2494, %v2498
        %v2503 = vand.u32 2147483647, %v2493
        %vm2504 = vcmp.eq.f32.partialorder %v2503, 8.507059e+37
        %v2505 = vand.u32 %v2493, 2147483648
        %v2506 = vor.u32 1.1754944e-38, %v2505
        %v2507 = vsel %vm2504, %v2506, %v2502
        %v2508 = vmul.f32 1.0, %v2507
        %v2509 = vmul.f32 %v2508, %v2486
        %v2510 = vadd.f32 %v2332, %v2509
        %v2511 = vtanh.pop %v2510
        %v2512 = vsub.f32 1.0, %v2508
        %2514 = vrot.lane.b32.xlu0 %v2511, 64
        %v2515 = vpop.permute.xlu0 %2514
        %v2517 = vmul.f32 %v2512, %v2515
        %v2518 = vmul.f32 %v2508, %v2455
        %v2519 = vadd.f32 %v2517, %v2518
        %v2520 = vpack.c.bf16 %v2519, %v2519
        %2522 = vrot.lane.b32.xlu0 %v2520, 64
        %v2523 = vpop.permute.xlu0 %2522
        %v2525 = vsel %vm1419, %v2523, 0
        %2527 = vmatpush.bf16.msra.mxu0 0
        %2528 = vmatpush.bf16.msra.mxu0 0
        %2529 = vmatpush.bf16.msra.mxu0 0
        %2530 = vmatpush.bf16.msra.mxu0 0
        %2531 = vmatpush.bf16.msra.mxu0 %v2387
        %2532 = vmatpush.bf16.msra.mxu0 %v2385
        %2533 = vmatpush.bf16.msra.mxu0 %v2383
        %2534 = vmatpush.bf16.msra.mxu0 %v2381
        %2535 = vmatmul.bf16.gmra.mxu0 %v2525
        %v2536 = vpop.f32.mrf.mxu0
        %v2537 = vadd.f32 %v2353, %v2536
        %v2538 = vpop.f32.mrf.mxu0
        %2539 = vdwg.mxu0
        %2540 = vmatpush.bf16.msra.mxu0 0
        %2541 = vmatpush.bf16.msra.mxu0 0
        %2542 = vmatpush.bf16.msra.mxu0 0
        %2543 = vmatpush.bf16.msra.mxu0 0
        %2544 = vmatpush.bf16.msra.mxu0 %v2388
        %2545 = vmatpush.bf16.msra.mxu0 %v2386
        %2546 = vmatpush.bf16.msra.mxu0 %v2384
        %2547 = vmatpush.bf16.msra.mxu0 %v2382
        %2548 = vmatmul.bf16.gmra.mxu0 %v2525
        %v2549 = vpop.f32.mrf.mxu0
        %v2550 = vadd.f32 %v2354, %v2549
        %v2551 = vpop.f32.mrf.mxu0
        %2552 = vdwg.mxu0
        %v2553 = vadd.f32 %v2312, %v2537
        %v2554 = vxor.u32 %v2553, 2147483648
        %v2555 = vmul.f32 %v2554, 1.442695
        %v2556 = vpow.pop %v2555
        %v2557 = vadd.f32 %v2556, 1.0
        %v2558 = vrcp.pop %v2557
        %v2559 = vmul.f32 %v2557, %v2558
        %v2560 = vsub.f32 1.0, %v2559
        %v2561 = vmul.f32 %v2558, %v2560
        %v2562 = vadd.f32 %v2558, %v2561
        %vm2563 = vweird.f32 %v2557
        %vm2564 = vweird.f32 %v2558
        %vm2565 = vmor %vm2563, %vm2564
        %v2566 = vsel %vm2565, %v2558, %v2562
        %v2567 = vand.u32 2147483647, %v2557
        %vm2568 = vcmp.eq.f32.partialorder %v2567, 8.507059e+37
        %v2569 = vand.u32 %v2557, 2147483648
        %v2570 = vor.u32 1.1754944e-38, %v2569
        %v2571 = vsel %vm2568, %v2570, %v2566
        %v2572 = vmul.f32 1.0, %v2571
        %v2573 = vmul.f32 %v2572, %v2550
        %v2574 = vadd.f32 %v2335, %v2573
        %v2575 = vtanh.pop %v2574
        %v2576 = vsub.f32 1.0, %v2572
        %2578 = vrot.lane.b32.xlu0 %v2575, 64
        %v2579 = vpop.permute.xlu0 %2578
        %v2581 = vmul.f32 %v2576, %v2579
        %v2582 = vmul.f32 %v2572, %v2519
        %v2583 = vadd.f32 %v2581, %v2582
        %v2584 = vpack.c.bf16 %v2583, %v2583
        %2586 = vrot.lane.b32.xlu0 %v2584, 64
        %v2587 = vpop.permute.xlu0 %2586
        %v2589 = vsel %vm1419, %v2587, 0
        %2591 = vmatpush.bf16.msra.mxu0 0
        %2592 = vmatpush.bf16.msra.mxu0 0
        %2593 = vmatpush.bf16.msra.mxu0 0
        %2594 = vmatpush.bf16.msra.mxu0 0
        %2595 = vmatpush.bf16.msra.mxu0 %v2387
        %2596 = vmatpush.bf16.msra.mxu0 %v2385
        %2597 = vmatpush.bf16.msra.mxu0 %v2383
        %2598 = vmatpush.bf16.msra.mxu0 %v2381
        %2599 = vmatmul.bf16.gmra.mxu0 %v2589
        %v2600 = vpop.f32.mrf.mxu0
        %v2601 = vadd.f32 %v2353, %v2600
        %v2602 = vpop.f32.mrf.mxu0
        %2603 = vdwg.mxu0
        %2604 = vmatpush.bf16.msra.mxu0 0
        %2605 = vmatpush.bf16.msra.mxu0 0
        %2606 = vmatpush.bf16.msra.mxu0 0
        %2607 = vmatpush.bf16.msra.mxu0 0
        %2608 = vmatpush.bf16.msra.mxu0 %v2388
        %2609 = vmatpush.bf16.msra.mxu0 %v2386
        %2610 = vmatpush.bf16.msra.mxu0 %v2384
        %2611 = vmatpush.bf16.msra.mxu0 %v2382
        %2612 = vmatmul.bf16.gmra.mxu0 %v2589
        %v2613 = vpop.f32.mrf.mxu0
        %v2614 = vadd.f32 %v2354, %v2613
        %v2615 = vpop.f32.mrf.mxu0
        %2616 = vdwg.mxu0
        %v2617 = vadd.f32 %v2314, %v2601
        %v2618 = vxor.u32 %v2617, 2147483648
        %v2619 = vmul.f32 %v2618, 1.442695
        %v2620 = vpow.pop %v2619
        %v2621 = vadd.f32 %v2620, 1.0
        %v2622 = vrcp.pop %v2621
        %v2623 = vmul.f32 %v2621, %v2622
        %v2624 = vsub.f32 1.0, %v2623
        %v2625 = vmul.f32 %v2622, %v2624
        %v2626 = vadd.f32 %v2622, %v2625
        %vm2627 = vweird.f32 %v2621
        %vm2628 = vweird.f32 %v2622
        %vm2629 = vmor %vm2627, %vm2628
        %v2630 = vsel %vm2629, %v2622, %v2626
        %v2631 = vand.u32 2147483647, %v2621
        %vm2632 = vcmp.eq.f32.partialorder %v2631, 8.507059e+37
        %v2633 = vand.u32 %v2621, 2147483648
        %v2634 = vor.u32 1.1754944e-38, %v2633
        %v2635 = vsel %vm2632, %v2634, %v2630
        %v2636 = vmul.f32 1.0, %v2635
        %v2637 = vmul.f32 %v2636, %v2614
        %v2638 = vadd.f32 %v2337, %v2637
        %v2639 = vtanh.pop %v2638
        %v2640 = vsub.f32 1.0, %v2636
        %2642 = vrot.lane.b32.xlu0 %v2639, 64
        %v2643 = vpop.permute.xlu0 %2642
        %v2645 = vmul.f32 %v2640, %v2643
        %v2646 = vmul.f32 %v2636, %v2583
        %v2647 = vadd.f32 %v2645, %v2646
        %v2648 = vpack.c.bf16 %v2647, %v2647
        %2650 = vrot.lane.b32.xlu0 %v2648, 64
        %v2651 = vpop.permute.xlu0 %2650
        %v2653 = vsel %vm1419, %v2651, 0
        %2655 = vmatpush.bf16.msra.mxu0 0
        %2656 = vmatpush.bf16.msra.mxu0 0
        %2657 = vmatpush.bf16.msra.mxu0 0
        %2658 = vmatpush.bf16.msra.mxu0 0
        %2659 = vmatpush.bf16.msra.mxu0 %v2387
        %2660 = vmatpush.bf16.msra.mxu0 %v2385
        %2661 = vmatpush.bf16.msra.mxu0 %v2383
        %2662 = vmatpush.bf16.msra.mxu0 %v2381
        %2663 = vmatmul.bf16.gmra.mxu0 %v2653
        %v2664 = vpop.f32.mrf.mxu0
        %v2665 = vadd.f32 %v2353, %v2664
        %v2666 = vpop.f32.mrf.mxu0
        %2667 = vdwg.mxu0
        %2668 = vmatpush.bf16.msra.mxu0 0
        %2669 = vmatpush.bf16.msra.mxu0 0
        %2670 = vmatpush.bf16.msra.mxu0 0
        %2671 = vmatpush.bf16.msra.mxu0 0
        %2672 = vmatpush.bf16.msra.mxu0 %v2388
        %2673 = vmatpush.bf16.msra.mxu0 %v2386
        %2674 = vmatpush.bf16.msra.mxu0 %v2384
        %2675 = vmatpush.bf16.msra.mxu0 %v2382
        %2676 = vmatmul.bf16.gmra.mxu0 %v2653
        %v2677 = vpop.f32.mrf.mxu0
        %v2678 = vadd.f32 %v2354, %v2677
        %v2679 = vpop.f32.mrf.mxu0
        %2680 = vdwg.mxu0
        %v2681 = vadd.f32 %v2317, %v2665
        %v2682 = vxor.u32 %v2681, 2147483648
        %v2683 = vmul.f32 %v2682, 1.442695
        %v2684 = vpow.pop %v2683
        %v2685 = vadd.f32 %v2684, 1.0
        %v2686 = vrcp.pop %v2685
        %v2687 = vmul.f32 %v2685, %v2686
        %v2688 = vsub.f32 1.0, %v2687
        %v2689 = vmul.f32 %v2686, %v2688
        %v2690 = vadd.f32 %v2686, %v2689
        %vm2691 = vweird.f32 %v2685
        %vm2692 = vweird.f32 %v2686
        %vm2693 = vmor %vm2691, %vm2692
        %v2694 = vsel %vm2693, %v2686, %v2690
        %v2695 = vand.u32 2147483647, %v2685
        %vm2696 = vcmp.eq.f32.partialorder %v2695, 8.507059e+37
        %v2697 = vand.u32 %v2685, 2147483648
        %v2698 = vor.u32 1.1754944e-38, %v2697
        %v2699 = vsel %vm2696, %v2698, %v2694
        %v2700 = vmul.f32 1.0, %v2699
        %v2701 = vmul.f32 %v2700, %v2678
        %v2702 = vadd.f32 %v2340, %v2701
        %v2703 = vtanh.pop %v2702
        %v2704 = vsub.f32 1.0, %v2700
        %2706 = vrot.lane.b32.xlu0 %v2703, 64
        %v2707 = vpop.permute.xlu0 %2706
        %v2709 = vmul.f32 %v2704, %v2707
        %v2710 = vmul.f32 %v2700, %v2647
        %v2711 = vadd.f32 %v2709, %v2710
        %2713 = vrot.lane.b32.xlu0 %v2455, 64
        %v2714 = vpop.permute.xlu0 %2713
        %2717 = vrot.lane.b32.xlu0 %v2583, 64
        %v2718 = vpop.permute.xlu0 %2717
        %2721 = vrot.lane.b32.xlu0 %v2711, 64
        %v2722 = vpop.permute.xlu0 %2721
        %v2724 = vsel %vm1419, %v2714, %v2519
        %v2725 = vsel %vm1419, %v2718, %v2647
        %v2726 = vld [vmem:[%s19] sm:$0xf]
        %v2727 = vld [vmem:[%s19 + $0x4] sm:$0xf]
        %v2728 = vld [vmem:[%s19 + $0x8] sm:$0xf]
        %v2729 = vld [vmem:[%s19 + $0xc] sm:$0xf]
        %v2730 = vld [vmem:[%s19 + $0x10] sm:$0xf]
        %v2731 = vld [vmem:[%s19 + $0x14] sm:$0xf]
        %v2732 = vld [vmem:[%s19 + $0x18] sm:$0xf]
        %v2733 = vld [vmem:[%s19 + $0x1c] sm:$0xf]
        %v2734 = vld [vmem:[%s19 + $0x20] sm:$0xf]
        %v2735 = vld [vmem:[%s19 + $0x24] sm:$0xf]
        %v2736 = vld [vmem:[%s19 + $0x28] sm:$0xf]
        %v2737 = vld [vmem:[%s19 + $0x2c] sm:$0xf]
        %v2738 = vld [vmem:[%s19 + $0x30] sm:$0xf]
        %v2739 = vld [vmem:[%s19 + $0x34] sm:$0xf]
        %v2740 = vld [vmem:[%s19 + $0x38] sm:$0xf]
        %v2741 = vld [vmem:[%s19 + $0x3c] sm:$0xf]
        %v2742 = vld [vmem:[%s19 + $0x40] sm:$0xf]
        %v2743 = vld [vmem:[%s19 + $0x44] sm:$0xf]
        %v2744 = vld [vmem:[%s19 + $0x48] sm:$0xf]
        %v2745 = vld [vmem:[%s19 + $0x4c] sm:$0xf]
        %v2746 = vld [vmem:[%s19 + $0x50] sm:$0xf]
        %v2747 = vld [vmem:[%s19 + $0x54] sm:$0xf]
        %v2748 = vld [vmem:[%s19 + $0x58] sm:$0xf]
        %v2749 = vld [vmem:[%s19 + $0x5c] sm:$0xf]
        %v2750 = vld [vmem:[%s19 + $0x60] sm:$0xf]
        %v2751 = vld [vmem:[%s19 + $0x64] sm:$0xf]
        %v2752 = vld [vmem:[%s19 + $0x68] sm:$0xf]
        %v2753 = vld [vmem:[%s19 + $0x6c] sm:$0xf]
        %v2754 = vld [vmem:[%s19 + $0x70] sm:$0xf]
        %v2755 = vld [vmem:[%s19 + $0x74] sm:$0xf]
        %v2756 = vld [vmem:[%s19 + $0x78] sm:$0xf]
        %v2757 = vld [vmem:[%s19 + $0x7c] sm:$0xf]
        %v2758 = vld [vmem:[%s19 + $0x80] sm:$0xf]
        %v2759 = vld [vmem:[%s19 + $0x84] sm:$0xf]
        %v2760 = vld [vmem:[%s19 + $0x88] sm:$0xf]
        %v2761 = vld [vmem:[%s19 + $0x8c] sm:$0xf]
        %v2762 = vld [vmem:[%s19 + $0x90] sm:$0xf]
        %v2763 = vld [vmem:[%s19 + $0x94] sm:$0xf]
        %v2764 = vld [vmem:[%s19 + $0x98] sm:$0xf]
        %v2765 = vld [vmem:[%s19 + $0x9c] sm:$0xf]
        %v2766 = vpack.c.bf16 %v2724, %v2724
        %v2767 = vpack.c.bf16 %v2725, %v2725
        %v2768 = vpack.c.bf16 %v2722, %v2722
        %v2769 = vld [vmem:[%s20] sm:$0x1]
        %v2771 = vperm.slane %v2769, 0
        %v2813 = vunpack.c.l.b16 %v2726
        %v2814 = vunpack.c.l.b16 %v2727
        %v2815 = vunpack.c.l.b16 %v2728
        %v2816 = vunpack.c.l.b16 %v2729
        %v2817 = vunpack.c.l.b16 %v2730
        %v2818 = vunpack.c.l.b16 %v2731
        %v2819 = vunpack.c.l.b16 %v2732
        %v2820 = vunpack.c.l.b16 %v2733
        %v2821 = vunpack.c.l.b16 %v2734
        %v2822 = vunpack.c.l.b16 %v2735
        %v2823 = vunpack.c.l.b16 %v2736
        %v2824 = vunpack.c.l.b16 %v2737
        %v2825 = vunpack.c.l.b16 %v2738
        %v2826 = vunpack.c.l.b16 %v2739
        %v2827 = vunpack.c.l.b16 %v2740
        %v2828 = vunpack.c.l.b16 %v2741
        %v2829 = vunpack.c.l.b16 %v2742
        %v2830 = vunpack.c.l.b16 %v2743
        %v2831 = vunpack.c.l.b16 %v2744
        %v2832 = vunpack.c.l.b16 %v2745
        %v2833 = vunpack.c.l.b16 %v2746
        %v2834 = vunpack.c.l.b16 %v2747
        %v2835 = vunpack.c.l.b16 %v2748
        %v2836 = vunpack.c.l.b16 %v2749
        %v2837 = vunpack.c.l.b16 %v2750
        %v2838 = vunpack.c.l.b16 %v2751
        %v2839 = vunpack.c.l.b16 %v2752
        %v2840 = vunpack.c.l.b16 %v2753
        %v2841 = vunpack.c.l.b16 %v2754
        %v2842 = vunpack.c.l.b16 %v2755
        %v2843 = vunpack.c.l.b16 %v2756
        %v2844 = vunpack.c.l.b16 %v2757
        %v2845 = vunpack.c.l.b16 %v2758
        %v2846 = vunpack.c.l.b16 %v2759
        %v2847 = vunpack.c.l.b16 %v2760
        %v2848 = vunpack.c.l.b16 %v2761
        %v2849 = vunpack.c.l.b16 %v2762
        %v2850 = vunpack.c.l.b16 %v2763
        %v2851 = vunpack.c.l.b16 %v2764
        %v2852 = vunpack.c.l.b16 %v2765
        %v2853 = vpack.c.b16 %v2814, %v2813
        %v2854 = vpack.c.b16 %v2816, %v2815
        %v2855 = vpack.c.b16 %v2818, %v2817
        %v2856 = vpack.c.b16 %v2820, %v2819
        %v2857 = vpack.c.b16 %v2822, %v2821
        %v2858 = vpack.c.b16 %v2824, %v2823
        %v2859 = vpack.c.b16 %v2826, %v2825
        %v2860 = vpack.c.b16 %v2828, %v2827
        %v2861 = vpack.c.b16 %v2830, %v2829
        %v2862 = vpack.c.b16 %v2832, %v2831
        %v2863 = vpack.c.b16 %v2834, %v2833
        %v2864 = vpack.c.b16 %v2836, %v2835
        %v2865 = vpack.c.b16 %v2838, %v2837
        %v2866 = vpack.c.b16 %v2840, %v2839
        %v2867 = vpack.c.b16 %v2842, %v2841
        %v2868 = vpack.c.b16 %v2844, %v2843
        %v2869 = vpack.c.b16 %v2846, %v2845
        %v2870 = vpack.c.b16 %v2848, %v2847
        %v2871 = vpack.c.b16 %v2850, %v2849
        %v2872 = vpack.c.b16 %v2852, %v2851
        %v2894 = vsel %vm1419, %v2768, 0
        %2896 = vmatpush.bf16.msra.mxu0 %v2860
        %2897 = vmatpush.bf16.msra.mxu0 %v2859
        %2898 = vmatpush.bf16.msra.mxu0 %v2858
        %2899 = vmatpush.bf16.msra.mxu0 %v2857
        %2900 = vmatpush.bf16.msra.mxu0 %v2856
        %2901 = vmatpush.bf16.msra.mxu0 %v2855
        %2902 = vmatpush.bf16.msra.mxu0 %v2854
        %2903 = vmatpush.bf16.msra.mxu0 %v2853
        %2904 = vmatmul.bf16.gmra.mxu0 %v2766
        %v2905 = vpop.f32.mrf.mxu0
        %v2906 = vadd.f32 %v2771, %v2905
        %v2907 = vpop.f32.mrf.mxu0
        %2908 = vdwg.mxu0
        %2909 = vmatpush.bf16.msra.mxu0 %v2868
        %2910 = vmatpush.bf16.msra.mxu0 %v2867
        %2911 = vmatpush.bf16.msra.mxu0 %v2866
        %2912 = vmatpush.bf16.msra.mxu0 %v2865
        %2913 = vmatpush.bf16.msra.mxu0 %v2864
        %2914 = vmatpush.bf16.msra.mxu0 %v2863
        %2915 = vmatpush.bf16.msra.mxu0 %v2862
        %2916 = vmatpush.bf16.msra.mxu0 %v2861
        %2917 = vmatmul.bf16.gmra.mxu0 %v2767
        %v2918 = vpop.f32.mrf.mxu0
        %v2919 = vadd.f32 %v2906, %v2918
        %v2920 = vpop.f32.mrf.mxu0
        %2921 = vdwg.mxu0
        %2922 = vmatpush.bf16.msra.mxu0 0
        %2923 = vmatpush.bf16.msra.mxu0 0
        %2924 = vmatpush.bf16.msra.mxu0 0
        %2925 = vmatpush.bf16.msra.mxu0 0
        %2926 = vmatpush.bf16.msra.mxu0 %v2872
        %2927 = vmatpush.bf16.msra.mxu0 %v2871
        %2928 = vmatpush.bf16.msra.mxu0 %v2870
        %2929 = vmatpush.bf16.msra.mxu0 %v2869
        %2930 = vmatmul.bf16.gmra.mxu0 %v2894
        %v2931 = vpop.f32.mrf.mxu0
        %v2932 = vadd.f32 %v2919, %v2931
        %v2933 = vpop.f32.mrf.mxu0
        %2934 = vdwg.mxu0
        %v2935 = vld [vmem:[%s852] sm:$0xff]
        %v2936 = vld [vmem:[%s21] sm:$0xf]
        %v2937 = vld [vmem:[%s21 + $0x4] sm:$0xf]
        %v2938 = vld [vmem:[%s21 + $0x8] sm:$0xf]
        %v2939 = vld [vmem:[%s21 + $0xc] sm:$0xf]
        %v2940 = vld [vmem:[%s22] sm:$0x1]
        %v2941 = vpack.c.bf16 %v2932, %v2932
        %v2946 = vunpack.c.l.b16 %v2936
        %v2947 = vunpack.c.l.b16 %v2937
        %v2948 = vunpack.c.l.b16 %v2938
        %v2949 = vunpack.c.l.b16 %v2939
        %v2950 = vpack.c.b16 %v2947, %v2946
        %v2951 = vpack.c.b16 %v2949, %v2948
        %v2955 = vsel %vm957, %v2941, 0
        %2957 = vmatpush.bf16.msra.mxu0 0
        %2958 = vmatpush.bf16.msra.mxu0 0
        %2959 = vmatpush.bf16.msra.mxu0 0
        %2960 = vmatpush.bf16.msra.mxu0 0
        %2961 = vmatpush.bf16.msra.mxu0 0
        %2962 = vmatpush.bf16.msra.mxu0 0
        %2963 = vmatpush.bf16.msra.mxu0 %v2951
        %2964 = vmatpush.bf16.msra.mxu0 %v2950
        %2965 = vmatmul.bf16.gmra.mxu0 %v2955
        %v2966 = vpop.f32.mrf.mxu0
        %v2967 = vadd.f32 0.0, %v2966
        %v2968 = vpop.f32.mrf.mxu0
        %2969 = vdwg.mxu0
        %v2971 = vperm.slane %v2940, 0
        %vm2973 = vcmask 64512
        %v2975 = vsel %vm2973, %v2935, 0
        %2977 = vmatpush.msra.mxu0 0.0
        %2978 = vmatpush.msra.mxu0 0.0
        %2979 = vmatpush.msra.mxu0 0.0
        %2980 = vmatpush.msra.mxu0 0.0
        %2981 = vmatpush.msra.mxu0 0.0
        %2982 = vmatpush.msra.mxu0 0.0
        %2983 = vmatpush.msra.mxu0 0.0
        %2984 = vmatpush.msra.mxu0 0.0
        %2985 = vmatpush.msra.mxu0 0.0
        %2986 = vmatpush.msra.mxu0 0.0
        %2987 = vmatpush.msra.mxu0 0.0
        %2988 = vmatpush.msra.mxu0 0.0
        %2989 = vmatpush.msra.mxu0 0.0
        %2990 = vmatpush.msra.mxu0 0.0
        %2991 = vmatpush.msra.mxu0 0.0
        %2992 = vmatpush.msra.mxu0 %v2967
        %2993 = vmatmul.f32.gmra.mxu0 %v2975
        %v2994 = vpop.f32.mrf.mxu0
        %v2995 = vadd.f32 %v2971, %v2994
        %2996 = vdwg.mxu0
        %v2997 = vmax.f32 %v2995, 0.0
        %v2998 = vld [vmem:[%s23] sm:$0xf]
        %v2999 = vld [vmem:[%s23 + $0x4] sm:$0xf]
        %v3000 = vld [vmem:[%s23 + $0x8] sm:$0xf]
        %v3001 = vld [vmem:[%s23 + $0xc] sm:$0xf]
        %v3002 = vld [vmem:[%s24] sm:$0x1]
        %v3003 = vpack.c.bf16 %v2997, %v2997
        %v3008 = vunpack.c.l.b16 %v2998
        %v3009 = vunpack.c.l.b16 %v2999
        %v3010 = vunpack.c.l.b16 %v3000
        %v3011 = vunpack.c.l.b16 %v3001
        %v3012 = vpack.c.b16 %v3009, %v3008
        %v3013 = vpack.c.b16 %v3011, %v3010
        %v3017 = vsel %vm957, %v3003, 0
        %3019 = vmatpush.bf16.msra.mxu0 0
        %3020 = vmatpush.bf16.msra.mxu0 0
        %3021 = vmatpush.bf16.msra.mxu0 0
        %3022 = vmatpush.bf16.msra.mxu0 0
        %3023 = vmatpush.bf16.msra.mxu0 0
        %3024 = vmatpush.bf16.msra.mxu0 0
        %3025 = vmatpush.bf16.msra.mxu0 %v3013
        %3026 = vmatpush.bf16.msra.mxu0 %v3012
        %3027 = vmatmul.bf16.gmra.mxu0 %v3017
        %v3028 = vpop.f32.mrf.mxu0
        %v3029 = vadd.f32 0.0, %v3028
        %v3030 = vpop.f32.mrf.mxu0
        %3031 = vdwg.mxu0
        %v3033 = vperm.slane %v3002, 0
        %3035 = vmatpush.msra.mxu0 0.0
        %3036 = vmatpush.msra.mxu0 0.0
        %3037 = vmatpush.msra.mxu0 0.0
        %3038 = vmatpush.msra.mxu0 0.0
        %3039 = vmatpush.msra.mxu0 0.0
        %3040 = vmatpush.msra.mxu0 0.0
        %3041 = vmatpush.msra.mxu0 0.0
        %3042 = vmatpush.msra.mxu0 0.0
        %3043 = vmatpush.msra.mxu0 0.0
        %3044 = vmatpush.msra.mxu0 0.0
        %3045 = vmatpush.msra.mxu0 0.0
        %3046 = vmatpush.msra.mxu0 0.0
        %3047 = vmatpush.msra.mxu0 0.0
        %3048 = vmatpush.msra.mxu0 0.0
        %3049 = vmatpush.msra.mxu0 0.0
        %3050 = vmatpush.msra.mxu0 %v3029
        %3051 = vmatmul.f32.gmra.mxu0 %v2975
        %v3052 = vpop.f32.mrf.mxu0
        %v3053 = vadd.f32 %v3033, %v3052
        %3054 = vdwg.mxu0
        %v3055 = vmax.f32 %v3053, 0.0
        %v3056 = vld [vmem:[%s25] sm:$0xf]
        %v3057 = vld [vmem:[%s25 + $0x4] sm:$0xf]
        %v3058 = vld [vmem:[%s25 + $0x8] sm:$0xf]
        %v3059 = vld [vmem:[%s25 + $0xc] sm:$0xf]
        %v3060 = vld [vmem:[%s26] sm:$0x1]
        %v3061 = vpack.c.bf16 %v3055, %v3055
        %v3066 = vunpack.c.l.b16 %v3056
        %v3067 = vunpack.c.l.b16 %v3057
        %v3068 = vunpack.c.l.b16 %v3058
        %v3069 = vunpack.c.l.b16 %v3059
        %v3070 = vpack.c.b16 %v3067, %v3066
        %v3071 = vpack.c.b16 %v3069, %v3068
        %v3075 = vsel %vm957, %v3061, 0
        %3077 = vmatpush.bf16.msra.mxu0 0
        %3078 = vmatpush.bf16.msra.mxu0 0
        %3079 = vmatpush.bf16.msra.mxu0 0
        %3080 = vmatpush.bf16.msra.mxu0 0
        %3081 = vmatpush.bf16.msra.mxu0 0
        %3082 = vmatpush.bf16.msra.mxu0 0
        %3083 = vmatpush.bf16.msra.mxu0 %v3071
        %3084 = vmatpush.bf16.msra.mxu0 %v3070
        %3085 = vmatmul.bf16.gmra.mxu0 %v3075
        %v3086 = vpop.f32.mrf.mxu0
        %v3087 = vadd.f32 0.0, %v3086
        %v3088 = vpop.f32.mrf.mxu0
        %3089 = vdwg.mxu0
        %v3091 = vperm.slane %v3060, 0
        %3093 = vmatpush.msra.mxu0 0.0
        %3094 = vmatpush.msra.mxu0 0.0
        %3095 = vmatpush.msra.mxu0 0.0
        %3096 = vmatpush.msra.mxu0 0.0
        %3097 = vmatpush.msra.mxu0 0.0
        %3098 = vmatpush.msra.mxu0 0.0
        %3099 = vmatpush.msra.mxu0 0.0
        %3100 = vmatpush.msra.mxu0 0.0
        %3101 = vmatpush.msra.mxu0 0.0
        %3102 = vmatpush.msra.mxu0 0.0
        %3103 = vmatpush.msra.mxu0 0.0
        %3104 = vmatpush.msra.mxu0 0.0
        %3105 = vmatpush.msra.mxu0 0.0
        %3106 = vmatpush.msra.mxu0 0.0
        %3107 = vmatpush.msra.mxu0 0.0
        %3108 = vmatpush.msra.mxu0 %v3087
        %3109 = vmatmul.f32.gmra.mxu0 %v2975
        %v3110 = vpop.f32.mrf.mxu0
        %v3111 = vadd.f32 %v3091, %v3110
        %3112 = vdwg.mxu0
        %vm3113 = vcmask 39936
        %v3114 = vsel %vm3113, %v3111, -inf
        %v3115 = vrot.slane %v3114, 4
        %v3116 = vmax.f32 %v3114, %v3115
        %v3117 = vrot.slane %v3116, 2
        %v3118 = vmax.f32 %v3116, %v3117
        %v3119 = vrot.slane %v3118, 1
        %v3120 = vmax.f32 %v3118, %v3119
        %v3121 = vsel %vm3113, %v3120, -inf
        %3122 = vmax.xlane.f32.xlu0 %v3121
        %v3123 = vpop.xlane.xlu0 %3122
        %v3124 = vsub.f32 %v3120, %v3123
        %v3125 = vmul.f32 %v3124, 1.442695
        %v3126 = vpow.pop %v3125
        %v3127 = vsel %vm3113, %v3126, 0.0
        %3128 = vadd.xlane.f32.xlu0 %v3127
        %v3129 = vpop.xlane.xlu0 %3128
        %v3130 = vrcp.pop %v3129
        %v3131 = vmul.f32 %v3129, %v3130
        %v3132 = vsub.f32 1.0, %v3131
        %v3133 = vmul.f32 %v3130, %v3132
        %v3134 = vadd.f32 %v3130, %v3133
        %vm3135 = vweird.f32 %v3129
        %vm3136 = vweird.f32 %v3130
        %vm3137 = vmor %vm3135, %vm3136
        %v3138 = vsel %vm3137, %v3130, %v3134
        %v3139 = vand.u32 2147483647, %v3129
        %vm3140 = vcmp.eq.f32.partialorder %v3139, 8.507059e+37
        %v3141 = vand.u32 %v3129, 2147483648
        %v3142 = vor.u32 1.1754944e-38, %v3141
        %v3143 = vsel %vm3140, %v3142, %v3138
        %v3144 = vmul.f32 %v3126, %v3143
        %vm3145 = vcmask 32768
        %3146 = vst.msk [vmem:[%s838] sm:$0x1] %vm3145, %v3144
        %s3147 = sand.u32 %s631, 1
        %s3148 = scalar_lea.sflag [#allocation3], %s3147
        %s3149 = sand.u32 %s631, 1
        %s3150 = scalar_lea.vmem [#allocation2], %s3149
        // Predicated region
        $region129: #{vulnerability_forward.1} parent=127 // pred_check
          %p3151 = pneg %p641
        $region130: #{vulnerability_forward.1} parent=127 // pred_check_branch
          %3153 = sbr.rel (%p3151) target = $region132
        $region131: #{vulnerability_forward.1} parent=127 // pred_region
          %3155 = vsyncadd %s3148, 0
          %s3156 = scalar_lea.hbm %s27, %s41
          %s3158 = sshll.u32 %s3150, 4
          %s3159 = int_to_ptr.vmem [resolvable:$true] %s3158
          %s3160 = sshll.u32 %s3156, 4
          %s3161 = int_to_ptr.hbm [resolvable:$true] %s3160
          %3163 = dma.vmem_to_hbm [thread:$0]  %s3159, 16, %s3161, %s3148
        $region132: #{vulnerability_forward.1} parent=127 // pred_fallthru
          _
      $region128: #{vulnerability_forward.1} parent=5 // pred_fallthru
        _
      %p3164 = scmp.le.s32.totalorder 2, %s36
      // Predicated region
      $region133: #{vulnerability_forward.1} parent=5 // pred_check
        %p3165 = pneg %p3164
      $region134: #{vulnerability_forward.1} parent=5 // pred_check_branch
        %3167 = sbr.rel (%p3165) target = $region136
      $region135: #{vulnerability_forward.1} parent=5 // pred_region
        %s3168 = ssub.s32 %s36, 2
        // Predicated region
        $region137: #{vulnerability_forward.1} parent=135 // pred_check
          %p3169 = pneg %p647
        $region138: #{vulnerability_forward.1} parent=135 // pred_check_branch
          %3171 = sbr.rel (%p3169) target = $region140
        $region139: #{vulnerability_forward.1} parent=135 // pred_region
          %s3172 = sand.u32 %s632, 1
          %s3173 = scalar_lea.sflag [#allocation3], %s3172
          %s3174 = sand.u32 %s632, 1
          %s3175 = scalar_lea.vmem [#allocation2], %s3174
          %3177 = dma.done %s3173, 16
        $region140: #{vulnerability_forward.1} parent=135 // pred_fallthru
          _
      $region136: #{vulnerability_forward.1} parent=5 // pred_fallthru
        _
    $region6: #{vulnerability_forward.1} parent=1 // loop_footer
      %s40 = sadd.s32 1, %s36
    $region7: #{vulnerability_forward.1} parent=1 // loop_footer_branch
      %35 = sbr.rel target = $region3
    $region8: #{vulnerability_forward.1} parent=1 // loop_exit
      _
    %3178 = vsyncpa [#allocation3], 1
    %s3179 = scalar_lea.sflag [#allocation3], 1
    %3180 = vsyncpa %s3179, 1

</llo_original>
